<compile_context>
chip_gen: v6e
topology: v6e:2x2x1
jax: 0.10.0
libtpu: 0.0.40
codegen_flags: <defaults>
</compile_context>

<pallas_src>
import functools
import math

import jax
import jax.numpy as jnp
from jax.experimental import pallas as pl
from jax.experimental.pallas import tpu as pltpu

CLIP_MEAN = (0.48145466, 0.4578275, 0.40821073)
CLIP_STD = (0.26862954, 0.26130258, 0.27577711)

VMEM_LIMIT = 64 * 1024 * 1024   # explicit scoped-VMEM cap (v7x physical = 64 MiB)


def _pick_row_tile(m, cap=128):
    """Largest row tile <= cap that divides m and yields >= 2 tiles (else m)."""
    for t in (128, 64, 32, 16, 8):
        if t <= cap and m % t == 0 and m // t >= 2:
            return t
    return m


# ---------------------------------------------------------------------------
# Kernel A: image encoder (CLIP normalization pre-folded into W/b)
# ---------------------------------------------------------------------------
def encode_kernel(x_ref, w_ref, b_ref, o_ref):
    # x/w are bf16, accumulate in f32 directly into the resident output block.
    part = jnp.dot(x_ref[...], w_ref[...], preferred_element_type=jnp.float32)

    @pl.when(pl.program_id(1) == 0)
    def _():
        o_ref[...] = part + b_ref[...]

    @pl.when(pl.program_id(1) > 0)
    def _():
        o_ref[...] += part


def encode_images(x_flat, w, b):
    M, P = x_flat.shape
    D = w.shape[1]
    tm = _pick_row_tile(M)               # >=2 row tiles when possible (megacore)
    tk = P
    for c in (2048, 1024, 512, 256, 128):   # big K tiles -> closer to HBM roofline
        if P % c == 0:
            tk = c
            break
    grid = (M // tm, P // tk)
    return pl.pallas_call(
        encode_kernel,
        out_shape=jax.ShapeDtypeStruct((M, D), jnp.float32),
        grid=grid,
        in_specs=[pl.BlockSpec((tm, tk), lambda i, k: (i, k)),
                  pl.BlockSpec((tk, D), lambda i, k: (k, 0)),
                  pl.BlockSpec((1, D), lambda i, k: (0, 0))],
        out_specs=pl.BlockSpec((tm, D), lambda i, k: (i, 0)),
        compiler_params=pltpu.CompilerParams(
            dimension_semantics=("parallel", "arbitrary"),
            vmem_limit_bytes=VMEM_LIMIT),
    )(x_flat, w, b)


# ---------------------------------------------------------------------------
# Kernel B: fused TransformerEncoder (all layers in one pallas_call)
# ---------------------------------------------------------------------------
STACK_KEYS = ("wqkv", "bqkv", "wo", "bo", "g1", "be1",
              "w1", "b1", "w2", "b2", "g2", "be2")


def _ln(z, g, b):
    mu = jnp.mean(z, axis=-1, keepdims=True)
    var = jnp.mean((z - mu) ** 2, axis=-1, keepdims=True)
    return (z - mu) * jax.lax.rsqrt(var + 1e-5) * g + b


def transformer_stack_kernel(x_ref, wqkv_ref, bqkv_ref, wo_ref, bo_ref,
                             g1_ref, be1_ref, w1_ref, b1_ref, w2_ref, b2_ref,
                             g2_ref, be2_ref, o_ref, x_sc, attn_sc,
                             *, num_heads, batch):
    layer = pl.program_id(1)

    @pl.when(layer == 0)
    def _():
        x_sc[...] = x_ref[...]

    x = x_sc[...]                                # (rows, D) f32, resident in VMEM
    rows, D = x.shape
    S = rows // batch                            # whole s-blocks per chunk
    hd = D // num_heads

    xb = x.astype(jnp.bfloat16)
    # Fused Q/K/V projection: one wide MXU matmul (1/sqrt(hd) pre-folded into Q).
    qkv = (jnp.dot(xb, wqkv_ref[...], preferred_element_type=jnp.float32)
           + bqkv_ref[...])                      # (rows, 3D) f32
    qkv_bf = qkv.astype(jnp.bfloat16)            # cast once; heads sliced from bf16

    # Block-diagonal attention: rows only attend within their own s-block, so
    # scores are (S, B, B) batched over S instead of a dense masked (rows, rows).
    # Static head loop is fine now: per-head temporaries ((S,B,B) + (S,B,hd))
    # are tiny, so liveness / VMEM pressure stays bounded.
    for h in range(num_heads):
        q = qkv_bf[:, h * hd:(h + 1) * hd].reshape(S, batch, hd)
        k = qkv_bf[:, D + h * hd:D + (h + 1) * hd].reshape(S, batch, hd)
        v = qkv_bf[:, 2 * D + h * hd:2 * D + (h + 1) * hd].reshape(S, batch, hd)
        s = jnp.einsum('sbd,scd->sbc', q, k,
                       preferred_element_type=jnp.float32)       # (S, B, B)
        s = s - jnp.max(s, axis=-1, keepdims=True)
        p = jnp.exp(s)
        p = p * pl.reciprocal(jnp.sum(p, axis=-1, keepdims=True), approx=True)
        o = jnp.einsum('sbc,scd->sbd', p.astype(jnp.bfloat16), v,
                       preferred_element_type=jnp.float32)       # (S, B, hd)
        # TODO(synk): if hd is not a multiple of 128 (e.g. D=512, 8 heads) these
        # per-head column slices/stores cut inside a lane tile; a per-head padded
        # layout would make them fully lane-dense.
        attn_sc[:, h * hd:(h + 1) * hd] = (
            o.reshape(rows, hd).astype(jnp.bfloat16))

    attn = (jnp.dot(attn_sc[...], wo_ref[...],
                    preferred_element_type=jnp.float32) + bo_ref[...])
    x1 = _ln(x + attn, g1_ref[...], be1_ref[...])
    ff = jnp.maximum(
        jnp.dot(x1.astype(jnp.bfloat16), w1_ref[...],
                preferred_element_type=jnp.float32) + b1_ref[...], 0.0)
    ff = jnp.dot(ff.astype(jnp.bfloat16), w2_ref[...],
                 preferred_element_type=jnp.float32) + b2_ref[...]
    y = _ln(x1 + ff, g2_ref[...], be2_ref[...])

    x_sc[...] = y                                # carry to next layer

    @pl.when(layer == pl.num_programs(1) - 1)
    def _():
        o_ref[...] = y


def _pick_rows_per_chunk(n_rows, batch, target=1024):
    """Rows per transformer chunk: whole s-blocks (multiple of batch), multiple
    of 8 (sublane tiling), >= 2 chunks when possible (v7x megacore), <= target."""
    unit = batch * 8 // math.gcd(batch, 8)
    if n_rows % unit != 0 or n_rows // unit < 2:
        return n_rows
    cap = max(unit, min(target, n_rows // 2))
    n_units = n_rows // unit
    best = 1
    for u in range(1, n_units + 1):
        if n_units % u == 0 and u * unit <= cap:
            best = u
    return best * unit


def transformer_stack(xf, kp, num_heads, batch):
    N, D = xf.shape
    NL = kp["wqkv"].shape[0]
    rows = _pick_rows_per_chunk(N, batch)
    n_chunks = N // rows

    def stacked(a):
        return pl.BlockSpec((None,) + tuple(a.shape[1:]), lambda r, l: (l, 0, 0))

    kern = functools.partial(transformer_stack_kernel,
                             num_heads=num_heads, batch=batch)
    return pl.pallas_call(
        kern,
        out_shape=jax.ShapeDtypeStruct((N, D), jnp.float32),
        grid=(n_chunks, NL),
        in_specs=[pl.BlockSpec((rows, D), lambda r, l: (r, 0))]
                 + [stacked(kp[k]) for k in STACK_KEYS],
        out_specs=pl.BlockSpec((rows, D), lambda r, l: (r, 0)),
        scratch_shapes=[pltpu.VMEM((rows, D), jnp.float32),    # resident activation
                        pltpu.VMEM((rows, D), jnp.bfloat16)],  # attention slab
        input_output_aliases={0: 0},   # y overwrites xf: no extra (N,D) HBM buffer
        compiler_params=pltpu.CompilerParams(
            dimension_semantics=("parallel", "arbitrary"),
            vmem_limit_bytes=VMEM_LIMIT),
    )(xf, *[kp[k] for k in STACK_KEYS])


# ---------------------------------------------------------------------------
# Kernel C: MLP head + cosine similarities + temperature (lane-dense output)
# ---------------------------------------------------------------------------
def head_kernel(x_ref, w1_ref, b1_ref, w2_ref, b2_ref, candT_ref,
                inv_scale_ref, o_ref):
    x = x_ref[...].astype(jnp.bfloat16)
    h = jnp.maximum(
        jnp.dot(x, w1_ref[...], preferred_element_type=jnp.float32) + b1_ref[...],
        0.0)
    emb = (jnp.dot(h.astype(jnp.bfloat16), w2_ref[...],
                   preferred_element_type=jnp.float32) + b2_ref[...])
    inv_norm = jax.lax.rsqrt(jnp.sum(emb * emb, axis=-1, keepdims=True))
    sims = jnp.dot(emb.astype(jnp.bfloat16), candT_ref[...],
                   preferred_element_type=jnp.float32)
    # inv_scale = 1 / (cand_norm * clamp(temperature)) precomputed wrapper-side.
    o_ref[...] = sims * inv_norm * inv_scale_ref[...]


def head_forward(x, w1, b1, w2, b2, candT_pad, inv_scale):
    B, D = x.shape
    Npad = candT_pad.shape[1]
    tb = _pick_row_tile(B)

    def full(a):
        return pl.BlockSpec(a.shape, lambda i: (0, 0))

    return pl.pallas_call(
        head_kernel,
        out_shape=jax.ShapeDtypeStruct((B, Npad), jnp.float32),
        grid=(B // tb,),
        in_specs=[pl.BlockSpec((tb, D), lambda i: (i, 0)),
                  full(w1), full(b1), full(w2), full(b2),
                  full(candT_pad), full(inv_scale)],
        out_specs=pl.BlockSpec((tb, Npad), lambda i: (i, 0)),
        compiler_params=pltpu.CompilerParams(
            dimension_semantics=("parallel",),
            vmem_limit_bytes=VMEM_LIMIT),
    )(x, w1, b1, w2, b2, candT_pad, inv_scale)


# ---------------------------------------------------------------------------
# Parameter init / prep
# ---------------------------------------------------------------------------
def create_sinusoidal_embeddings(d_model, max_len):
    position = jnp.arange(max_len, dtype=jnp.float32)[:, None]
    div_term = jnp.exp(jnp.arange(0, d_model, 2, dtype=jnp.float32)
                       * (-math.log(10000.0) / d_model))
    pe = jnp.zeros((max_len, d_model), jnp.float32)
    pe = pe.at[:, 0::2].set(jnp.sin(position * div_term))
    pe = pe.at[:, 1::2].set(jnp.cos(position * div_term))
    return pe


def prepare_kernel_params(ref, num_heads):
    """Derive the optimized kernel-side parameter layout from the f32 params."""
    bf16 = jnp.bfloat16
    kern = {}

    mean = ref["mean"][0]          # (P,)
    inv_std = ref["inv_std"][0]    # (P,)
    # Fold clip_transform normalization into the encoder projection.  The bias
    # fold uses the bf16-rounded weight so it sees the same rounding as the
    # data path (removes a small systematic bias).
    enc_w_bf = (ref["enc_w"] * inv_std[:, None]).astype(bf16)
    kern["enc_w"] = enc_w_bf
    kern["enc_b"] = ref["enc_b"] - mean[None, :] @ enc_w_bf.astype(jnp.float32)
    kern["pe"] = ref["pe"]

    def stack(k):
        return jnp.stack([lp[k] for lp in ref["layers"]], axis=0)

    D = ref["enc_w"].shape[1]
    hd = D // num_heads
    qscale = 1.0 / math.sqrt(hd)
    # Fold the 1/sqrt(hd) attention scale into the Q projection (free in-kernel).
    kern["wqkv"] = jnp.concatenate([stack("wq") * qscale, stack("wk"),
                                    stack("wv")], axis=-1).astype(bf16)
    kern["bqkv"] = jnp.concatenate([stack("bq") * qscale, stack("bk"),
                                    stack("bv")], axis=-1)        # (NL, 1, 3D)
    kern["wo"] = stack("wo").astype(bf16)
    kern["bo"] = stack("bo")
    kern["g1"] = stack("g1")
    kern["be1"] = stack("be1")
    kern["w1"] = stack("w1").astype(bf16)
    kern["b1"] = stack("b1")
    kern["w2"] = stack("w2").astype(bf16)
    kern["b2"] = stack("b2")
    kern["g2"] = stack("g2")
    kern["be2"] = stack("be2")

    kern["mlp_w1"] = ref["mlp_w1"].astype(bf16)
    kern["mlp_b1"] = ref["mlp_b1"]
    kern["mlp_w2"] = ref["mlp_w2"].astype(bf16)
    kern["mlp_b2"] = ref["mlp_b2"]

    n_cand, out_size = ref["cand"].shape
    n_pad = max(128, ((n_cand + 127) // 128) * 128)   # lane-dense head output
    candT_pad = jnp.zeros((out_size, n_pad), jnp.float32)
    candT_pad = candT_pad.at[:, :n_cand].set(ref["cand"].T)
    kern["cand_T_pad"] = candT_pad.astype(bf16)
    inv_norm_pad = jnp.zeros((1, n_pad), jnp.float32)
    inv_norm_pad = inv_norm_pad.at[:, :n_cand].set(1.0 / ref["cand_norm"])
    kern["inv_cand_norm_pad"] = inv_norm_pad
    kern["temperature"] = ref["temperature"]
    return kern


def init_params(key, *, in_dim, D, F, num_layers, num_heads, out_size, n_cand,
                history_len, num_cameras, H, W):
    n_keys = 4 + 6 * num_layers
    keys = list(jax.random.split(key, n_keys))

    def nrm(shape):
        return 0.02 * jax.random.normal(keys.pop(), shape, jnp.float32)

    ref = {}
    ref["enc_w"] = nrm((in_dim, D))
    ref["enc_b"] = jnp.zeros((1, D), jnp.float32)
    ref["mean"] = jnp.repeat(jnp.array(CLIP_MEAN, jnp.float32), H * W)[None, :]
    ref["inv_std"] = 1.0 / jnp.repeat(jnp.array(CLIP_STD, jnp.float32), H * W)[None, :]
    ref["pe"] = create_sinusoidal_embeddings(D, (history_len + 1) * num_cameras)

    layers = []
    for _ in range(num_layers):
        lp = dict(
            wq=nrm((D, D)), bq=jnp.zeros((1, D), jnp.float32),
            wk=nrm((D, D)), bk=jnp.zeros((1, D), jnp.float32),
            wv=nrm((D, D)), bv=jnp.zeros((1, D), jnp.float32),
            wo=nrm((D, D)), bo=jnp.zeros((1, D), jnp.float32),
            g1=jnp.ones((1, D), jnp.float32), be1=jnp.zeros((1, D), jnp.float32),
            w1=nrm((D, F)), b1=jnp.zeros((1, F), jnp.float32),
            w2=nrm((F, D)), b2=jnp.zeros((1, D), jnp.float32),
            g2=jnp.ones((1, D), jnp.float32), be2=jnp.zeros((1, D), jnp.float32),
        )
        layers.append(lp)
    ref["layers"] = layers

    ref["mlp_w1"] = nrm((D, F))
    ref["mlp_b1"] = jnp.zeros((1, F), jnp.float32)
    ref["mlp_w2"] = nrm((F, out_size))
    ref["mlp_b2"] = jnp.zeros((1, out_size), jnp.float32)

    cand = jax.random.normal(keys.pop(), (n_cand, out_size), jnp.float32)
    ref["cand"] = cand
    ref["cand_norm"] = jnp.linalg.norm(cand, axis=-1)[None, :]
    ref["temperature"] = jnp.ones((1, 1), jnp.float32)

    return {"ref": ref, "kern": prepare_kernel_params(ref, num_heads)}


# ---------------------------------------------------------------------------
# Forward pass (Pallas kernels + thin JAX glue)
# ---------------------------------------------------------------------------
def instructor_forward(params, images, history_len, num_heads):
    kp = params["kern"]
    n_cand = params["ref"]["cand"].shape[0]

    B, T, NC, C, H, W = images.shape
    if T < history_len + 1:
        pad = jnp.zeros((B, history_len + 1 - T, NC, C, H, W), images.dtype)
        images = jnp.concatenate([pad, images], axis=1)
        T = history_len + 1
    M = B * T * NC
    # bf16 activation streaming: the encoder matmul is HBM-BW bound on x.
    x_flat = images.reshape(M, C * H * W).astype(jnp.bfloat16)

    feats = encode_images(x_flat, kp["enc_w"], kp["enc_b"])       # (M, D) f32
    D = feats.shape[-1]
    S = T * NC
    feats = feats.reshape(B, S, D) + kp["pe"][:S][None]

    # Mirrors the original `.transpose(0,1)` on a batch_first encoder:
    # attention mixes over the batch axis (L = B).
    x = jnp.transpose(feats, (1, 0, 2))                           # (S, B, D)
    xf = x.reshape(S * B, D)                                      # s-blocks contiguous

    y = transformer_stack(xf, kp, num_heads, B)                   # (S*B, D)
    out = jnp.transpose(y.reshape(S, B, D), (1, 0, 2))            # (B, S, D)
    final = out[:, -1, :]

    temp = kp["temperature"]
    inv_scale = kp["inv_cand_norm_pad"] * (1.0 / jnp.maximum(temp, 1e-8))
    logits_pad = head_forward(final, kp["mlp_w1"], kp["mlp_b1"],
                              kp["mlp_w2"], kp["mlp_b2"],
                              kp["cand_T_pad"], inv_scale)
    logits = logits_pad[:, :n_cand]
    return logits, temp.reshape(1)


# ---------------------------------------------------------------------------
# Pure-JAX f32 reference (original-module math) for validation
# ---------------------------------------------------------------------------
def ref_forward(params, images, history_len, num_heads):
    rp = params["ref"]
    B, T, NC, C, H, W = images.shape
    if T < history_len + 1:
        pad = jnp.zeros((B, history_len + 1 - T, NC, C, H, W), images.dtype)
        images = jnp.concatenate([pad, images], axis=1)
        T = history_len + 1
    M = B * T * NC
    x_flat = images.reshape(M, C * H * W).astype(jnp.float32)
    feats = ((x_flat - rp["mean"]) * rp["inv_std"]) @ rp["enc_w"] + rp["enc_b"]
    D = feats.shape[-1]
    S = T * NC
    feats = feats.reshape(B, S, D) + rp["pe"][:S][None]

    def ln(z, g, b):
        mu = z.mean(-1, keepdims=True)
        var = ((z - mu) ** 2).mean(-1, keepdims=True)
        return (z - mu) * jax.lax.rsqrt(var + 1e-5) * g + b

    x = jnp.transpose(feats, (1, 0, 2))
    Sx, L, _ = x.shape
    hd = D // num_heads
    for lp in rp["layers"]:
        q = (x @ lp["wq"] + lp["bq"]).reshape(Sx, L, num_heads, hd)
        k = (x @ lp["wk"] + lp["bk"]).reshape(Sx, L, num_heads, hd)
        v = (x @ lp["wv"] + lp["bv"]).reshape(Sx, L, num_heads, hd)
        s = jnp.einsum("slhd,skhd->shlk", q, k) / math.sqrt(hd)
        p = jax.nn.softmax(s, axis=-1)
        o = jnp.einsum("shlk,skhd->slhd", p, v).reshape(Sx, L, D)
        attn = o @ lp["wo"] + lp["bo"]
        x1 = ln(x + attn, lp["g1"], lp["be1"])
        ff = jnp.maximum(x1 @ lp["w1"] + lp["b1"], 0.0) @ lp["w2"] + lp["b2"]
        x = ln(x1 + ff, lp["g2"], lp["be2"])
    out = jnp.transpose(x, (1, 0, 2))
    final = out[:, -1, :]

    h = jnp.maximum(final @ rp["mlp_w1"] + rp["mlp_b1"], 0.0)
    emb = h @ rp["mlp_w2"] + rp["mlp_b2"]
    emb_norm = jnp.linalg.norm(emb, axis=-1, keepdims=True)
    sims = (emb @ rp["cand"].T) / (emb_norm * rp["cand_norm"])
    logits = sims / jnp.maximum(rp["temperature"], 1e-8)
    return logits, rp["temperature"].reshape(1)


if __name__ == "__main__":
    # Small, module-consistent shapes.
    B, T, NC, C, H, W = 2, 2, 2, 3, 16, 16
    history_len = 1          # -> T must be history_len + 1 = 2
    D = 256                  # stand-in for clip_model.visual.output_dim
    F = 256                  # hidden_size / dim_feedforward
    num_heads = 2            # hd = 128 (lane-aligned head slices)
    num_layers = 2
    out_size = 256
    n_cand = 16

    key = jax.random.PRNGKey(0)
    kimg, kparams = jax.random.split(key)
    images = jax.random.uniform(kimg, (B, T, NC, C, H, W), jnp.float32)

    params = init_params(kparams, in_dim=C * H * W, D=D, F=F,
                         num_layers=num_layers, num_heads=num_heads,
                         out_size=out_size, n_cand=n_cand,
                         history_len=history_len, num_cameras=NC, H=H, W=W)

    fwd = jax.jit(functools.partial(instructor_forward,
                                    history_len=history_len,
                                    num_heads=num_heads))
    logits, temp = fwd(params, images)
    logits = jax.block_until_ready(logits)

    ref_logits, _ = ref_forward(params, images, history_len, num_heads)
    assert logits.shape == (B, n_cand)
    assert bool(jnp.all(jnp.isfinite(logits)))
    assert float(jnp.max(jnp.abs(logits - ref_logits))) < 5e-2, "mismatch vs reference"

    print("KERNEL_OK")
</pallas_src>

<mosaic_0001>
module attributes {stable_mosaic.version = 11 : i64} {
  func.func @encode_kernel(%arg0: i32, %arg1: i32, %arg2: memref<8x256xbf16, #tpu.memory_space<vmem>>, %arg3: memref<256x256xbf16, #tpu.memory_space<vmem>>, %arg4: memref<1x256xf32, #tpu.memory_space<vmem>>, %arg5: memref<8x256xf32, #tpu.memory_space<vmem>>) attributes {dimension_semantics = [#tpu.dimension_semantics<parallel>, #tpu.dimension_semantics<arbitrary>], iteration_bounds = array<i64: 1, 3>, scalar_prefetch = 0 : i64, scratch_operands = 0 : i64, tpu.core_type = #tpu.core_type<tc>, window_params = [{transform_indices = @transform_0, window_bounds = array<i64: 8, 256>}, {transform_indices = @transform_1, window_bounds = array<i64: 256, 256>}, {pipeline_mode = #tpu.pipeline_mode<synchronous>, transform_indices = @transform_2, window_bounds = array<i64: 1, 256>}, {transform_indices = @transform_3, window_bounds = array<i64: 8, 256>}]} {
    %c0 = arith.constant 0 : index
    %c0_0 = arith.constant 0 : index
    %0 = vector.load %arg2[%c0, %c0_0] : memref<8x256xbf16, #tpu.memory_space<vmem>>, vector<8x256xbf16>
    %c0_1 = arith.constant 0 : index
    %c0_2 = arith.constant 0 : index
    %1 = vector.load %arg3[%c0_1, %c0_2] : memref<256x256xbf16, #tpu.memory_space<vmem>>, vector<256x256xbf16>
    %cst = arith.constant dense<0.000000e+00> : vector<8x256xf32>
    %2 = tpu.matmul %0, %1, %cst {dimension_numbers = #tpu.dot_dimension_numbers<[1], [0], [0], [1], [0, 0, 1, 1], [], []>} : vector<8x256xbf16>, vector<256x256xbf16>, vector<8x256xf32> -> vector<8x256xf32>
    %c0_i32 = arith.constant 0 : i32
    %3 = arith.cmpi eq, %arg1, %c0_i32 : i32
    %4 = arith.extui %3 : i1 to i32
    %c0_i32_3 = arith.constant 0 : i32
    %5 = arith.cmpi ne, %4, %c0_i32_3 : i32
    scf.if %5 {
      %c0_6 = arith.constant 0 : index
      %c0_7 = arith.constant 0 : index
      %9 = vector.load %arg4[%c0_6, %c0_7] : memref<1x256xf32, #tpu.memory_space<vmem>>, vector<1x256xf32>
      %10 = vector.broadcast %9 : vector<1x256xf32> to vector<8x256xf32>
      %11 = arith.addf %2, %10 : vector<8x256xf32>
      %c0_8 = arith.constant 0 : index
      %c0_9 = arith.constant 0 : index
      %12 = vector.load %arg5[%c0_8, %c0_9] : memref<8x256xf32, #tpu.memory_space<vmem>>, vector<8x256xf32>
      tpu.vector_store %arg5[%c0_8, %c0_9], %11 {strides = array<i32>} : memref<8x256xf32, #tpu.memory_space<vmem>>, vector<8x256xf32>,
    } else {
    }
    %c0_i32_4 = arith.constant 0 : i32
    %6 = arith.cmpi sgt, %arg1, %c0_i32_4 : i32
    %7 = arith.extui %6 : i1 to i32
    %c0_i32_5 = arith.constant 0 : i32
    %8 = arith.cmpi ne, %7, %c0_i32_5 : i32
    scf.if %8 {
      %c0_6 = arith.constant 0 : index
      %c0_7 = arith.constant 0 : index
      %9 = vector.load %arg5[%c0_6, %c0_7] : memref<8x256xf32, #tpu.memory_space<vmem>>, vector<8x256xf32>
      %10 = arith.addf %9, %2 : vector<8x256xf32>
      %c0_8 = arith.constant 0 : index
      %c0_9 = arith.constant 0 : index
      %11 = vector.load %arg5[%c0_8, %c0_9] : memref<8x256xf32, #tpu.memory_space<vmem>>, vector<8x256xf32>
      tpu.vector_store %arg5[%c0_8, %c0_9], %10 {strides = array<i32>} : memref<8x256xf32, #tpu.memory_space<vmem>>, vector<8x256xf32>,
    } else {
    }
    return
  }
  func.func @transform_0(%arg0: i32, %arg1: i32) -> (i32, i32) {
    %c0_i32 = arith.constant 0 : i32
    return %arg0, %arg1 : i32, i32
  }
  func.func @transform_1(%arg0: i32, %arg1: i32) -> (i32, i32) {
    %c0_i32 = arith.constant 0 : i32
    %c0_i32_0 = arith.constant 0 : i32
    return %arg1, %c0_i32 : i32, i32
  }
  func.func @transform_2(%arg0: i32, %arg1: i32) -> (i32, i32) {
    %c0_i32 = arith.constant 0 : i32
    %c0_i32_0 = arith.constant 0 : i32
    %c0_i32_1 = arith.constant 0 : i32
    return %c0_i32, %c0_i32_0 : i32, i32
  }
  func.func @transform_3(%arg0: i32, %arg1: i32) -> (i32, i32) {
    %c0_i32 = arith.constant 0 : i32
    %c0_i32_0 = arith.constant 0 : i32
    return %arg0, %c0_i32 : i32, i32
  }
}

module attributes {stable_mosaic.version = 11 : i64} {
  func.func @transformer_stack_kernel(%arg0: i32, %arg1: i32, %arg2: memref<8x256xf32, #tpu.memory_space<vmem>>, %arg3: memref<1x256x768xbf16, #tpu.memory_space<vmem>>, %arg4: memref<1x1x768xf32, #tpu.memory_space<vmem>>, %arg5: memref<1x256x256xbf16, #tpu.memory_space<vmem>>, %arg6: memref<1x1x256xf32, #tpu.memory_space<vmem>>, %arg7: memref<1x1x256xf32, #tpu.memory_space<vmem>>, %arg8: memref<1x1x256xf32, #tpu.memory_space<vmem>>, %arg9: memref<1x256x256xbf16, #tpu.memory_space<vmem>>, %arg10: memref<1x1x256xf32, #tpu.memory_space<vmem>>, %arg11: memref<1x256x256xbf16, #tpu.memory_space<vmem>>, %arg12: memref<1x1x256xf32, #tpu.memory_space<vmem>>, %arg13: memref<1x1x256xf32, #tpu.memory_space<vmem>>, %arg14: memref<1x1x256xf32, #tpu.memory_space<vmem>>, %arg15: memref<8x256xf32, #tpu.memory_space<vmem>>, %arg16: memref<8x256xf32, #tpu.memory_space<vmem>>, %arg17: memref<8x256xbf16, #tpu.memory_space<vmem>>) attributes {dimension_semantics = [#tpu.dimension_semantics<parallel>, #tpu.dimension_semantics<arbitrary>], iteration_bounds = array<i64: 1, 2>, scalar_prefetch = 0 : i64, scratch_operands = 2 : i64, tpu.core_type = #tpu.core_type<tc>, window_params = [{transform_indices = @transform_0, window_bounds = array<i64: 8, 256>}, {transform_indices = @transform_1, window_bounds = array<i64: 1, 256, 768>}, {transform_indices = @transform_2, window_bounds = array<i64: 1, 1, 768>}, {transform_indices = @transform_3, window_bounds = array<i64: 1, 256, 256>}, {transform_indices = @transform_4, window_bounds = array<i64: 1, 1, 256>}, {transform_indices = @transform_5, window_bounds = array<i64: 1, 1, 256>}, {transform_indices = @transform_6, window_bounds = array<i64: 1, 1, 256>}, {transform_indices = @transform_7, window_bounds = array<i64: 1, 256, 256>}, {transform_indices = @transform_8, window_bounds = array<i64: 1, 1, 256>}, {transform_indices = @transform_9, window_bounds = array<i64: 1, 256, 256>}, {transform_indices = @transform_10, window_bounds = array<i64: 1, 1, 256>}, {transform_indices = @transform_11, window_bounds = array<i64: 1, 1, 256>}, {transform_indices = @transform_12, window_bounds = array<i64: 1, 1, 256>}, {transform_indices = @transform_13, window_bounds = array<i64: 8, 256>}]} {
    %c0_i32 = arith.constant 0 : i32
    %0 = arith.cmpi eq, %arg1, %c0_i32 : i32
    %1 = arith.extui %0 : i1 to i32
    %c0_i32_0 = arith.constant 0 : i32
    %2 = arith.cmpi ne, %1, %c0_i32_0 : i32
    scf.if %2 {
      %c0_68 = arith.constant 0 : index
      %c0_69 = arith.constant 0 : index
      %141 = vector.load %arg2[%c0_68, %c0_69] : memref<8x256xf32, #tpu.memory_space<vmem>>, vector<8x256xf32>
      %c0_70 = arith.constant 0 : index
      %c0_71 = arith.constant 0 : index
      %142 = vector.load %arg16[%c0_70, %c0_71] : memref<8x256xf32, #tpu.memory_space<vmem>>, vector<8x256xf32>
      tpu.vector_store %arg16[%c0_70, %c0_71], %141 {strides = array<i32>} : memref<8x256xf32, #tpu.memory_space<vmem>>, vector<8x256xf32>,
    } else {
    }
    %c0 = arith.constant 0 : index
    %c0_1 = arith.constant 0 : index
    %3 = vector.load %arg16[%c0, %c0_1] : memref<8x256xf32, #tpu.memory_space<vmem>>, vector<8x256xf32>
    %4 = arith.truncf %3 : vector<8x256xf32> to vector<8x256xbf16>
    %c0_2 = arith.constant 0 : index
    %c0_3 = arith.constant 0 : index
    %c0_4 = arith.constant 0 : index
    %5 = vector.load %arg3[%c0_2, %c0_3, %c0_4] : memref<1x256x768xbf16, #tpu.memory_space<vmem>>, vector<1x256x768xbf16>
    %6 = vector.shape_cast %5 : vector<1x256x768xbf16> to vector<256x768xbf16>
    %cst = arith.constant dense<0.000000e+00> : vector<8x768xf32>
    %7 = tpu.matmul %4, %6, %cst {dimension_numbers = #tpu.dot_dimension_numbers<[1], [0], [0], [1], [0, 0, 1, 1], [], []>} : vector<8x256xbf16>, vector<256x768xbf16>, vector<8x768xf32> -> vector<8x768xf32>
    %c0_5 = arith.constant 0 : index
    %c0_6 = arith.constant 0 : index
    %c0_7 = arith.constant 0 : index
    %8 = vector.load %arg4[%c0_5, %c0_6, %c0_7] : memref<1x1x768xf32, #tpu.memory_space<vmem>>, vector<1x1x768xf32>
    %9 = vector.shape_cast %8 : vector<1x1x768xf32> to vector<1x768xf32>
    %10 = vector.broadcast %9 : vector<1x768xf32> to vector<8x768xf32>
    %11 = arith.addf %7, %10 : vector<8x768xf32>
    %12 = arith.truncf %11 : vector<8x768xf32> to vector<8x768xbf16>
    %13 = vector.extract_strided_slice %12 {offsets = [0, 0], sizes = [8, 128], strides = [1, 1]} : vector<8x768xbf16> to vector<8x128xbf16>
    %14 = vector.shape_cast %13 : vector<8x128xbf16> to vector<4x2x128xbf16>
    %15 = vector.extract_strided_slice %12 {offsets = [0, 256], sizes = [8, 128], strides = [1, 1]} : vector<8x768xbf16> to vector<8x128xbf16>
    %16 = vector.shape_cast %15 : vector<8x128xbf16> to vector<4x2x128xbf16>
    %17 = vector.extract_strided_slice %12 {offsets = [0, 512], sizes = [8, 128], strides = [1, 1]} : vector<8x768xbf16> to vector<8x128xbf16>
    %18 = vector.shape_cast %17 : vector<8x128xbf16> to vector<4x2x128xbf16>
    "tpu.trace_start"() <{level = 10 : i32, message = "sbd,scd->sbc"}> : () -> ()
    %cst_8 = arith.constant dense<0.000000e+00> : vector<4x2x2xf32>
    %19 = tpu.matmul %14, %16, %cst_8 {dimension_numbers = #tpu.dot_dimension_numbers<[2], [2], [1], [1], [0, 0, 0, 1, 1, 1], [0], [0]>} : vector<4x2x128xbf16>, vector<4x2x128xbf16>, vector<4x2x2xf32> -> vector<4x2x2xf32>
    "tpu.trace_stop"() : () -> ()
    %cst_9 = arith.constant dense<0xFF800000> : vector<4x2xf32>
    %20 = vector.multi_reduction <maximumf>, %19, %cst_9 [2] : vector<4x2x2xf32> to vector<4x2xf32>
    %21 = vector.shape_cast %20 : vector<4x2xf32> to vector<4x2x1xf32>
    %22 = vector.broadcast %21 : vector<4x2x1xf32> to vector<4x2x2xf32>
    %23 = arith.subf %19, %22 : vector<4x2x2xf32>
    %24 = math.exp %23 : vector<4x2x2xf32>
    %cst_10 = arith.constant dense<0.000000e+00> : vector<4x2xf32>
    %25 = vector.multi_reduction <add>, %24, %cst_10 [2] : vector<4x2x2xf32> to vector<4x2xf32>
    %26 = vector.shape_cast %25 : vector<4x2xf32> to vector<4x2x1xf32>
    %27 = tpu.reciprocal %26 {approx = true} : vector<4x2x1xf32> -> vector<4x2x1xf32>
    %28 = vector.broadcast %27 : vector<4x2x1xf32> to vector<4x2x2xf32>
    %29 = arith.mulf %24, %28 : vector<4x2x2xf32>
    %30 = arith.truncf %29 : vector<4x2x2xf32> to vector<4x2x2xbf16>
    "tpu.trace_start"() <{level = 10 : i32, message = "sbc,scd->sbd"}> : () -> ()
    %cst_11 = arith.constant dense<0.000000e+00> : vector<4x2x128xf32>
    %31 = tpu.matmul %30, %18, %cst_11 {dimension_numbers = #tpu.dot_dimension_numbers<[2], [1], [1], [2], [0, 0, 0, 1, 1, 2], [0], [0]>} : vector<4x2x2xbf16>, vector<4x2x128xbf16>, vector<4x2x128xf32> -> vector<4x2x128xf32>
    "tpu.trace_stop"() : () -> ()
    %32 = vector.shape_cast %31 : vector<4x2x128xf32> to vector<8x128xf32>
    %33 = arith.truncf %32 : vector<8x128xf32> to vector<8x128xbf16>
    %c0_12 = arith.constant 0 : index
    %c0_13 = arith.constant 0 : index
    %34 = vector.load %arg17[%c0_12, %c0_13] : memref<8x256xbf16, #tpu.memory_space<vmem>>, vector<8x128xbf16>
    tpu.vector_store %arg17[%c0_12, %c0_13], %33 {strides = array<i32>} : memref<8x256xbf16, #tpu.memory_space<vmem>>, vector<8x128xbf16>,
    %35 = vector.extract_strided_slice %12 {offsets = [0, 128], sizes = [8, 128], strides = [1, 1]} : vector<8x768xbf16> to vector<8x128xbf16>
    %36 = vector.shape_cast %35 : vector<8x128xbf16> to vector<4x2x128xbf16>
    %37 = vector.extract_strided_slice %12 {offsets = [0, 384], sizes = [8, 128], strides = [1, 1]} : vector<8x768xbf16> to vector<8x128xbf16>
    %38 = vector.shape_cast %37 : vector<8x128xbf16> to vector<4x2x128xbf16>
    %39 = vector.extract_strided_slice %12 {offsets = [0, 640], sizes = [8, 128], strides = [1, 1]} : vector<8x768xbf16> to vector<8x128xbf16>
    %40 = vector.shape_cast %39 : vector<8x128xbf16> to vector<4x2x128xbf16>
    "tpu.trace_start"() <{level = 10 : i32, message = "sbd,scd->sbc"}> : () -> ()
    %cst_14 = arith.constant dense<0.000000e+00> : vector<4x2x2xf32>
    %41 = tpu.matmul %36, %38, %cst_14 {dimension_numbers = #tpu.dot_dimension_numbers<[2], [2], [1], [1], [0, 0, 0, 1, 1, 1], [0], [0]>} : vector<4x2x128xbf16>, vector<4x2x128xbf16>, vector<4x2x2xf32> -> vector<4x2x2xf32>
    "tpu.trace_stop"() : () -> ()
    %cst_15 = arith.constant dense<0xFF800000> : vector<4x2xf32>
    %42 = vector.multi_reduction <maximumf>, %41, %cst_15 [2] : vector<4x2x2xf32> to vector<4x2xf32>
    %43 = vector.shape_cast %42 : vector<4x2xf32> to vector<4x2x1xf32>
    %44 = vector.broadcast %43 : vector<4x2x1xf32> to vector<4x2x2xf32>
    %45 = arith.subf %41, %44 : vector<4x2x2xf32>
    %46 = math.exp %45 : vector<4x2x2xf32>
    %cst_16 = arith.constant dense<0.000000e+00> : vector<4x2xf32>
    %47 = vector.multi_reduction <add>, %46, %cst_16 [2] : vector<4x2x2xf32> to vector<4x2xf32>
    %48 = vector.shape_cast %47 : vector<4x2xf32> to vector<4x2x1xf32>
    %49 = tpu.reciprocal %48 {approx = true} : vector<4x2x1xf32> -> vector<4x2x1xf32>
    %50 = vector.broadcast %49 : vector<4x2x1xf32> to vector<4x2x2xf32>
    %51 = arith.mulf %46, %50 : vector<4x2x2xf32>
    %52 = arith.truncf %51 : vector<4x2x2xf32> to vector<4x2x2xbf16>
    "tpu.trace_start"() <{level = 10 : i32, message = "sbc,scd->sbd"}> : () -> ()
    %cst_17 = arith.constant dense<0.000000e+00> : vector<4x2x128xf32>
    %53 = tpu.matmul %52, %40, %cst_17 {dimension_numbers = #tpu.dot_dimension_numbers<[2], [1], [1], [2], [0, 0, 0, 1, 1, 2], [0], [0]>} : vector<4x2x2xbf16>, vector<4x2x128xbf16>, vector<4x2x128xf32> -> vector<4x2x128xf32>
    "tpu.trace_stop"() : () -> ()
    %54 = vector.shape_cast %53 : vector<4x2x128xf32> to vector<8x128xf32>
    %55 = arith.truncf %54 : vector<8x128xf32> to vector<8x128xbf16>
    %c0_18 = arith.constant 0 : index
    %c128 = arith.constant 128 : index
    %56 = vector.load %arg17[%c0_18, %c128] : memref<8x256xbf16, #tpu.memory_space<vmem>>, vector<8x128xbf16>
    tpu.vector_store %arg17[%c0_18, %c128], %55 {strides = array<i32>} : memref<8x256xbf16, #tpu.memory_space<vmem>>, vector<8x128xbf16>,
    %c0_19 = arith.constant 0 : index
    %c0_20 = arith.constant 0 : index
    %57 = vector.load %arg17[%c0_19, %c0_20] : memref<8x256xbf16, #tpu.memory_space<vmem>>, vector<8x256xbf16>
    %c0_21 = arith.constant 0 : index
    %c0_22 = arith.constant 0 : index
    %c0_23 = arith.constant 0 : index
    %58 = vector.load %arg5[%c0_21, %c0_22, %c0_23] : memref<1x256x256xbf16, #tpu.memory_space<vmem>>, vector<1x256x256xbf16>
    %59 = vector.shape_cast %58 : vector<1x256x256xbf16> to vector<256x256xbf16>
    %cst_24 = arith.constant dense<0.000000e+00> : vector<8x256xf32>
    %60 = tpu.matmul %57, %59, %cst_24 {dimension_numbers = #tpu.dot_dimension_numbers<[1], [0], [0], [1], [0, 0, 1, 1], [], []>} : vector<8x256xbf16>, vector<256x256xbf16>, vector<8x256xf32> -> vector<8x256xf32>
    %c0_25 = arith.constant 0 : index
    %c0_26 = arith.constant 0 : index
    %c0_27 = arith.constant 0 : index
    %61 = vector.load %arg6[%c0_25, %c0_26, %c0_27] : memref<1x1x256xf32, #tpu.memory_space<vmem>>, vector<1x1x256xf32>
    %62 = vector.shape_cast %61 : vector<1x1x256xf32> to vector<1x256xf32>
    %63 = vector.broadcast %62 : vector<1x256xf32> to vector<8x256xf32>
    %64 = arith.addf %60, %63 : vector<8x256xf32>
    %65 = arith.addf %3, %64 : vector<8x256xf32>
    %c0_28 = arith.constant 0 : index
    %c0_29 = arith.constant 0 : index
    %c0_30 = arith.constant 0 : index
    %66 = vector.load %arg7[%c0_28, %c0_29, %c0_30] : memref<1x1x256xf32, #tpu.memory_space<vmem>>, vector<1x1x256xf32>
    %67 = vector.shape_cast %66 : vector<1x1x256xf32> to vector<1x256xf32>
    %c0_31 = arith.constant 0 : index
    %c0_32 = arith.constant 0 : index
    %c0_33 = arith.constant 0 : index
    %68 = vector.load %arg8[%c0_31, %c0_32, %c0_33] : memref<1x1x256xf32, #tpu.memory_space<vmem>>, vector<1x1x256xf32>
    %69 = vector.shape_cast %68 : vector<1x1x256xf32> to vector<1x256xf32>
    %cst_34 = arith.constant dense<0.000000e+00> : vector<8xf32>
    %70 = vector.multi_reduction <add>, %65, %cst_34 [1] : vector<8x256xf32> to vector<8xf32>
    %71 = vector.shape_cast %70 : vector<8xf32> to vector<8x1xf32>
    %cst_35 = arith.constant 2.560000e+02 : f32
    %72 = vector.broadcast %cst_35 : f32 to vector<8x1xf32>
    %73 = arith.divf %71, %72 : vector<8x1xf32>
    %74 = vector.broadcast %73 : vector<8x1xf32> to vector<8x256xf32>
    %75 = arith.subf %65, %74 : vector<8x256xf32>
    %76 = arith.mulf %75, %75 : vector<8x256xf32>
    %cst_36 = arith.constant dense<0.000000e+00> : vector<8xf32>
    %77 = vector.multi_reduction <add>, %76, %cst_36 [1] : vector<8x256xf32> to vector<8xf32>
    %78 = vector.shape_cast %77 : vector<8xf32> to vector<8x1xf32>
    %cst_37 = arith.constant 2.560000e+02 : f32
    %79 = vector.broadcast %cst_37 : f32 to vector<8x1xf32>
    %80 = arith.divf %78, %79 : vector<8x1xf32>
    %81 = vector.broadcast %73 : vector<8x1xf32> to vector<8x256xf32>
    %82 = arith.subf %65, %81 : vector<8x256xf32>
    %cst_38 = arith.constant 9.99999974E-6 : f32
    %83 = vector.broadcast %cst_38 : f32 to vector<8x1xf32>
    %84 = arith.addf %80, %83 : vector<8x1xf32>
    %85 = math.rsqrt %84 : vector<8x1xf32>
    %86 = vector.broadcast %85 : vector<8x1xf32> to vector<8x256xf32>
    %87 = arith.mulf %82, %86 : vector<8x256xf32>
    %88 = vector.broadcast %67 : vector<1x256xf32> to vector<8x256xf32>
    %89 = arith.mulf %87, %88 : vector<8x256xf32>
    %90 = vector.broadcast %69 : vector<1x256xf32> to vector<8x256xf32>
    %91 = arith.addf %89, %90 : vector<8x256xf32>
    %92 = arith.truncf %91 : vector<8x256xf32> to vector<8x256xbf16>
    %c0_39 = arith.constant 0 : index
    %c0_40 = arith.constant 0 : index
    %c0_41 = arith.constant 0 : index
    %93 = vector.load %arg9[%c0_39, %c0_40, %c0_41] : memref<1x256x256xbf16, #tpu.memory_space<vmem>>, vector<1x256x256xbf16>
    %94 = vector.shape_cast %93 : vector<1x256x256xbf16> to vector<256x256xbf16>
    %cst_42 = arith.constant dense<0.000000e+00> : vector<8x256xf32>
    %95 = tpu.matmul %92, %94, %cst_42 {dimension_numbers = #tpu.dot_dimension_numbers<[1], [0], [0], [1], [0, 0, 1, 1], [], []>} : vector<8x256xbf16>, vector<256x256xbf16>, vector<8x256xf32> -> vector<8x256xf32>
    %c0_43 = arith.constant 0 : index
    %c0_44 = arith.constant 0 : index
    %c0_45 = arith.constant 0 : index
    %96 = vector.load %arg10[%c0_43, %c0_44, %c0_45] : memref<1x1x256xf32, #tpu.memory_space<vmem>>, vector<1x1x256xf32>
    %97 = vector.shape_cast %96 : vector<1x1x256xf32> to vector<1x256xf32>
    %98 = vector.broadcast %97 : vector<1x256xf32> to vector<8x256xf32>
    %99 = arith.addf %95, %98 : vector<8x256xf32>
    %cst_46 = arith.constant 0.000000e+00 : f32
    %100 = vector.broadcast %cst_46 : f32 to vector<8x256xf32>
    %101 = arith.maximumf %99, %100 : vector<8x256xf32>
    %102 = arith.truncf %101 : vector<8x256xf32> to vector<8x256xbf16>
    %c0_47 = arith.constant 0 : index
    %c0_48 = arith.constant 0 : index
    %c0_49 = arith.constant 0 : index
    %103 = vector.load %arg11[%c0_47, %c0_48, %c0_49] : memref<1x256x256xbf16, #tpu.memory_space<vmem>>, vector<1x256x256xbf16>
    %104 = vector.shape_cast %103 : vector<1x256x256xbf16> to vector<256x256xbf16>
    %cst_50 = arith.constant dense<0.000000e+00> : vector<8x256xf32>
    %105 = tpu.matmul %102, %104, %cst_50 {dimension_numbers = #tpu.dot_dimension_numbers<[1], [0], [0], [1], [0, 0, 1, 1], [], []>} : vector<8x256xbf16>, vector<256x256xbf16>, vector<8x256xf32> -> vector<8x256xf32>
    %c0_51 = arith.constant 0 : index
    %c0_52 = arith.constant 0 : index
    %c0_53 = arith.constant 0 : index
    %106 = vector.load %arg12[%c0_51, %c0_52, %c0_53] : memref<1x1x256xf32, #tpu.memory_space<vmem>>, vector<1x1x256xf32>
    %107 = vector.shape_cast %106 : vector<1x1x256xf32> to vector<1x256xf32>
    %108 = vector.broadcast %107 : vector<1x256xf32> to vector<8x256xf32>
    %109 = arith.addf %105, %108 : vector<8x256xf32>
    %110 = arith.addf %91, %109 : vector<8x256xf32>
    %c0_54 = arith.constant 0 : index
    %c0_55 = arith.constant 0 : index
    %c0_56 = arith.constant 0 : index
    %111 = vector.load %arg13[%c0_54, %c0_55, %c0_56] : memref<1x1x256xf32, #tpu.memory_space<vmem>>, vector<1x1x256xf32>
    %112 = vector.shape_cast %111 : vector<1x1x256xf32> to vector<1x256xf32>
    %c0_57 = arith.constant 0 : index
    %c0_58 = arith.constant 0 : index
    %c0_59 = arith.constant 0 : index
    %113 = vector.load %arg14[%c0_57, %c0_58, %c0_59] : memref<1x1x256xf32, #tpu.memory_space<vmem>>, vector<1x1x256xf32>
    %114 = vector.shape_cast %113 : vector<1x1x256xf32> to vector<1x256xf32>
    %cst_60 = arith.constant dense<0.000000e+00> : vector<8xf32>
    %115 = vector.multi_reduction <add>, %110, %cst_60 [1] : vector<8x256xf32> to vector<8xf32>
    %116 = vector.shape_cast %115 : vector<8xf32> to vector<8x1xf32>
    %cst_61 = arith.constant 2.560000e+02 : f32
    %117 = vector.broadcast %cst_61 : f32 to vector<8x1xf32>
    %118 = arith.divf %116, %117 : vector<8x1xf32>
    %119 = vector.broadcast %118 : vector<8x1xf32> to vector<8x256xf32>
    %120 = arith.subf %110, %119 : vector<8x256xf32>
    %121 = arith.mulf %120, %120 : vector<8x256xf32>
    %cst_62 = arith.constant dense<0.000000e+00> : vector<8xf32>
    %122 = vector.multi_reduction <add>, %121, %cst_62 [1] : vector<8x256xf32> to vector<8xf32>
    %123 = vector.shape_cast %122 : vector<8xf32> to vector<8x1xf32>
    %cst_63 = arith.constant 2.560000e+02 : f32
    %124 = vector.broadcast %cst_63 : f32 to vector<8x1xf32>
    %125 = arith.divf %123, %124 : vector<8x1xf32>
    %126 = vector.broadcast %118 : vector<8x1xf32> to vector<8x256xf32>
    %127 = arith.subf %110, %126 : vector<8x256xf32>
    %cst_64 = arith.constant 9.99999974E-6 : f32
    %128 = vector.broadcast %cst_64 : f32 to vector<8x1xf32>
    %129 = arith.addf %125, %128 : vector<8x1xf32>
    %130 = math.rsqrt %129 : vector<8x1xf32>
    %131 = vector.broadcast %130 : vector<8x1xf32> to vector<8x256xf32>
    %132 = arith.mulf %127, %131 : vector<8x256xf32>
    %133 = vector.broadcast %112 : vector<1x256xf32> to vector<8x256xf32>
    %134 = arith.mulf %132, %133 : vector<8x256xf32>
    %135 = vector.broadcast %114 : vector<1x256xf32> to vector<8x256xf32>
    %136 = arith.addf %134, %135 : vector<8x256xf32>
    %c0_65 = arith.constant 0 : index
    %c0_66 = arith.constant 0 : index
    %137 = vector.load %arg16[%c0_65, %c0_66] : memref<8x256xf32, #tpu.memory_space<vmem>>, vector<8x256xf32>
    tpu.vector_store %arg16[%c0_65, %c0_66], %136 {strides = array<i32>} : memref<8x256xf32, #tpu.memory_space<vmem>>, vector<8x256xf32>,
    %c1_i32 = arith.constant 1 : i32
    %138 = arith.cmpi eq, %arg1, %c1_i32 : i32
    %139 = arith.extui %138 : i1 to i32
    %c0_i32_67 = arith.constant 0 : i32
    %140 = arith.cmpi ne, %139, %c0_i32_67 : i32
    scf.if %140 {
      %c0_68 = arith.constant 0 : index
      %c0_69 = arith.constant 0 : index
      %141 = vector.load %arg15[%c0_68, %c0_69] : memref<8x256xf32, #tpu.memory_space<vmem>>, vector<8x256xf32>
      tpu.vector_store %arg15[%c0_68, %c0_69], %136 {strides = array<i32>} : memref<8x256xf32, #tpu.memory_space<vmem>>, vector<8x256xf32>,
    } else {
    }
    return
  }
  func.func @transform_0(%arg0: i32, %arg1: i32) -> (i32, i32) {
    %c0_i32 = arith.constant 0 : i32
    %c0_i32_0 = arith.constant 0 : i32
    return %arg0, %c0_i32 : i32, i32
  }
  func.func @transform_1(%arg0: i32, %arg1: i32) -> (i32, i32, i32) {
    %c0_i32 = arith.constant 0 : i32
    %c0_i32_0 = arith.constant 0 : i32
    %c0_i32_1 = arith.constant 0 : i32
    return %arg1, %c0_i32, %c0_i32_0 : i32, i32, i32
  }
  func.func @transform_2(%arg0: i32, %arg1: i32) -> (i32, i32, i32) {
    %c0_i32 = arith.constant 0 : i32
    %c0_i32_0 = arith.constant 0 : i32
    %c0_i32_1 = arith.constant 0 : i32
    return %arg1, %c0_i32, %c0_i32_0 : i32, i32, i32
  }
  func.func @transform_3(%arg0: i32, %arg1: i32) -> (i32, i32, i32) {
    %c0_i32 = arith.constant 0 : i32
    %c0_i32_0 = arith.constant 0 : i32
    %c0_i32_1 = arith.constant 0 : i32
    return %arg1, %c0_i32, %c0_i32_0 : i32, i32, i32
  }
  func.func @transform_4(%arg0: i32, %arg1: i32) -> (i32, i32, i32) {
    %c0_i32 = arith.constant 0 : i32
    %c0_i32_0 = arith.constant 0 : i32
    %c0_i32_1 = arith.constant 0 : i32
    return %arg1, %c0_i32, %c0_i32_0 : i32, i32, i32
  }
  func.func @transform_5(%arg0: i32, %arg1: i32) -> (i32, i32, i32) {
    %c0_i32 = arith.constant 0 : i32
    %c0_i32_0 = arith.constant 0 : i32
    %c0_i32_1 = arith.constant 0 : i32
    return %arg1, %c0_i32, %c0_i32_0 : i32, i32, i32
  }
  func.func @transform_6(%arg0: i32, %arg1: i32) -> (i32, i32, i32) {
    %c0_i32 = arith.constant 0 : i32
    %c0_i32_0 = arith.constant 0 : i32
    %c0_i32_1 = arith.constant 0 : i32
    return %arg1, %c0_i32, %c0_i32_0 : i32, i32, i32
  }
  func.func @transform_7(%arg0: i32, %arg1: i32) -> (i32, i32, i32) {
    %c0_i32 = arith.constant 0 : i32
    %c0_i32_0 = arith.constant 0 : i32
    %c0_i32_1 = arith.constant 0 : i32
    return %arg1, %c0_i32, %c0_i32_0 : i32, i32, i32
  }
  func.func @transform_8(%arg0: i32, %arg1: i32) -> (i32, i32, i32) {
    %c0_i32 = arith.constant 0 : i32
    %c0_i32_0 = arith.constant 0 : i32
    %c0_i32_1 = arith.constant 0 : i32
    return %arg1, %c0_i32, %c0_i32_0 : i32, i32, i32
  }
  func.func @transform_9(%arg0: i32, %arg1: i32) -> (i32, i32, i32) {
    %c0_i32 = arith.constant 0 : i32
    %c0_i32_0 = arith.constant 0 : i32
    %c0_i32_1 = arith.constant 0 : i32
    return %arg1, %c0_i32, %c0_i32_0 : i32, i32, i32
  }
  func.func @transform_10(%arg0: i32, %arg1: i32) -> (i32, i32, i32) {
    %c0_i32 = arith.constant 0 : i32
    %c0_i32_0 = arith.constant 0 : i32
    %c0_i32_1 = arith.constant 0 : i32
    return %arg1, %c0_i32, %c0_i32_0 : i32, i32, i32
  }
  func.func @transform_11(%arg0: i32, %arg1: i32) -> (i32, i32, i32) {
    %c0_i32 = arith.constant 0 : i32
    %c0_i32_0 = arith.constant 0 : i32
    %c0_i32_1 = arith.constant 0 : i32
    return %arg1, %c0_i32, %c0_i32_0 : i32, i32, i32
  }
  func.func @transform_12(%arg0: i32, %arg1: i32) -> (i32, i32, i32) {
    %c0_i32 = arith.constant 0 : i32
    %c0_i32_0 = arith.constant 0 : i32
    %c0_i32_1 = arith.constant 0 : i32
    return %arg1, %c0_i32, %c0_i32_0 : i32, i32, i32
  }
  func.func @transform_13(%arg0: i32, %arg1: i32) -> (i32, i32) {
    %c0_i32 = arith.constant 0 : i32
    %c0_i32_0 = arith.constant 0 : i32
    return %arg0, %c0_i32 : i32, i32
  }
}

module attributes {stable_mosaic.version = 11 : i64} {
  func.func @head_kernel(%arg0: i32, %arg1: memref<2x256xf32, #tpu.memory_space<vmem>>, %arg2: memref<256x256xbf16, #tpu.memory_space<vmem>>, %arg3: memref<1x256xf32, #tpu.memory_space<vmem>>, %arg4: memref<256x256xbf16, #tpu.memory_space<vmem>>, %arg5: memref<1x256xf32, #tpu.memory_space<vmem>>, %arg6: memref<256x128xbf16, #tpu.memory_space<vmem>>, %arg7: memref<1x128xf32, #tpu.memory_space<vmem>>, %arg8: memref<2x128xf32, #tpu.memory_space<vmem>>) attributes {dimension_semantics = [#tpu.dimension_semantics<parallel>], iteration_bounds = array<i64: 1>, scalar_prefetch = 0 : i64, scratch_operands = 0 : i64, tpu.core_type = #tpu.core_type<tc>, window_params = [{transform_indices = @transform_0, window_bounds = array<i64: 2, 256>}, {pipeline_mode = #tpu.pipeline_mode<synchronous>, transform_indices = @transform_1, window_bounds = array<i64: 256, 256>}, {pipeline_mode = #tpu.pipeline_mode<synchronous>, transform_indices = @transform_2, window_bounds = array<i64: 1, 256>}, {pipeline_mode = #tpu.pipeline_mode<synchronous>, transform_indices = @transform_3, window_bounds = array<i64: 256, 256>}, {pipeline_mode = #tpu.pipeline_mode<synchronous>, transform_indices = @transform_4, window_bounds = array<i64: 1, 256>}, {pipeline_mode = #tpu.pipeline_mode<synchronous>, transform_indices = @transform_5, window_bounds = array<i64: 256, 128>}, {pipeline_mode = #tpu.pipeline_mode<synchronous>, transform_indices = @transform_6, window_bounds = array<i64: 1, 128>}, {transform_indices = @transform_7, window_bounds = array<i64: 2, 128>}]} {
    %c0 = arith.constant 0 : index
    %c0_0 = arith.constant 0 : index
    %0 = vector.load %arg1[%c0, %c0_0] : memref<2x256xf32, #tpu.memory_space<vmem>>, vector<2x256xf32>
    %1 = arith.truncf %0 : vector<2x256xf32> to vector<2x256xbf16>
    %c0_1 = arith.constant 0 : index
    %c0_2 = arith.constant 0 : index
    %2 = vector.load %arg2[%c0_1, %c0_2] : memref<256x256xbf16, #tpu.memory_space<vmem>>, vector<256x256xbf16>
    %cst = arith.constant dense<0.000000e+00> : vector<2x256xf32>
    %3 = tpu.matmul %1, %2, %cst {dimension_numbers = #tpu.dot_dimension_numbers<[1], [0], [0], [1], [0, 0, 1, 1], [], []>} : vector<2x256xbf16>, vector<256x256xbf16>, vector<2x256xf32> -> vector<2x256xf32>
    %c0_3 = arith.constant 0 : index
    %c0_4 = arith.constant 0 : index
    %4 = vector.load %arg3[%c0_3, %c0_4] : memref<1x256xf32, #tpu.memory_space<vmem>>, vector<1x256xf32>
    %5 = vector.broadcast %4 : vector<1x256xf32> to vector<2x256xf32>
    %6 = arith.addf %3, %5 : vector<2x256xf32>
    %cst_5 = arith.constant 0.000000e+00 : f32
    %7 = vector.broadcast %cst_5 : f32 to vector<2x256xf32>
    %8 = arith.maximumf %6, %7 : vector<2x256xf32>
    %9 = arith.truncf %8 : vector<2x256xf32> to vector<2x256xbf16>
    %c0_6 = arith.constant 0 : index
    %c0_7 = arith.constant 0 : index
    %10 = vector.load %arg4[%c0_6, %c0_7] : memref<256x256xbf16, #tpu.memory_space<vmem>>, vector<256x256xbf16>
    %cst_8 = arith.constant dense<0.000000e+00> : vector<2x256xf32>
    %11 = tpu.matmul %9, %10, %cst_8 {dimension_numbers = #tpu.dot_dimension_numbers<[1], [0], [0], [1], [0, 0, 1, 1], [], []>} : vector<2x256xbf16>, vector<256x256xbf16>, vector<2x256xf32> -> vector<2x256xf32>
    %c0_9 = arith.constant 0 : index
    %c0_10 = arith.constant 0 : index
    %12 = vector.load %arg5[%c0_9, %c0_10] : memref<1x256xf32, #tpu.memory_space<vmem>>, vector<1x256xf32>
    %13 = vector.broadcast %12 : vector<1x256xf32> to vector<2x256xf32>
    %14 = arith.addf %11, %13 : vector<2x256xf32>
    %15 = arith.mulf %14, %14 : vector<2x256xf32>
    %cst_11 = arith.constant dense<0.000000e+00> : vector<2xf32>
    %16 = vector.multi_reduction <add>, %15, %cst_11 [1] : vector<2x256xf32> to vector<2xf32>
    %17 = vector.shape_cast %16 : vector<2xf32> to vector<2x1xf32>
    %18 = math.rsqrt %17 : vector<2x1xf32>
    %19 = arith.truncf %14 : vector<2x256xf32> to vector<2x256xbf16>
    %c0_12 = arith.constant 0 : index
    %c0_13 = arith.constant 0 : index
    %20 = vector.load %arg6[%c0_12, %c0_13] : memref<256x128xbf16, #tpu.memory_space<vmem>>, vector<256x128xbf16>
    %cst_14 = arith.constant dense<0.000000e+00> : vector<2x128xf32>
    %21 = tpu.matmul %19, %20, %cst_14 {dimension_numbers = #tpu.dot_dimension_numbers<[1], [0], [0], [1], [0, 0, 1, 1], [], []>} : vector<2x256xbf16>, vector<256x128xbf16>, vector<2x128xf32> -> vector<2x128xf32>
    %22 = vector.broadcast %18 : vector<2x1xf32> to vector<2x128xf32>
    %23 = arith.mulf %21, %22 : vector<2x128xf32>
    %c0_15 = arith.constant 0 : index
    %c0_16 = arith.constant 0 : index
    %24 = vector.load %arg7[%c0_15, %c0_16] : memref<1x128xf32, #tpu.memory_space<vmem>>, vector<1x128xf32>
    %25 = vector.broadcast %24 : vector<1x128xf32> to vector<2x128xf32>
    %26 = arith.mulf %23, %25 : vector<2x128xf32>
    %c0_17 = arith.constant 0 : index
    %c0_18 = arith.constant 0 : index
    %27 = vector.load %arg8[%c0_17, %c0_18] : memref<2x128xf32, #tpu.memory_space<vmem>>, vector<2x128xf32>
    tpu.vector_store %arg8[%c0_17, %c0_18], %26 {strides = array<i32>} : memref<2x128xf32, #tpu.memory_space<vmem>>, vector<2x128xf32>,
    return
  }
  func.func @transform_0(%arg0: i32) -> (i32, i32) {
    %c0_i32 = arith.constant 0 : i32
    %c0_i32_0 = arith.constant 0 : i32
    return %arg0, %c0_i32 : i32, i32
  }
  func.func @transform_1(%arg0: i32) -> (i32, i32) {
    %c0_i32 = arith.constant 0 : i32
    %c0_i32_0 = arith.constant 0 : i32
    %c0_i32_1 = arith.constant 0 : i32
    return %c0_i32, %c0_i32_0 : i32, i32
  }
  func.func @transform_2(%arg0: i32) -> (i32, i32) {
    %c0_i32 = arith.constant 0 : i32
    %c0_i32_0 = arith.constant 0 : i32
    %c0_i32_1 = arith.constant 0 : i32
    return %c0_i32, %c0_i32_0 : i32, i32
  }
  func.func @transform_3(%arg0: i32) -> (i32, i32) {
    %c0_i32 = arith.constant 0 : i32
    %c0_i32_0 = arith.constant 0 : i32
    %c0_i32_1 = arith.constant 0 : i32
    return %c0_i32, %c0_i32_0 : i32, i32
  }
  func.func @transform_4(%arg0: i32) -> (i32, i32) {
    %c0_i32 = arith.constant 0 : i32
    %c0_i32_0 = arith.constant 0 : i32
    %c0_i32_1 = arith.constant 0 : i32
    return %c0_i32, %c0_i32_0 : i32, i32
  }
  func.func @transform_5(%arg0: i32) -> (i32, i32) {
    %c0_i32 = arith.constant 0 : i32
    %c0_i32_0 = arith.constant 0 : i32
    %c0_i32_1 = arith.constant 0 : i32
    return %c0_i32, %c0_i32_0 : i32, i32
  }
  func.func @transform_6(%arg0: i32) -> (i32, i32) {
    %c0_i32 = arith.constant 0 : i32
    %c0_i32_0 = arith.constant 0 : i32
    %c0_i32_1 = arith.constant 0 : i32
    return %c0_i32, %c0_i32_0 : i32, i32
  }
  func.func @transform_7(%arg0: i32) -> (i32, i32) {
    %c0_i32 = arith.constant 0 : i32
    %c0_i32_0 = arith.constant 0 : i32
    return %arg0, %c0_i32 : i32, i32
  }
}

</mosaic_0001>

<llo_original>
// kernel: instructor_forward.3
$region0: #{instructor_forward.3}
  #allocation0 [shape = 'u32[]', space=smem, size = 0x4, offset = 0x4, fixed_abs, tag = 'smem constant byte address 0x4 - core index']
  #allocation1 [shape = 'u32[144,128]{1,0:T(1,128)}', space=vmem, size = 0x12000, scoped, tag = 'internal scratch']
  %s0 = inlined_call_operand.vmem [shape: bf16[8,768], index: 0, kind: input, shape index: {}]
  %s1 = inlined_call_operand.hbm [shape: bf16[768,256], index: 1, kind: input, shape index: {}]
  %s2 = inlined_call_operand.hbm [shape: f32[1,256], index: 2, kind: input, shape index: {}]
  %s3 = inlined_call_operand.vmem [shape: f32[8,256], index: 3, kind: output, shape index: {}]
  %s4 = sld [smem:[#allocation0]]
  $region61: #{instructor_forward.3} parent=0
    _
  %s6 = ssub.s32 1, %s4
  %s7 = scalar_select 0, %s6, %s4
  $region1: #{instructor_forward.3} parent=0
    #allocation2 [shape = 'u8[262144]{0}', space=vmem, size = 0x40000, scoped, tag = 'input window, operand 1']
    #allocation3 [shape = 's32[2]{0}', space=sflag, size = 0x8, scoped, tag = 'scoped memory for instructor_forward.3']
    #allocation4 [shape = 'u8[1024]{0}', space=vmem, size = 0x400, scoped, tag = 'input window, operand 2, single buffered']
    #allocation5 [shape = 's32[1]{0}', space=sflag, size = 0x4, scoped, tag = 'scoped memory for instructor_forward.3']
    %8 = vsyncpa [#allocation3], 0
    %s9 = scalar_lea.sflag [#allocation3], 1
    %10 = vsyncpa %s9, 0
    %11 = vsyncpa [#allocation5], 0
    loop: start=0, step=1, limit=5
    $region2: #{instructor_forward.3} parent=1 // loop_pre_header
      _
    $region3: #{instructor_forward.3} parent=1 // loop_header
      %s13 = sphi 0, %s17
      %p14 = scmp.ge.s32.totalorder %s13, 5
      %s20 = sphi 0, %s32
      %s21 = sphi 0, %s28
      %s22 = sphi 0, %s20
      %s23 = sphi 0, %s21
      %s24 = sphi 0, %s22
      %s25 = sphi 0, %s23
      %s37 = sphi 0, %s39
      %s40 = sphi 0, %s37
      %s41 = sphi 0, %s40
      %s57 = sphi 0, %s41
      %s63 = sphi 0, %s65
      %s66 = sphi 0, %s63
      %s67 = sphi 0, %s66
      %s83 = sphi 0, %s67
      %s87 = sphi 0, %s87
      %s89 = sphi 0, %s87
      %s90 = sphi 0, %s89
      %s104 = sphi 0, %s90
      %s110 = sphi 0, %s112
      %s113 = sphi 0, %s110
      %s114 = sphi 0, %s113
      %s130 = sphi 0, %s114
    $region4: #{instructor_forward.3} parent=1 // loop_header_branch
      %16 = sbr.rel (%p14) target = $region8
    $region5: #{instructor_forward.3} parent=1 // loop_body
      %s18 = ssub.s32 %s13, 1
      %s19 = ssub.s32 %s13, 2
      %s26 = sadd.s32 1, %s21
      %p27 = scmp.ge.s32.totalorder %s26, 3
      %s28 = scalar_select %p27, 0, %s26
      %s29 = sadd.s32 1, %s20
      %s30 = scalar_select %p27, %s29, %s20
      %p31 = scmp.ge.s32.totalorder %s30, 1
      %s32 = scalar_select %p31, 0, %s30
      %s33 = ssub.s32 %s20, %s32
      %s34 = ssub.s32 %s21, %s28
      %s35 = sor.u32 %s33, %s34
      %p36 = scmp.eq.s32.totalorder %s35, 0
      %s38 = sadd.s32 %s37, 1
      %s39 = scalar_select %p36, %s37, %s38
      %p42 = pneg %p36
      %p43 = scmp.eq.s32.totalorder %s13, 2
      %p44 = por %p42, %p43
      %p45 = scmp.ne.s32.totalorder %s37, %s40
      %p46 = scmp.eq.s32.totalorder %s13, 0
      %p47 = por %p45, %p46
      %p48 = scmp.ne.s32.totalorder %s37, %s40
      %p49 = scmp.eq.s32.totalorder %s18, 2
      %p50 = por %p48, %p49
      %p51 = scmp.ne.s32.totalorder %s40, %s41
      %p52 = scmp.eq.s32.totalorder %s18, 0
      %p53 = por %p51, %p52
      %p54 = scmp.ne.s32.totalorder %s40, %s41
      %p55 = scmp.eq.s32.totalorder %s19, 2
      %p56 = por %p54, %p55
      %p58 = scmp.ne.s32.totalorder %s41, %s57
      %p59 = scmp.eq.s32.totalorder %s19, 0
      %p60 = por %p58, %p59
      %s61 = ssub.s32 %s21, %s28
      %p62 = scmp.eq.s32.totalorder %s61, 0
      %s64 = sadd.s32 %s63, 1
      %s65 = scalar_select %p62, %s63, %s64
      %p68 = pneg %p62
      %p69 = scmp.eq.s32.totalorder %s13, 2
      %p70 = por %p68, %p69
      %p71 = scmp.ne.s32.totalorder %s63, %s66
      %p72 = scmp.eq.s32.totalorder %s13, 0
      %p73 = por %p71, %p72
      %p74 = scmp.ne.s32.totalorder %s63, %s66
      %p75 = scmp.eq.s32.totalorder %s18, 2
      %p76 = por %p74, %p75
      %p77 = scmp.ne.s32.totalorder %s66, %s67
      %p78 = scmp.eq.s32.totalorder %s18, 0
      %p79 = por %p77, %p78
      %p80 = scmp.ne.s32.totalorder %s66, %s67
      %p81 = scmp.eq.s32.totalorder %s19, 2
      %p82 = por %p80, %p81
      %p84 = scmp.ne.s32.totalorder %s67, %s83
      %p85 = scmp.eq.s32.totalorder %s19, 0
      %p86 = por %p84, %p85
      %s88 = sadd.s32 %s87, 1
      %p91 = scmp.eq.s32.totalorder %s13, 2
      %p92 = scmp.ne.s32.totalorder %s87, %s89
      %p93 = scmp.eq.s32.totalorder %s13, 0
      %p94 = por %p92, %p93
      %p95 = scmp.ne.s32.totalorder %s87, %s89
      %p96 = scmp.eq.s32.totalorder %s18, 2
      %p97 = por %p95, %p96
      %p98 = scmp.ne.s32.totalorder %s89, %s90
      %p99 = scmp.eq.s32.totalorder %s18, 0
      %p100 = por %p98, %p99
      %p101 = scmp.ne.s32.totalorder %s89, %s90
      %p102 = scmp.eq.s32.totalorder %s19, 2
      %p103 = por %p101, %p102
      %p105 = scmp.ne.s32.totalorder %s90, %s104
      %p106 = scmp.eq.s32.totalorder %s19, 0
      %p107 = por %p105, %p106
      %s108 = ssub.s32 %s20, %s32
      %p109 = scmp.eq.s32.totalorder %s108, 0
      %s111 = sadd.s32 %s110, 1
      %s112 = scalar_select %p109, %s110, %s111
      %p115 = pneg %p109
      %p116 = scmp.eq.s32.totalorder %s13, 2
      %p117 = por %p115, %p116
      %p118 = scmp.ne.s32.totalorder %s110, %s113
      %p119 = scmp.eq.s32.totalorder %s13, 0
      %p120 = por %p118, %p119
      %p121 = scmp.ne.s32.totalorder %s110, %s113
      %p122 = scmp.eq.s32.totalorder %s18, 2
      %p123 = por %p121, %p122
      %p124 = scmp.ne.s32.totalorder %s113, %s114
      %p125 = scmp.eq.s32.totalorder %s18, 0
      %p126 = por %p124, %p125
      %p127 = scmp.ne.s32.totalorder %s113, %s114
      %p128 = scmp.eq.s32.totalorder %s19, 2
      %p129 = por %p127, %p128
      %p131 = scmp.ne.s32.totalorder %s114, %s130
      %p132 = scmp.eq.s32.totalorder %s19, 0
      %p133 = por %p131, %p132
      %p134 = scmp.le.s32.totalorder 1, %s13
      %p135 = scmp.lt.s32.totalorder %s13, 4
      %p136 = pnand %p134, %p135
      %p137 = pneg %p136
      // Predicated region
      $region9: #{instructor_forward.3} parent=5 // pred_check
        _
      $region10: #{instructor_forward.3} parent=5 // pred_check_branch
        %139 = sbr.rel (%p136) target = $region12
      $region11: #{instructor_forward.3} parent=5 // pred_region
        %s140 = ssub.s32 %s13, 1
        // Predicated region
        $region13: #{instructor_forward.3} parent=11 // pred_check
          %p141 = pneg %p100
        $region14: #{instructor_forward.3} parent=11 // pred_check_branch
          %143 = sbr.rel (%p141) target = $region16
        $region15: #{instructor_forward.3} parent=11 // pred_region
          %s145 = ssub.s32 32, 32
          %146 = vsyncadd [#allocation5], %s145
          %s148 = sshll.u32 [#allocation4], 4
          %s149 = int_to_ptr.vmem [resolvable:$true] %s148
          %151 = dma.hbm_to_vmem [thread:$0]  %s2, 32, %s149, [#allocation5]
        $region16: #{instructor_forward.3} parent=11 // pred_fallthru
          _
      $region12: #{instructor_forward.3} parent=5 // pred_fallthru
        _
      %p152 = scmp.lt.s32.totalorder %s13, 3
      // Predicated region
      $region17: #{instructor_forward.3} parent=5 // pred_check
        %p153 = pneg %p152
      $region18: #{instructor_forward.3} parent=5 // pred_check_branch
        %155 = sbr.rel (%p153) target = $region20
      $region19: #{instructor_forward.3} parent=5 // pred_region
        // Predicated region
        $region21: #{instructor_forward.3} parent=19 // pred_check
          %p156 = pneg %p47
        $region22: #{instructor_forward.3} parent=19 // pred_check_branch
          %158 = sbr.rel (%p156) target = $region24
        $region23: #{instructor_forward.3} parent=19 // pred_region
          %s159 = smul.u32 2, %s21
          %p160 = scmp.lt.s32.totalorder %s20, 0
          %s161 = scalar_select %p160, %s20, 0
          %p162 = scmp.lt.s32.totalorder %s159, 5
          %s163 = scalar_select %p162, %s159, 5
          %s164 = smul.addr %s161, 6
          %s165 = sadd.s32 %s163, %s164
          %s166 = smul.addr %s165, 4
          %s167 = scalar_lea.vmem %s0, %s166
          %s168 = smul.u32 2, %s21
        $region24: #{instructor_forward.3} parent=19 // pred_fallthru
          _
        // Predicated region
        $region25: #{instructor_forward.3} parent=19 // pred_check
          %p169 = pneg %p73
        $region26: #{instructor_forward.3} parent=19 // pred_check_branch
          %171 = sbr.rel (%p169) target = $region28
        $region27: #{instructor_forward.3} parent=19 // pred_region
          %s172 = sand.u32 %s63, 1
          %s173 = scalar_lea.sflag [#allocation3], %s172
          %s174 = sand.u32 %s63, 1
          %s175 = smul.addr %s174, 256
          %s176 = scalar_lea.vmem [#allocation2], %s175
          %s177 = smul.u32 32, %s21
          %s179 = ssub.s32 4096, 4096
          %180 = vsyncadd %s173, %s179
          %s181 = smul.addr %s177, 2
          %s182 = smul.addr %s181, 64
          %s183 = scalar_lea.hbm %s1, %s182
          %s184 = sshll.u32 %s176, 4
          %s185 = int_to_ptr.vmem [resolvable:$true] %s184
          %190 = dma.hbm_to_vmem [thread:$0]  %s183, 4096, %s185, %s173, 128, 128, 8
        $region28: #{instructor_forward.3} parent=19 // pred_fallthru
          _
      $region20: #{instructor_forward.3} parent=5 // pred_fallthru
        _
      %p191 = scmp.le.s32.totalorder 1, %s13
      %p192 = scmp.lt.s32.totalorder %s13, 4
      %p193 = pnand %p191, %p192
      %p194 = pneg %p193
      // Predicated region
      $region29: #{instructor_forward.3} parent=5 // pred_check
        _
      $region30: #{instructor_forward.3} parent=5 // pred_check_branch
        %196 = sbr.rel (%p193) target = $region32
      $region31: #{instructor_forward.3} parent=5 // pred_region
        %s197 = ssub.s32 %s13, 1
        %s198 = sand.u32 %s66, 1
        %s199 = scalar_lea.sflag [#allocation3], %s198
        %s200 = sand.u32 %s66, 1
        %s201 = smul.addr %s200, 256
        %s202 = scalar_lea.vmem [#allocation2], %s201
        // Predicated region
        $region33: #{instructor_forward.3} parent=31 // pred_check
          %p203 = pneg %p79
        $region34: #{instructor_forward.3} parent=31 // pred_check_branch
          %205 = sbr.rel (%p203) target = $region36
        $region35: #{instructor_forward.3} parent=31 // pred_region
          %206 = dma.done %s199, 4096
        $region36: #{instructor_forward.3} parent=31 // pred_fallthru
          _
        // Predicated region
        $region37: #{instructor_forward.3} parent=31 // pred_check
          %p207 = pneg %p100
        $region38: #{instructor_forward.3} parent=31 // pred_check_branch
          %209 = sbr.rel (%p207) target = $region40
        $region39: #{instructor_forward.3} parent=31 // pred_region
          %210 = dma.done [#allocation5], 32
        $region40: #{instructor_forward.3} parent=31 // pred_fallthru
          _
        %s211 = smul.u32 2, %s23
        %p212 = scmp.lt.s32.totalorder %s22, 0
        %s213 = scalar_select %p212, %s22, 0
        %p214 = scmp.lt.s32.totalorder %s211, 5
        %s215 = scalar_select %p214, %s211, 5
        %s216 = smul.addr %s213, 6
        %s217 = sadd.s32 %s215, %s216
        %s218 = smul.addr %s217, 4
        %s219 = scalar_lea.vmem %s0, %s218
        %p220 = pneg %p53
        %p221 = pneg %p50
        %s222 = sand.u32 %s66, 1
        %s223 = scalar_lea.sflag [#allocation3], %s222
        %s224 = sand.u32 %s66, 1
        %s225 = smul.addr %s224, 256
        %s226 = scalar_lea.vmem [#allocation2], %s225
        %p227 = pneg %p79
        %p228 = pneg %p76
        %p229 = pneg %p100
        %p230 = pneg %p97
        %p231 = pneg %p126
        %p232 = pneg %p123
        %p233 = scmp.lt.s32.totalorder %s22, 0
        %s234 = scalar_select %p233, %s22, 0
        %s235 = smul.addr %s234, 2
        %s236 = smul.addr %s235, 8
        %s237 = scalar_lea.vmem %s3, %s236
        %s238 = smul.u32 2, %s23
        %p239 = scmp.lt.s32.totalorder %s22, 0
        %s240 = scalar_select %p239, %s22, 0
        %p241 = scmp.lt.s32.totalorder %s238, 5
        %s242 = scalar_select %p241, %s238, 5
        %s243 = smul.addr %s240, 6
        %s244 = sadd.s32 %s242, %s243
        %s245 = smul.addr %s244, 4
        %s246 = scalar_lea.vmem %s0, %s245
        %s247 = smul.u32 2, %s23
        %s248 = smul.u32 32, %s23
        %p249 = scmp.lt.s32.totalorder %s22, 0
        %s250 = scalar_select %p249, %s22, 0
        %s251 = smul.addr %s250, 2
        %s252 = smul.addr %s251, 8
        %s253 = scalar_lea.vmem %s3, %s252
        %v254 = vld [vmem:[%s246] sm:$0xff]
        %v255 = vld [vmem:[%s202] sm:$0xff]
        %v256 = vld [vmem:[%s202 + $0x8] sm:$0xff]
        %v257 = vld [vmem:[%s202 + $0x10] sm:$0xff]
        %v258 = vld [vmem:[%s202 + $0x18] sm:$0xff]
        %v259 = vld [vmem:[%s202 + $0x20] sm:$0xff]
        %v260 = vld [vmem:[%s202 + $0x28] sm:$0xff]
        %v261 = vld [vmem:[%s202 + $0x30] sm:$0xff]
        %v262 = vld [vmem:[%s202 + $0x38] sm:$0xff]
        %v263 = vld [vmem:[%s202 + $0x40] sm:$0xff]
        %v264 = vld [vmem:[%s202 + $0x48] sm:$0xff]
        %v265 = vld [vmem:[%s202 + $0x50] sm:$0xff]
        %v266 = vld [vmem:[%s202 + $0x58] sm:$0xff]
        %v267 = vld [vmem:[%s202 + $0x60] sm:$0xff]
        %v268 = vld [vmem:[%s202 + $0x68] sm:$0xff]
        %v269 = vld [vmem:[%s202 + $0x70] sm:$0xff]
        %v270 = vld [vmem:[%s202 + $0x78] sm:$0xff]
        %v271 = vld [vmem:[%s202 + $0x80] sm:$0xff]
        %v272 = vld [vmem:[%s202 + $0x88] sm:$0xff]
        %v273 = vld [vmem:[%s202 + $0x90] sm:$0xff]
        %v274 = vld [vmem:[%s202 + $0x98] sm:$0xff]
        %v275 = vld [vmem:[%s202 + $0xa0] sm:$0xff]
        %v276 = vld [vmem:[%s202 + $0xa8] sm:$0xff]
        %v277 = vld [vmem:[%s202 + $0xb0] sm:$0xff]
        %v278 = vld [vmem:[%s202 + $0xb8] sm:$0xff]
        %v279 = vld [vmem:[%s202 + $0xc0] sm:$0xff]
        %v280 = vld [vmem:[%s202 + $0xc8] sm:$0xff]
        %v281 = vld [vmem:[%s202 + $0xd0] sm:$0xff]
        %v282 = vld [vmem:[%s202 + $0xd8] sm:$0xff]
        %v283 = vld [vmem:[%s202 + $0xe0] sm:$0xff]
        %v284 = vld [vmem:[%s202 + $0xe8] sm:$0xff]
        %v285 = vld [vmem:[%s202 + $0xf0] sm:$0xff]
        %v286 = vld [vmem:[%s202 + $0xf8] sm:$0xff]
        %v288 = vunpack.c.l.b16 %v254
        %v289 = vunpack.c.h.b16 %v254
        %v290 = vpack.c.b16 %v288, %v288
        %v291 = vpack.c.b16 %v289, %v289
        %v326 = vunpack.c.l.b16 %v255
        %v327 = vunpack.c.h.b16 %v255
        %v328 = vunpack.c.l.b16 %v256
        %v329 = vunpack.c.h.b16 %v256
        %v330 = vunpack.c.l.b16 %v257
        %v331 = vunpack.c.h.b16 %v257
        %v332 = vunpack.c.l.b16 %v258
        %v333 = vunpack.c.h.b16 %v258
        %v334 = vunpack.c.l.b16 %v259
        %v335 = vunpack.c.h.b16 %v259
        %v336 = vunpack.c.l.b16 %v260
        %v337 = vunpack.c.h.b16 %v260
        %v338 = vunpack.c.l.b16 %v261
        %v339 = vunpack.c.h.b16 %v261
        %v340 = vunpack.c.l.b16 %v262
        %v341 = vunpack.c.h.b16 %v262
        %v342 = vunpack.c.l.b16 %v263
        %v343 = vunpack.c.h.b16 %v263
        %v344 = vunpack.c.l.b16 %v264
        %v345 = vunpack.c.h.b16 %v264
        %v346 = vunpack.c.l.b16 %v265
        %v347 = vunpack.c.h.b16 %v265
        %v348 = vunpack.c.l.b16 %v266
        %v349 = vunpack.c.h.b16 %v266
        %v350 = vunpack.c.l.b16 %v267
        %v351 = vunpack.c.h.b16 %v267
        %v352 = vunpack.c.l.b16 %v268
        %v353 = vunpack.c.h.b16 %v268
        %v354 = vunpack.c.l.b16 %v269
        %v355 = vunpack.c.h.b16 %v269
        %v356 = vunpack.c.l.b16 %v270
        %v357 = vunpack.c.h.b16 %v270
        %v358 = vunpack.c.l.b16 %v271
        %v359 = vunpack.c.h.b16 %v271
        %v360 = vunpack.c.l.b16 %v272
        %v361 = vunpack.c.h.b16 %v272
        %v362 = vunpack.c.l.b16 %v273
        %v363 = vunpack.c.h.b16 %v273
        %v364 = vunpack.c.l.b16 %v274
        %v365 = vunpack.c.h.b16 %v274
        %v366 = vunpack.c.l.b16 %v275
        %v367 = vunpack.c.h.b16 %v275
        %v368 = vunpack.c.l.b16 %v276
        %v369 = vunpack.c.h.b16 %v276
        %v370 = vunpack.c.l.b16 %v277
        %v371 = vunpack.c.h.b16 %v277
        %v372 = vunpack.c.l.b16 %v278
        %v373 = vunpack.c.h.b16 %v278
        %v374 = vunpack.c.l.b16 %v279
        %v375 = vunpack.c.h.b16 %v279
        %v376 = vunpack.c.l.b16 %v280
        %v377 = vunpack.c.h.b16 %v280
        %v378 = vunpack.c.l.b16 %v281
        %v379 = vunpack.c.h.b16 %v281
        %v380 = vunpack.c.l.b16 %v282
        %v381 = vunpack.c.h.b16 %v282
        %v382 = vunpack.c.l.b16 %v283
        %v383 = vunpack.c.h.b16 %v283
        %v384 = vunpack.c.l.b16 %v284
        %v385 = vunpack.c.h.b16 %v284
        %v386 = vunpack.c.l.b16 %v285
        %v387 = vunpack.c.h.b16 %v285
        %v388 = vunpack.c.l.b16 %v286
        %v389 = vunpack.c.h.b16 %v286
        %v390 = vpack.c.b16 %v328, %v326
        %v391 = vpack.c.b16 %v329, %v327
        %v392 = vpack.c.b16 %v332, %v330
        %v393 = vpack.c.b16 %v333, %v331
        %v394 = vpack.c.b16 %v336, %v334
        %v395 = vpack.c.b16 %v337, %v335
        %v396 = vpack.c.b16 %v340, %v338
        %v397 = vpack.c.b16 %v341, %v339
        %v398 = vpack.c.b16 %v344, %v342
        %v399 = vpack.c.b16 %v345, %v343
        %v400 = vpack.c.b16 %v348, %v346
        %v401 = vpack.c.b16 %v349, %v347
        %v402 = vpack.c.b16 %v352, %v350
        %v403 = vpack.c.b16 %v353, %v351
        %v404 = vpack.c.b16 %v356, %v354
        %v405 = vpack.c.b16 %v357, %v355
        %v406 = vpack.c.b16 %v360, %v358
        %v407 = vpack.c.b16 %v361, %v359
        %v408 = vpack.c.b16 %v364, %v362
        %v409 = vpack.c.b16 %v365, %v363
        %v410 = vpack.c.b16 %v368, %v366
        %v411 = vpack.c.b16 %v369, %v367
        %v412 = vpack.c.b16 %v372, %v370
        %v413 = vpack.c.b16 %v373, %v371
        %v414 = vpack.c.b16 %v376, %v374
        %v415 = vpack.c.b16 %v377, %v375
        %v416 = vpack.c.b16 %v380, %v378
        %v417 = vpack.c.b16 %v381, %v379
        %v418 = vpack.c.b16 %v384, %v382
        %v419 = vpack.c.b16 %v385, %v383
        %v420 = vpack.c.b16 %v388, %v386
        %v421 = vpack.c.b16 %v389, %v387
        %454 = vmatprep.subr.bf16.mxu0 %v405
        %455 = vmatpush1.bf16.msra.mxu0 %v404
        %456 = vmatprep.subr.bf16.mxu0 %v403
        %457 = vmatpush1.bf16.msra.mxu0 %v402
        %458 = vmatprep.subr.bf16.mxu0 %v401
        %459 = vmatpush1.bf16.msra.mxu0 %v400
        %460 = vmatprep.subr.bf16.mxu0 %v399
        %461 = vmatpush1.bf16.msra.mxu0 %v398
        %462 = vmatprep.subr.bf16.mxu0 %v397
        %463 = vmatpush1.bf16.msra.mxu0 %v396
        %464 = vmatprep.subr.bf16.mxu0 %v395
        %465 = vmatpush1.bf16.msra.mxu0 %v394
        %466 = vmatprep.subr.bf16.mxu0 %v393
        %467 = vmatpush1.bf16.msra.mxu0 %v392
        %468 = vmatprep.subr.bf16.mxu0 %v391
        %469 = vmatpush1.bf16.msra.mxu0 %v390
        %470 = vmatprep.subr.bf16.mxu0 %v421
        %471 = vmatpush2.bf16.msra.mxu0 %v420
        %472 = vmatprep.subr.bf16.mxu0 %v419
        %473 = vmatpush2.bf16.msra.mxu0 %v418
        %474 = vmatprep.subr.bf16.mxu0 %v417
        %475 = vmatpush2.bf16.msra.mxu0 %v416
        %476 = vmatprep.subr.bf16.mxu0 %v415
        %477 = vmatpush2.bf16.msra.mxu0 %v414
        %478 = vmatprep.subr.bf16.mxu0 %v413
        %479 = vmatpush2.bf16.msra.mxu0 %v412
        %480 = vmatprep.subr.bf16.mxu0 %v411
        %481 = vmatpush2.bf16.msra.mxu0 %v410
        %482 = vmatprep.subr.bf16.mxu0 %v409
        %483 = vmatpush2.bf16.msra.mxu0 %v408
        %484 = vmatprep.subr.bf16.mxu0 %v407
        %485 = vmatpush2.bf16.msra.mxu0 %v406
        %486 = vmatprep.mubr.bf16.mxu0 %v291
        %487 = vmatmul.mubr.bf16.gmra.mxu0 %v290
        %v488 = vpop.f32.mrf.mxu0
        %v489 = vadd.f32 0.0, %v488
        %v490 = vpop.f32.mrf.mxu0
        %v491 = vadd.f32 0.0, %v490
        %v492 = vpop.f32.mrf.mxu0
        %v493 = vpop.f32.mrf.mxu0
        %494 = vdwg.mxu0
        %p495 = scmp.eq.s32.totalorder %s23, 0
        // Predicated region
        $region41: #{instructor_forward.3} parent=31 // pred_check
          %p496 = pneg %p495
        $region42: #{instructor_forward.3} parent=31 // pred_check_branch
          %498 = sbr.rel (%p496) target = $region44
        $region43: #{instructor_forward.3} parent=31 // pred_region
          %v499 = vld [vmem:[#allocation4] sm:$0x3]
          %v501 = vlaneseq
          %v502 = vshrl.u32 %v501, 7
          %v503 = vsub.s32 0, %v502
          %v504 = vrot.slane %v499, %v503
          %v505 = vlaneseq
          %v506 = vshrl.u32 %v505, 7
          %v507 = vsub.s32 1, %v506
          %v508 = vrot.slane %v499, %v507
          %v511 = vadd.f32 %v489, %v504
          %v512 = vadd.f32 %v491, %v508
          %513 = vst [vmem:[%s253] sm:$0xff] %v511
          %514 = vst [vmem:[%s253 + $0x8] sm:$0xff] %v512
        $region44: #{instructor_forward.3} parent=31 // pred_fallthru
          _
        %p515 = scmp.gt.s32.totalorder %s23, 0
        // Predicated region
        $region45: #{instructor_forward.3} parent=31 // pred_check
          %p516 = pneg %p515
        $region46: #{instructor_forward.3} parent=31 // pred_check_branch
          %518 = sbr.rel (%p516) target = $region48
        $region47: #{instructor_forward.3} parent=31 // pred_region
          %v519 = vld [vmem:[%s253] sm:$0xff]
          %v520 = vld [vmem:[%s253 + $0x8] sm:$0xff]
          %v521 = vadd.f32 %v519, %v489
          %v522 = vadd.f32 %v520, %v491
          %523 = vst [vmem:[%s253] sm:$0xff] %v521
          %524 = vst [vmem:[%s253 + $0x8] sm:$0xff] %v522
        $region48: #{instructor_forward.3} parent=31 // pred_fallthru
          _
        %p525 = scmp.lt.s32.totalorder %s22, 0
        %s526 = scalar_select %p525, %s22, 0
        %s527 = smul.addr %s526, 2
        %s528 = smul.addr %s527, 8
        %s529 = scalar_lea.vmem %s3, %s528
        // Predicated region
        $region49: #{instructor_forward.3} parent=31 // pred_check
          %p530 = pneg %p123
        $region50: #{instructor_forward.3} parent=31 // pred_check_branch
          %532 = sbr.rel (%p530) target = $region52
        $region51: #{instructor_forward.3} parent=31 // pred_region
          _
        $region52: #{instructor_forward.3} parent=31 // pred_fallthru
          _
        // Predicated region
        $region53: #{instructor_forward.3} parent=31 // pred_check
          %p533 = pneg %p123
        $region54: #{instructor_forward.3} parent=31 // pred_check_branch
          %535 = sbr.rel (%p533) target = $region56
        $region55: #{instructor_forward.3} parent=31 // pred_region
          %p536 = scmp.lt.s32.totalorder %s22, 0
          %s537 = scalar_select %p536, %s22, 0
          %s538 = smul.addr %s537, 2
          %s539 = smul.addr %s538, 8
          %s540 = scalar_lea.vmem %s3, %s539
        $region56: #{instructor_forward.3} parent=31 // pred_fallthru
          _
      $region32: #{instructor_forward.3} parent=5 // pred_fallthru
        _
      %p541 = scmp.le.s32.totalorder 2, %s13
      // Predicated region
      $region57: #{instructor_forward.3} parent=5 // pred_check
        %p542 = pneg %p541
      $region58: #{instructor_forward.3} parent=5 // pred_check_branch
        %544 = sbr.rel (%p542) target = $region60
      $region59: #{instructor_forward.3} parent=5 // pred_region
        %s545 = ssub.s32 %s13, 2
      $region60: #{instructor_forward.3} parent=5 // pred_fallthru
        _
    $region6: #{instructor_forward.3} parent=1 // loop_footer
      %s17 = sadd.s32 1, %s13
    $region7: #{instructor_forward.3} parent=1 // loop_footer_branch
      %12 = sbr.rel target = $region3
    $region8: #{instructor_forward.3} parent=1 // loop_exit
      _
    %546 = vsyncpa [#allocation3], 1
    %s547 = scalar_lea.sflag [#allocation3], 1
    %548 = vsyncpa %s547, 1
    %549 = vsyncpa [#allocation5], 1

// kernel: instructor_forward.5
$region0: #{instructor_forward.5}
  #allocation0 [shape = 'u32[]', space=smem, size = 0x4, offset = 0x4, fixed_abs, tag = 'smem constant byte address 0x4 - core index']
  #allocation1 [shape = 'u32[144,128]{1,0:T(1,128)}', space=vmem, size = 0x12000, scoped, tag = 'internal scratch']
  %s0 = inlined_call_operand.vmem [shape: f32[2,256], index: 0, kind: input, shape index: {}]
  %s1 = inlined_call_operand.vmem [shape: bf16[256,256], index: 1, kind: input, shape index: {}]
  %s2 = inlined_call_operand.vmem [shape: f32[1,256], index: 2, kind: input, shape index: {}]
  %s3 = inlined_call_operand.vmem [shape: bf16[256,256], index: 3, kind: input, shape index: {}]
  %s4 = inlined_call_operand.vmem [shape: f32[1,256], index: 4, kind: input, shape index: {}]
  %s5 = inlined_call_operand.vmem [shape: bf16[256,128], index: 5, kind: input, shape index: {}]
  %s6 = inlined_call_operand.vmem [shape: f32[1,128], index: 6, kind: input, shape index: {}]
  %s7 = inlined_call_operand.hbm [shape: f32[2,128], index: 7, kind: output, shape index: {}]
  %s8 = sld [smem:[#allocation0]]
  $region38: #{instructor_forward.5} parent=0
    _
  %s10 = ssub.s32 1, %s8
  %s11 = scalar_select 0, %s10, %s8
  $region1: #{instructor_forward.5} parent=0
    #allocation2 [shape = 'u8[1024]{0}', space=vmem, size = 0x400, scoped, tag = 'output window, operand 0, single buffered']
    #allocation3 [shape = 's32[1]{0}', space=sflag, size = 0x4, scoped, tag = 'scoped memory for instructor_forward.5']
    %12 = vsyncpa [#allocation3], 0
    // Predicated region
    $region2: #{instructor_forward.5} parent=1 // pred_check
      _
    $region3: #{instructor_forward.5} parent=1 // pred_check_branch
      %14 = sbr.rel (0) target = $region5
    $region4: #{instructor_forward.5} parent=1 // pred_region
      _
    $region5: #{instructor_forward.5} parent=1 // pred_fallthru
      _
    // Predicated region
    $region6: #{instructor_forward.5} parent=1 // pred_check
      _
    $region7: #{instructor_forward.5} parent=1 // pred_check_branch
      %16 = sbr.rel (0) target = $region9
    $region8: #{instructor_forward.5} parent=1 // pred_region
      _
    $region9: #{instructor_forward.5} parent=1 // pred_fallthru
      _
    // Predicated region
    $region10: #{instructor_forward.5} parent=1 // pred_check
      _
    $region11: #{instructor_forward.5} parent=1 // pred_check_branch
      %18 = sbr.rel (0) target = $region13
    $region12: #{instructor_forward.5} parent=1 // pred_region
      _
    $region13: #{instructor_forward.5} parent=1 // pred_fallthru
      _
    // Predicated region
    $region14: #{instructor_forward.5} parent=1 // pred_check
      _
    $region15: #{instructor_forward.5} parent=1 // pred_check_branch
      %20 = sbr.rel (0) target = $region17
    $region16: #{instructor_forward.5} parent=1 // pred_region
      _
    $region17: #{instructor_forward.5} parent=1 // pred_fallthru
      _
    // Predicated region
    $region18: #{instructor_forward.5} parent=1 // pred_check
      _
    $region19: #{instructor_forward.5} parent=1 // pred_check_branch
      %22 = sbr.rel (0) target = $region21
    $region20: #{instructor_forward.5} parent=1 // pred_region
      _
    $region21: #{instructor_forward.5} parent=1 // pred_fallthru
      _
    // Predicated region
    $region22: #{instructor_forward.5} parent=1 // pred_check
      _
    $region23: #{instructor_forward.5} parent=1 // pred_check_branch
      %24 = sbr.rel (0) target = $region25
    $region24: #{instructor_forward.5} parent=1 // pred_region
      _
    $region25: #{instructor_forward.5} parent=1 // pred_fallthru
      _
    // Predicated region
    $region26: #{instructor_forward.5} parent=1 // pred_check
      _
    $region27: #{instructor_forward.5} parent=1 // pred_check_branch
      %26 = sbr.rel (0) target = $region29
    $region28: #{instructor_forward.5} parent=1 // pred_region
      _
    $region29: #{instructor_forward.5} parent=1 // pred_fallthru
      _
    %v28 = vld [vmem:[%s0] sm:$0xf]
    %v31 = vunpack.c.l.s4 1983009808
    %v32 = vunpack.c.0.s8 %v31
    %v33 = vlaneseq
    %v34 = vshrl.u32 %v33, 7
    %v35 = vsub.s32 %v32, %v34
    %v36 = vrot.slane %v28, %v35
    %v37 = vcombine.high %v36, %v36
    %v40 = vpack.c.bf16 %v36, %v36
    %v41 = vpack.c.bf16 %v37, %v37
    %v42 = vld [vmem:[%s1] sm:$0xff]
    %v43 = vld [vmem:[%s1 + $0x8] sm:$0xff]
    %v44 = vld [vmem:[%s1 + $0x10] sm:$0xff]
    %v45 = vld [vmem:[%s1 + $0x18] sm:$0xff]
    %v46 = vld [vmem:[%s1 + $0x20] sm:$0xff]
    %v47 = vld [vmem:[%s1 + $0x28] sm:$0xff]
    %v48 = vld [vmem:[%s1 + $0x30] sm:$0xff]
    %v49 = vld [vmem:[%s1 + $0x38] sm:$0xff]
    %v50 = vld [vmem:[%s1 + $0x40] sm:$0xff]
    %v51 = vld [vmem:[%s1 + $0x48] sm:$0xff]
    %v52 = vld [vmem:[%s1 + $0x50] sm:$0xff]
    %v53 = vld [vmem:[%s1 + $0x58] sm:$0xff]
    %v54 = vld [vmem:[%s1 + $0x60] sm:$0xff]
    %v55 = vld [vmem:[%s1 + $0x68] sm:$0xff]
    %v56 = vld [vmem:[%s1 + $0x70] sm:$0xff]
    %v57 = vld [vmem:[%s1 + $0x78] sm:$0xff]
    %v58 = vld [vmem:[%s1 + $0x80] sm:$0xff]
    %v59 = vld [vmem:[%s1 + $0x88] sm:$0xff]
    %v60 = vld [vmem:[%s1 + $0x90] sm:$0xff]
    %v61 = vld [vmem:[%s1 + $0x98] sm:$0xff]
    %v62 = vld [vmem:[%s1 + $0xa0] sm:$0xff]
    %v63 = vld [vmem:[%s1 + $0xa8] sm:$0xff]
    %v64 = vld [vmem:[%s1 + $0xb0] sm:$0xff]
    %v65 = vld [vmem:[%s1 + $0xb8] sm:$0xff]
    %v66 = vld [vmem:[%s1 + $0xc0] sm:$0xff]
    %v67 = vld [vmem:[%s1 + $0xc8] sm:$0xff]
    %v68 = vld [vmem:[%s1 + $0xd0] sm:$0xff]
    %v69 = vld [vmem:[%s1 + $0xd8] sm:$0xff]
    %v70 = vld [vmem:[%s1 + $0xe0] sm:$0xff]
    %v71 = vld [vmem:[%s1 + $0xe8] sm:$0xff]
    %v72 = vld [vmem:[%s1 + $0xf0] sm:$0xff]
    %v73 = vld [vmem:[%s1 + $0xf8] sm:$0xff]
    %v74 = vld [vmem:[%s2] sm:$0x3]
    %v76 = vlaneseq
    %v77 = vshrl.u32 %v76, 7
    %v78 = vsub.s32 0, %v77
    %v79 = vrot.slane %v74, %v78
    %v80 = vlaneseq
    %v81 = vshrl.u32 %v80, 7
    %v82 = vsub.s32 1, %v81
    %v83 = vrot.slane %v74, %v82
    %v118 = vunpack.c.l.b16 %v42
    %v119 = vunpack.c.h.b16 %v42
    %v120 = vunpack.c.l.b16 %v43
    %v121 = vunpack.c.h.b16 %v43
    %v122 = vunpack.c.l.b16 %v44
    %v123 = vunpack.c.h.b16 %v44
    %v124 = vunpack.c.l.b16 %v45
    %v125 = vunpack.c.h.b16 %v45
    %v126 = vunpack.c.l.b16 %v46
    %v127 = vunpack.c.h.b16 %v46
    %v128 = vunpack.c.l.b16 %v47
    %v129 = vunpack.c.h.b16 %v47
    %v130 = vunpack.c.l.b16 %v48
    %v131 = vunpack.c.h.b16 %v48
    %v132 = vunpack.c.l.b16 %v49
    %v133 = vunpack.c.h.b16 %v49
    %v134 = vunpack.c.l.b16 %v50
    %v135 = vunpack.c.h.b16 %v50
    %v136 = vunpack.c.l.b16 %v51
    %v137 = vunpack.c.h.b16 %v51
    %v138 = vunpack.c.l.b16 %v52
    %v139 = vunpack.c.h.b16 %v52
    %v140 = vunpack.c.l.b16 %v53
    %v141 = vunpack.c.h.b16 %v53
    %v142 = vunpack.c.l.b16 %v54
    %v143 = vunpack.c.h.b16 %v54
    %v144 = vunpack.c.l.b16 %v55
    %v145 = vunpack.c.h.b16 %v55
    %v146 = vunpack.c.l.b16 %v56
    %v147 = vunpack.c.h.b16 %v56
    %v148 = vunpack.c.l.b16 %v57
    %v149 = vunpack.c.h.b16 %v57
    %v150 = vunpack.c.l.b16 %v58
    %v151 = vunpack.c.h.b16 %v58
    %v152 = vunpack.c.l.b16 %v59
    %v153 = vunpack.c.h.b16 %v59
    %v154 = vunpack.c.l.b16 %v60
    %v155 = vunpack.c.h.b16 %v60
    %v156 = vunpack.c.l.b16 %v61
    %v157 = vunpack.c.h.b16 %v61
    %v158 = vunpack.c.l.b16 %v62
    %v159 = vunpack.c.h.b16 %v62
    %v160 = vunpack.c.l.b16 %v63
    %v161 = vunpack.c.h.b16 %v63
    %v162 = vunpack.c.l.b16 %v64
    %v163 = vunpack.c.h.b16 %v64
    %v164 = vunpack.c.l.b16 %v65
    %v165 = vunpack.c.h.b16 %v65
    %v166 = vunpack.c.l.b16 %v66
    %v167 = vunpack.c.h.b16 %v66
    %v168 = vunpack.c.l.b16 %v67
    %v169 = vunpack.c.h.b16 %v67
    %v170 = vunpack.c.l.b16 %v68
    %v171 = vunpack.c.h.b16 %v68
    %v172 = vunpack.c.l.b16 %v69
    %v173 = vunpack.c.h.b16 %v69
    %v174 = vunpack.c.l.b16 %v70
    %v175 = vunpack.c.h.b16 %v70
    %v176 = vunpack.c.l.b16 %v71
    %v177 = vunpack.c.h.b16 %v71
    %v178 = vunpack.c.l.b16 %v72
    %v179 = vunpack.c.h.b16 %v72
    %v180 = vunpack.c.l.b16 %v73
    %v181 = vunpack.c.h.b16 %v73
    %v182 = vpack.c.b16 %v120, %v118
    %v183 = vpack.c.b16 %v121, %v119
    %v184 = vpack.c.b16 %v124, %v122
    %v185 = vpack.c.b16 %v125, %v123
    %v186 = vpack.c.b16 %v128, %v126
    %v187 = vpack.c.b16 %v129, %v127
    %v188 = vpack.c.b16 %v132, %v130
    %v189 = vpack.c.b16 %v133, %v131
    %v190 = vpack.c.b16 %v136, %v134
    %v191 = vpack.c.b16 %v137, %v135
    %v192 = vpack.c.b16 %v140, %v138
    %v193 = vpack.c.b16 %v141, %v139
    %v194 = vpack.c.b16 %v144, %v142
    %v195 = vpack.c.b16 %v145, %v143
    %v196 = vpack.c.b16 %v148, %v146
    %v197 = vpack.c.b16 %v149, %v147
    %v198 = vpack.c.b16 %v152, %v150
    %v199 = vpack.c.b16 %v153, %v151
    %v200 = vpack.c.b16 %v156, %v154
    %v201 = vpack.c.b16 %v157, %v155
    %v202 = vpack.c.b16 %v160, %v158
    %v203 = vpack.c.b16 %v161, %v159
    %v204 = vpack.c.b16 %v164, %v162
    %v205 = vpack.c.b16 %v165, %v163
    %v206 = vpack.c.b16 %v168, %v166
    %v207 = vpack.c.b16 %v169, %v167
    %v208 = vpack.c.b16 %v172, %v170
    %v209 = vpack.c.b16 %v173, %v171
    %v210 = vpack.c.b16 %v176, %v174
    %v211 = vpack.c.b16 %v177, %v175
    %v212 = vpack.c.b16 %v180, %v178
    %v213 = vpack.c.b16 %v181, %v179
    %246 = vmatprep.subr.bf16.mxu0 %v197
    %247 = vmatpush1.bf16.msra.mxu0 %v196
    %248 = vmatprep.subr.bf16.mxu0 %v195
    %249 = vmatpush1.bf16.msra.mxu0 %v194
    %250 = vmatprep.subr.bf16.mxu0 %v193
    %251 = vmatpush1.bf16.msra.mxu0 %v192
    %252 = vmatprep.subr.bf16.mxu0 %v191
    %253 = vmatpush1.bf16.msra.mxu0 %v190
    %254 = vmatprep.subr.bf16.mxu0 %v189
    %255 = vmatpush1.bf16.msra.mxu0 %v188
    %256 = vmatprep.subr.bf16.mxu0 %v187
    %257 = vmatpush1.bf16.msra.mxu0 %v186
    %258 = vmatprep.subr.bf16.mxu0 %v185
    %259 = vmatpush1.bf16.msra.mxu0 %v184
    %260 = vmatprep.subr.bf16.mxu0 %v183
    %261 = vmatpush1.bf16.msra.mxu0 %v182
    %262 = vmatprep.subr.bf16.mxu0 %v213
    %263 = vmatpush2.bf16.msra.mxu0 %v212
    %264 = vmatprep.subr.bf16.mxu0 %v211
    %265 = vmatpush2.bf16.msra.mxu0 %v210
    %266 = vmatprep.subr.bf16.mxu0 %v209
    %267 = vmatpush2.bf16.msra.mxu0 %v208
    %268 = vmatprep.subr.bf16.mxu0 %v207
    %269 = vmatpush2.bf16.msra.mxu0 %v206
    %270 = vmatprep.subr.bf16.mxu0 %v205
    %271 = vmatpush2.bf16.msra.mxu0 %v204
    %272 = vmatprep.subr.bf16.mxu0 %v203
    %273 = vmatpush2.bf16.msra.mxu0 %v202
    %274 = vmatprep.subr.bf16.mxu0 %v201
    %275 = vmatpush2.bf16.msra.mxu0 %v200
    %276 = vmatprep.subr.bf16.mxu0 %v199
    %277 = vmatpush2.bf16.msra.mxu0 %v198
    %278 = vmatprep.mubr.bf16.mxu0 %v41
    %279 = vmatmul.mubr.bf16.gmra.mxu0 %v40
    %v280 = vpop.f32.mrf.mxu0
    %v281 = vadd.f32 %v79, %v280
    %v282 = vpop.f32.mrf.mxu0
    %v283 = vadd.f32 %v83, %v282
    %v284 = vpop.f32.mrf.mxu0
    %v285 = vpop.f32.mrf.mxu0
    %286 = vdwg.mxu0
    %v287 = vmax.f32 %v281, 0.0
    %v288 = vmax.f32 %v283, 0.0
    %v289 = vpack.c.bf16 %v287, %v287
    %v290 = vpack.c.bf16 %v288, %v288
    %v291 = vld [vmem:[%s3] sm:$0xff]
    %v292 = vld [vmem:[%s3 + $0x8] sm:$0xff]
    %v293 = vld [vmem:[%s3 + $0x10] sm:$0xff]
    %v294 = vld [vmem:[%s3 + $0x18] sm:$0xff]
    %v295 = vld [vmem:[%s3 + $0x20] sm:$0xff]
    %v296 = vld [vmem:[%s3 + $0x28] sm:$0xff]
    %v297 = vld [vmem:[%s3 + $0x30] sm:$0xff]
    %v298 = vld [vmem:[%s3 + $0x38] sm:$0xff]
    %v299 = vld [vmem:[%s3 + $0x40] sm:$0xff]
    %v300 = vld [vmem:[%s3 + $0x48] sm:$0xff]
    %v301 = vld [vmem:[%s3 + $0x50] sm:$0xff]
    %v302 = vld [vmem:[%s3 + $0x58] sm:$0xff]
    %v303 = vld [vmem:[%s3 + $0x60] sm:$0xff]
    %v304 = vld [vmem:[%s3 + $0x68] sm:$0xff]
    %v305 = vld [vmem:[%s3 + $0x70] sm:$0xff]
    %v306 = vld [vmem:[%s3 + $0x78] sm:$0xff]
    %v307 = vld [vmem:[%s3 + $0x80] sm:$0xff]
    %v308 = vld [vmem:[%s3 + $0x88] sm:$0xff]
    %v309 = vld [vmem:[%s3 + $0x90] sm:$0xff]
    %v310 = vld [vmem:[%s3 + $0x98] sm:$0xff]
    %v311 = vld [vmem:[%s3 + $0xa0] sm:$0xff]
    %v312 = vld [vmem:[%s3 + $0xa8] sm:$0xff]
    %v313 = vld [vmem:[%s3 + $0xb0] sm:$0xff]
    %v314 = vld [vmem:[%s3 + $0xb8] sm:$0xff]
    %v315 = vld [vmem:[%s3 + $0xc0] sm:$0xff]
    %v316 = vld [vmem:[%s3 + $0xc8] sm:$0xff]
    %v317 = vld [vmem:[%s3 + $0xd0] sm:$0xff]
    %v318 = vld [vmem:[%s3 + $0xd8] sm:$0xff]
    %v319 = vld [vmem:[%s3 + $0xe0] sm:$0xff]
    %v320 = vld [vmem:[%s3 + $0xe8] sm:$0xff]
    %v321 = vld [vmem:[%s3 + $0xf0] sm:$0xff]
    %v322 = vld [vmem:[%s3 + $0xf8] sm:$0xff]
    %v323 = vld [vmem:[%s4] sm:$0x3]
    %v325 = vlaneseq
    %v326 = vshrl.u32 %v325, 7
    %v327 = vsub.s32 0, %v326
    %v328 = vrot.slane %v323, %v327
    %v329 = vlaneseq
    %v330 = vshrl.u32 %v329, 7
    %v331 = vsub.s32 1, %v330
    %v332 = vrot.slane %v323, %v331
    %v367 = vunpack.c.l.b16 %v291
    %v368 = vunpack.c.h.b16 %v291
    %v369 = vunpack.c.l.b16 %v292
    %v370 = vunpack.c.h.b16 %v292
    %v371 = vunpack.c.l.b16 %v293
    %v372 = vunpack.c.h.b16 %v293
    %v373 = vunpack.c.l.b16 %v294
    %v374 = vunpack.c.h.b16 %v294
    %v375 = vunpack.c.l.b16 %v295
    %v376 = vunpack.c.h.b16 %v295
    %v377 = vunpack.c.l.b16 %v296
    %v378 = vunpack.c.h.b16 %v296
    %v379 = vunpack.c.l.b16 %v297
    %v380 = vunpack.c.h.b16 %v297
    %v381 = vunpack.c.l.b16 %v298
    %v382 = vunpack.c.h.b16 %v298
    %v383 = vunpack.c.l.b16 %v299
    %v384 = vunpack.c.h.b16 %v299
    %v385 = vunpack.c.l.b16 %v300
    %v386 = vunpack.c.h.b16 %v300
    %v387 = vunpack.c.l.b16 %v301
    %v388 = vunpack.c.h.b16 %v301
    %v389 = vunpack.c.l.b16 %v302
    %v390 = vunpack.c.h.b16 %v302
    %v391 = vunpack.c.l.b16 %v303
    %v392 = vunpack.c.h.b16 %v303
    %v393 = vunpack.c.l.b16 %v304
    %v394 = vunpack.c.h.b16 %v304
    %v395 = vunpack.c.l.b16 %v305
    %v396 = vunpack.c.h.b16 %v305
    %v397 = vunpack.c.l.b16 %v306
    %v398 = vunpack.c.h.b16 %v306
    %v399 = vunpack.c.l.b16 %v307
    %v400 = vunpack.c.h.b16 %v307
    %v401 = vunpack.c.l.b16 %v308
    %v402 = vunpack.c.h.b16 %v308
    %v403 = vunpack.c.l.b16 %v309
    %v404 = vunpack.c.h.b16 %v309
    %v405 = vunpack.c.l.b16 %v310
    %v406 = vunpack.c.h.b16 %v310
    %v407 = vunpack.c.l.b16 %v311
    %v408 = vunpack.c.h.b16 %v311
    %v409 = vunpack.c.l.b16 %v312
    %v410 = vunpack.c.h.b16 %v312
    %v411 = vunpack.c.l.b16 %v313
    %v412 = vunpack.c.h.b16 %v313
    %v413 = vunpack.c.l.b16 %v314
    %v414 = vunpack.c.h.b16 %v314
    %v415 = vunpack.c.l.b16 %v315
    %v416 = vunpack.c.h.b16 %v315
    %v417 = vunpack.c.l.b16 %v316
    %v418 = vunpack.c.h.b16 %v316
    %v419 = vunpack.c.l.b16 %v317
    %v420 = vunpack.c.h.b16 %v317
    %v421 = vunpack.c.l.b16 %v318
    %v422 = vunpack.c.h.b16 %v318
    %v423 = vunpack.c.l.b16 %v319
    %v424 = vunpack.c.h.b16 %v319
    %v425 = vunpack.c.l.b16 %v320
    %v426 = vunpack.c.h.b16 %v320
    %v427 = vunpack.c.l.b16 %v321
    %v428 = vunpack.c.h.b16 %v321
    %v429 = vunpack.c.l.b16 %v322
    %v430 = vunpack.c.h.b16 %v322
    %v431 = vpack.c.b16 %v369, %v367
    %v432 = vpack.c.b16 %v370, %v368
    %v433 = vpack.c.b16 %v373, %v371
    %v434 = vpack.c.b16 %v374, %v372
    %v435 = vpack.c.b16 %v377, %v375
    %v436 = vpack.c.b16 %v378, %v376
    %v437 = vpack.c.b16 %v381, %v379
    %v438 = vpack.c.b16 %v382, %v380
    %v439 = vpack.c.b16 %v385, %v383
    %v440 = vpack.c.b16 %v386, %v384
    %v441 = vpack.c.b16 %v389, %v387
    %v442 = vpack.c.b16 %v390, %v388
    %v443 = vpack.c.b16 %v393, %v391
    %v444 = vpack.c.b16 %v394, %v392
    %v445 = vpack.c.b16 %v397, %v395
    %v446 = vpack.c.b16 %v398, %v396
    %v447 = vpack.c.b16 %v401, %v399
    %v448 = vpack.c.b16 %v402, %v400
    %v449 = vpack.c.b16 %v405, %v403
    %v450 = vpack.c.b16 %v406, %v404
    %v451 = vpack.c.b16 %v409, %v407
    %v452 = vpack.c.b16 %v410, %v408
    %v453 = vpack.c.b16 %v413, %v411
    %v454 = vpack.c.b16 %v414, %v412
    %v455 = vpack.c.b16 %v417, %v415
    %v456 = vpack.c.b16 %v418, %v416
    %v457 = vpack.c.b16 %v421, %v419
    %v458 = vpack.c.b16 %v422, %v420
    %v459 = vpack.c.b16 %v425, %v423
    %v460 = vpack.c.b16 %v426, %v424
    %v461 = vpack.c.b16 %v429, %v427
    %v462 = vpack.c.b16 %v430, %v428
    %495 = vmatprep.subr.bf16.mxu0 %v446
    %496 = vmatpush1.bf16.msra.mxu0 %v445
    %497 = vmatprep.subr.bf16.mxu0 %v444
    %498 = vmatpush1.bf16.msra.mxu0 %v443
    %499 = vmatprep.subr.bf16.mxu0 %v442
    %500 = vmatpush1.bf16.msra.mxu0 %v441
    %501 = vmatprep.subr.bf16.mxu0 %v440
    %502 = vmatpush1.bf16.msra.mxu0 %v439
    %503 = vmatprep.subr.bf16.mxu0 %v438
    %504 = vmatpush1.bf16.msra.mxu0 %v437
    %505 = vmatprep.subr.bf16.mxu0 %v436
    %506 = vmatpush1.bf16.msra.mxu0 %v435
    %507 = vmatprep.subr.bf16.mxu0 %v434
    %508 = vmatpush1.bf16.msra.mxu0 %v433
    %509 = vmatprep.subr.bf16.mxu0 %v432
    %510 = vmatpush1.bf16.msra.mxu0 %v431
    %511 = vmatprep.subr.bf16.mxu0 %v462
    %512 = vmatpush2.bf16.msra.mxu0 %v461
    %513 = vmatprep.subr.bf16.mxu0 %v460
    %514 = vmatpush2.bf16.msra.mxu0 %v459
    %515 = vmatprep.subr.bf16.mxu0 %v458
    %516 = vmatpush2.bf16.msra.mxu0 %v457
    %517 = vmatprep.subr.bf16.mxu0 %v456
    %518 = vmatpush2.bf16.msra.mxu0 %v455
    %519 = vmatprep.subr.bf16.mxu0 %v454
    %520 = vmatpush2.bf16.msra.mxu0 %v453
    %521 = vmatprep.subr.bf16.mxu0 %v452
    %522 = vmatpush2.bf16.msra.mxu0 %v451
    %523 = vmatprep.subr.bf16.mxu0 %v450
    %524 = vmatpush2.bf16.msra.mxu0 %v449
    %525 = vmatprep.subr.bf16.mxu0 %v448
    %526 = vmatpush2.bf16.msra.mxu0 %v447
    %527 = vmatprep.mubr.bf16.mxu0 %v290
    %528 = vmatmul.mubr.bf16.gmra.mxu0 %v289
    %v529 = vpop.f32.mrf.mxu0
    %v530 = vadd.f32 %v328, %v529
    %v531 = vpop.f32.mrf.mxu0
    %v532 = vadd.f32 %v332, %v531
    %v533 = vpop.f32.mrf.mxu0
    %v534 = vpop.f32.mrf.mxu0
    %535 = vdwg.mxu0
    %v536 = vmul.f32 %v530, %v530
    %v537 = vmul.f32 %v532, %v532
    %vm538 = vcmask 1041408
    %v539 = vsel %vm538, %v536, 0.0
    %v540 = vsel %vm538, %v537, 0.0
    %v541 = vadd.f32 %v539, %v540
    %542 = vadd.xlane.f32.xlu0 %v541
    %v543 = vpop.xlane.xlu0 %542
    %v544 = vrsqrt.pop %v543
    %v545 = vpack.c.bf16 %v530, %v530
    %v546 = vpack.c.bf16 %v532, %v532
    %v547 = vld [vmem:[%s5] sm:$0xf]
    %v548 = vld [vmem:[%s5 + $0x4] sm:$0xf]
    %v549 = vld [vmem:[%s5 + $0x8] sm:$0xf]
    %v550 = vld [vmem:[%s5 + $0xc] sm:$0xf]
    %v551 = vld [vmem:[%s5 + $0x10] sm:$0xf]
    %v552 = vld [vmem:[%s5 + $0x14] sm:$0xf]
    %v553 = vld [vmem:[%s5 + $0x18] sm:$0xf]
    %v554 = vld [vmem:[%s5 + $0x1c] sm:$0xf]
    %v555 = vld [vmem:[%s5 + $0x20] sm:$0xf]
    %v556 = vld [vmem:[%s5 + $0x24] sm:$0xf]
    %v557 = vld [vmem:[%s5 + $0x28] sm:$0xf]
    %v558 = vld [vmem:[%s5 + $0x2c] sm:$0xf]
    %v559 = vld [vmem:[%s5 + $0x30] sm:$0xf]
    %v560 = vld [vmem:[%s5 + $0x34] sm:$0xf]
    %v561 = vld [vmem:[%s5 + $0x38] sm:$0xf]
    %v562 = vld [vmem:[%s5 + $0x3c] sm:$0xf]
    %v563 = vld [vmem:[%s5 + $0x40] sm:$0xf]
    %v564 = vld [vmem:[%s5 + $0x44] sm:$0xf]
    %v565 = vld [vmem:[%s5 + $0x48] sm:$0xf]
    %v566 = vld [vmem:[%s5 + $0x4c] sm:$0xf]
    %v567 = vld [vmem:[%s5 + $0x50] sm:$0xf]
    %v568 = vld [vmem:[%s5 + $0x54] sm:$0xf]
    %v569 = vld [vmem:[%s5 + $0x58] sm:$0xf]
    %v570 = vld [vmem:[%s5 + $0x5c] sm:$0xf]
    %v571 = vld [vmem:[%s5 + $0x60] sm:$0xf]
    %v572 = vld [vmem:[%s5 + $0x64] sm:$0xf]
    %v573 = vld [vmem:[%s5 + $0x68] sm:$0xf]
    %v574 = vld [vmem:[%s5 + $0x6c] sm:$0xf]
    %v575 = vld [vmem:[%s5 + $0x70] sm:$0xf]
    %v576 = vld [vmem:[%s5 + $0x74] sm:$0xf]
    %v577 = vld [vmem:[%s5 + $0x78] sm:$0xf]
    %v578 = vld [vmem:[%s5 + $0x7c] sm:$0xf]
    %v611 = vunpack.c.l.b16 %v547
    %v612 = vunpack.c.l.b16 %v548
    %v613 = vunpack.c.l.b16 %v549
    %v614 = vunpack.c.l.b16 %v550
    %v615 = vunpack.c.l.b16 %v551
    %v616 = vunpack.c.l.b16 %v552
    %v617 = vunpack.c.l.b16 %v553
    %v618 = vunpack.c.l.b16 %v554
    %v619 = vunpack.c.l.b16 %v555
    %v620 = vunpack.c.l.b16 %v556
    %v621 = vunpack.c.l.b16 %v557
    %v622 = vunpack.c.l.b16 %v558
    %v623 = vunpack.c.l.b16 %v559
    %v624 = vunpack.c.l.b16 %v560
    %v625 = vunpack.c.l.b16 %v561
    %v626 = vunpack.c.l.b16 %v562
    %v627 = vunpack.c.l.b16 %v563
    %v628 = vunpack.c.l.b16 %v564
    %v629 = vunpack.c.l.b16 %v565
    %v630 = vunpack.c.l.b16 %v566
    %v631 = vunpack.c.l.b16 %v567
    %v632 = vunpack.c.l.b16 %v568
    %v633 = vunpack.c.l.b16 %v569
    %v634 = vunpack.c.l.b16 %v570
    %v635 = vunpack.c.l.b16 %v571
    %v636 = vunpack.c.l.b16 %v572
    %v637 = vunpack.c.l.b16 %v573
    %v638 = vunpack.c.l.b16 %v574
    %v639 = vunpack.c.l.b16 %v575
    %v640 = vunpack.c.l.b16 %v576
    %v641 = vunpack.c.l.b16 %v577
    %v642 = vunpack.c.l.b16 %v578
    %v643 = vpack.c.b16 %v612, %v611
    %v644 = vpack.c.b16 %v614, %v613
    %v645 = vpack.c.b16 %v616, %v615
    %v646 = vpack.c.b16 %v618, %v617
    %v647 = vpack.c.b16 %v620, %v619
    %v648 = vpack.c.b16 %v622, %v621
    %v649 = vpack.c.b16 %v624, %v623
    %v650 = vpack.c.b16 %v626, %v625
    %v651 = vpack.c.b16 %v628, %v627
    %v652 = vpack.c.b16 %v630, %v629
    %v653 = vpack.c.b16 %v632, %v631
    %v654 = vpack.c.b16 %v634, %v633
    %v655 = vpack.c.b16 %v636, %v635
    %v656 = vpack.c.b16 %v638, %v637
    %v657 = vpack.c.b16 %v640, %v639
    %v658 = vpack.c.b16 %v642, %v641
    %675 = vmatprep.subr.bf16.mxu0 0
    %676 = vmatpush1.bf16.msra.mxu0 %v650
    %677 = vmatprep.subr.bf16.mxu0 0
    %678 = vmatpush1.bf16.msra.mxu0 %v649
    %679 = vmatprep.subr.bf16.mxu0 0
    %680 = vmatpush1.bf16.msra.mxu0 %v648
    %681 = vmatprep.subr.bf16.mxu0 0
    %682 = vmatpush1.bf16.msra.mxu0 %v647
    %683 = vmatprep.subr.bf16.mxu0 0
    %684 = vmatpush1.bf16.msra.mxu0 %v646
    %685 = vmatprep.subr.bf16.mxu0 0
    %686 = vmatpush1.bf16.msra.mxu0 %v645
    %687 = vmatprep.subr.bf16.mxu0 0
    %688 = vmatpush1.bf16.msra.mxu0 %v644
    %689 = vmatprep.subr.bf16.mxu0 0
    %690 = vmatpush1.bf16.msra.mxu0 %v643
    %691 = vmatprep.subr.bf16.mxu0 0
    %692 = vmatpush2.bf16.msra.mxu0 %v658
    %693 = vmatprep.subr.bf16.mxu0 0
    %694 = vmatpush2.bf16.msra.mxu0 %v657
    %695 = vmatprep.subr.bf16.mxu0 0
    %696 = vmatpush2.bf16.msra.mxu0 %v656
    %697 = vmatprep.subr.bf16.mxu0 0
    %698 = vmatpush2.bf16.msra.mxu0 %v655
    %699 = vmatprep.subr.bf16.mxu0 0
    %700 = vmatpush2.bf16.msra.mxu0 %v654
    %701 = vmatprep.subr.bf16.mxu0 0
    %702 = vmatpush2.bf16.msra.mxu0 %v653
    %703 = vmatprep.subr.bf16.mxu0 0
    %704 = vmatpush2.bf16.msra.mxu0 %v652
    %705 = vmatprep.subr.bf16.mxu0 0
    %706 = vmatpush2.bf16.msra.mxu0 %v651
    %707 = vmatprep.mubr.bf16.mxu0 %v546
    %708 = vmatmul.mubr.bf16.gmra.mxu0 %v545
    %v709 = vpop.f32.mrf.mxu0
    %v710 = vadd.f32 0.0, %v709
    %v711 = vpop.f32.mrf.mxu0
    %v712 = vpop.f32.mrf.mxu0
    %v713 = vpop.f32.mrf.mxu0
    %714 = vdwg.mxu0
    %v715 = vmul.f32 %v710, %v544
    %v716 = vld [vmem:[%s6] sm:$0x1]
    %v718 = vlaneseq
    %v719 = vshrl.u32 %v718, 7
    %v720 = vsub.s32 0, %v719
    %v721 = vrot.slane %v716, %v720
    %v723 = vmul.f32 %v715, %v721
    %724 = vst [vmem:[#allocation2] sm:$0x3] %v723
    // Predicated region
    $region30: #{instructor_forward.5} parent=1 // pred_check
      _
    $region31: #{instructor_forward.5} parent=1 // pred_check_branch
      %726 = sbr.rel (0) target = $region33
    $region32: #{instructor_forward.5} parent=1 // pred_region
      %s728 = ssub.s32 32, 32
      %729 = vsyncadd [#allocation3], %s728
      %s731 = sshll.u32 [#allocation2], 4
      %s732 = int_to_ptr.vmem [resolvable:$true] %s731
      %734 = dma.vmem_to_hbm [thread:$0]  %s732, 32, %s7, [#allocation3]
    $region33: #{instructor_forward.5} parent=1 // pred_fallthru
      _
    // Predicated region
    $region34: #{instructor_forward.5} parent=1 // pred_check
      _
    $region35: #{instructor_forward.5} parent=1 // pred_check_branch
      %736 = sbr.rel (0) target = $region37
    $region36: #{instructor_forward.5} parent=1 // pred_region
      %737 = dma.done [#allocation3], 32
    $region37: #{instructor_forward.5} parent=1 // pred_fallthru
      _
    %738 = vsyncpa [#allocation3], 1

// kernel: instructor_forward.4
$region0: #{instructor_forward.4}
  #allocation0 [shape = 'u32[]', space=smem, size = 0x4, offset = 0x4, fixed_abs, tag = 'smem constant byte address 0x4 - core index']
  #allocation1 [shape = 'u32[144,128]{1,0:T(1,128)}', space=vmem, size = 0x12000, scoped, tag = 'internal scratch']
  #allocation2 [shape = 'f32[8,256]{1,0:T(8,128)}', space=vmem, size = 0x2000, scoped, tag = 'scratch operand']
  #allocation3 [shape = 'bf16[8,256]{1,0:T(8,128)(2,1)}', space=vmem, size = 0x1000, scoped, tag = 'scratch operand']
  %s0 = inlined_call_operand.vmem [shape: f32[8,256], index: 0, kind: input, shape index: {}, may-alias: {0,13}]
  %s1 = inlined_call_operand.vmem [shape: bf16[2,256,768], index: 1, kind: input, shape index: {}]
  %s2 = inlined_call_operand.vmem [shape: f32[2,1,768], index: 2, kind: input, shape index: {}]
  %s3 = inlined_call_operand.hbm [shape: bf16[2,256,256], index: 3, kind: input, shape index: {}]
  %s4 = inlined_call_operand.vmem [shape: f32[2,1,256], index: 4, kind: input, shape index: {}]
  %s5 = inlined_call_operand.vmem [shape: f32[2,1,256], index: 5, kind: input, shape index: {}]
  %s6 = inlined_call_operand.vmem [shape: f32[2,1,256], index: 6, kind: input, shape index: {}]
  %s7 = inlined_call_operand.hbm [shape: bf16[2,256,256], index: 7, kind: input, shape index: {}]
  %s8 = inlined_call_operand.vmem [shape: f32[2,1,256], index: 8, kind: input, shape index: {}]
  %s9 = inlined_call_operand.hbm [shape: bf16[2,256,256], index: 9, kind: input, shape index: {}]
  %s10 = inlined_call_operand.vmem [shape: f32[2,1,256], index: 10, kind: input, shape index: {}]
  %s11 = inlined_call_operand.vmem [shape: f32[2,1,256], index: 11, kind: input, shape index: {}]
  %s12 = inlined_call_operand.vmem [shape: f32[2,1,256], index: 12, kind: input, shape index: {}]
  %s13 = inlined_call_operand.vmem [shape: f32[8,256], index: 13, kind: output, shape index: {}, may-alias: {0,13}]
  %s14 = sld [smem:[#allocation0]]
  $region105: #{instructor_forward.4} parent=0
    _
  %s16 = ssub.s32 1, %s14
  %s17 = scalar_select 0, %s16, %s14
  $region1: #{instructor_forward.4} parent=0
    #allocation4 [shape = 'u8[262144]{0}', space=vmem, size = 0x40000, scoped, tag = 'input window, operand 3']
    #allocation5 [shape = 's32[2]{0}', space=sflag, size = 0x8, scoped, tag = 'scoped memory for instructor_forward.4']
    #allocation6 [shape = 'u8[262144]{0}', space=vmem, size = 0x40000, scoped, tag = 'input window, operand 7']
    #allocation7 [shape = 's32[2]{0}', space=sflag, size = 0x8, scoped, tag = 'scoped memory for instructor_forward.4']
    #allocation8 [shape = 'u8[262144]{0}', space=vmem, size = 0x40000, scoped, tag = 'input window, operand 9']
    %18 = vsyncpa [#allocation5], 0
    %s19 = scalar_lea.sflag [#allocation5], 1
    %20 = vsyncpa %s19, 0
    %21 = vsyncpa [#allocation7], 0
    %s22 = scalar_lea.sflag [#allocation7], 1
    %23 = vsyncpa %s22, 0
    loop: start=0, step=1, limit=4
    $region2: #{instructor_forward.4} parent=1 // loop_pre_header
      _
    $region3: #{instructor_forward.4} parent=1 // loop_header
      %s25 = sphi 0, %s29
      %p26 = scmp.ge.s32.totalorder %s25, 4
      %s32 = sphi 0, %s44
      %s33 = sphi 0, %s40
      %s34 = sphi 0, %s32
      %s35 = sphi 0, %s33
      %s36 = sphi 0, %s34
      %s37 = sphi 0, %s35
      %s47 = sphi 0, %s49
      %s50 = sphi 0, %s47
      %s51 = sphi 0, %s50
      %s67 = sphi 0, %s51
      %s73 = sphi 0, %s75
      %s76 = sphi 0, %s73
      %s77 = sphi 0, %s76
      %s93 = sphi 0, %s77
      %s99 = sphi 0, %s101
      %s102 = sphi 0, %s99
      %s103 = sphi 0, %s102
      %s119 = sphi 0, %s103
      %s125 = sphi 0, %s127
      %s128 = sphi 0, %s125
      %s129 = sphi 0, %s128
      %s145 = sphi 0, %s129
      %s151 = sphi 0, %s153
      %s154 = sphi 0, %s151
      %s155 = sphi 0, %s154
      %s171 = sphi 0, %s155
      %s177 = sphi 0, %s179
      %s180 = sphi 0, %s177
      %s181 = sphi 0, %s180
      %s197 = sphi 0, %s181
      %s203 = sphi 0, %s205
      %s206 = sphi 0, %s203
      %s207 = sphi 0, %s206
      %s223 = sphi 0, %s207
      %s229 = sphi 0, %s231
      %s232 = sphi 0, %s229
      %s233 = sphi 0, %s232
      %s249 = sphi 0, %s233
      %s255 = sphi 0, %s257
      %s258 = sphi 0, %s255
      %s259 = sphi 0, %s258
      %s275 = sphi 0, %s259
      %s281 = sphi 0, %s283
      %s284 = sphi 0, %s281
      %s285 = sphi 0, %s284
      %s301 = sphi 0, %s285
      %s307 = sphi 0, %s309
      %s310 = sphi 0, %s307
      %s311 = sphi 0, %s310
      %s327 = sphi 0, %s311
      %s333 = sphi 0, %s335
      %s336 = sphi 0, %s333
      %s337 = sphi 0, %s336
      %s353 = sphi 0, %s337
      %s359 = sphi 0, %s361
      %s362 = sphi 0, %s359
      %s363 = sphi 0, %s362
      %s379 = sphi 0, %s363
      %s385 = sphi 0, %s387
      %s388 = sphi 0, %s385
      %s389 = sphi 0, %s388
      %s405 = sphi 0, %s389
    $region4: #{instructor_forward.4} parent=1 // loop_header_branch
      %28 = sbr.rel (%p26) target = $region8
    $region5: #{instructor_forward.4} parent=1 // loop_body
      %s30 = ssub.s32 %s25, 1
      %s31 = ssub.s32 %s25, 2
      %s38 = sadd.s32 1, %s33
      %p39 = scmp.ge.s32.totalorder %s38, 2
      %s40 = scalar_select %p39, 0, %s38
      %s41 = sadd.s32 1, %s32
      %s42 = scalar_select %p39, %s41, %s32
      %p43 = scmp.ge.s32.totalorder %s42, 1
      %s44 = scalar_select %p43, 0, %s42
      %s45 = ssub.s32 %s32, %s44
      %p46 = scmp.eq.s32.totalorder %s45, 0
      %s48 = sadd.s32 %s47, 1
      %s49 = scalar_select %p46, %s47, %s48
      %p52 = pneg %p46
      %p53 = scmp.eq.s32.totalorder %s25, 1
      %p54 = por %p52, %p53
      %p55 = scmp.ne.s32.totalorder %s47, %s50
      %p56 = scmp.eq.s32.totalorder %s25, 0
      %p57 = por %p55, %p56
      %p58 = scmp.ne.s32.totalorder %s47, %s50
      %p59 = scmp.eq.s32.totalorder %s30, 1
      %p60 = por %p58, %p59
      %p61 = scmp.ne.s32.totalorder %s50, %s51
      %p62 = scmp.eq.s32.totalorder %s30, 0
      %p63 = por %p61, %p62
      %p64 = scmp.ne.s32.totalorder %s50, %s51
      %p65 = scmp.eq.s32.totalorder %s31, 1
      %p66 = por %p64, %p65
      %p68 = scmp.ne.s32.totalorder %s51, %s67
      %p69 = scmp.eq.s32.totalorder %s31, 0
      %p70 = por %p68, %p69
      %s71 = ssub.s32 %s33, %s40
      %p72 = scmp.eq.s32.totalorder %s71, 0
      %s74 = sadd.s32 %s73, 1
      %s75 = scalar_select %p72, %s73, %s74
      %p78 = pneg %p72
      %p79 = scmp.eq.s32.totalorder %s25, 1
      %p80 = por %p78, %p79
      %p81 = scmp.ne.s32.totalorder %s73, %s76
      %p82 = scmp.eq.s32.totalorder %s25, 0
      %p83 = por %p81, %p82
      %p84 = scmp.ne.s32.totalorder %s73, %s76
      %p85 = scmp.eq.s32.totalorder %s30, 1
      %p86 = por %p84, %p85
      %p87 = scmp.ne.s32.totalorder %s76, %s77
      %p88 = scmp.eq.s32.totalorder %s30, 0
      %p89 = por %p87, %p88
      %p90 = scmp.ne.s32.totalorder %s76, %s77
      %p91 = scmp.eq.s32.totalorder %s31, 1
      %p92 = por %p90, %p91
      %p94 = scmp.ne.s32.totalorder %s77, %s93
      %p95 = scmp.eq.s32.totalorder %s31, 0
      %p96 = por %p94, %p95
      %s97 = ssub.s32 %s33, %s40
      %p98 = scmp.eq.s32.totalorder %s97, 0
      %s100 = sadd.s32 %s99, 1
      %s101 = scalar_select %p98, %s99, %s100
      %p104 = pneg %p98
      %p105 = scmp.eq.s32.totalorder %s25, 1
      %p106 = por %p104, %p105
      %p107 = scmp.ne.s32.totalorder %s99, %s102
      %p108 = scmp.eq.s32.totalorder %s25, 0
      %p109 = por %p107, %p108
      %p110 = scmp.ne.s32.totalorder %s99, %s102
      %p111 = scmp.eq.s32.totalorder %s30, 1
      %p112 = por %p110, %p111
      %p113 = scmp.ne.s32.totalorder %s102, %s103
      %p114 = scmp.eq.s32.totalorder %s30, 0
      %p115 = por %p113, %p114
      %p116 = scmp.ne.s32.totalorder %s102, %s103
      %p117 = scmp.eq.s32.totalorder %s31, 1
      %p118 = por %p116, %p117
      %p120 = scmp.ne.s32.totalorder %s103, %s119
      %p121 = scmp.eq.s32.totalorder %s31, 0
      %p122 = por %p120, %p121
      %s123 = ssub.s32 %s33, %s40
      %p124 = scmp.eq.s32.totalorder %s123, 0
      %s126 = sadd.s32 %s125, 1
      %s127 = scalar_select %p124, %s125, %s126
      %p130 = pneg %p124
      %p131 = scmp.eq.s32.totalorder %s25, 1
      %p132 = por %p130, %p131
      %p133 = scmp.ne.s32.totalorder %s125, %s128
      %p134 = scmp.eq.s32.totalorder %s25, 0
      %p135 = por %p133, %p134
      %p136 = scmp.ne.s32.totalorder %s125, %s128
      %p137 = scmp.eq.s32.totalorder %s30, 1
      %p138 = por %p136, %p137
      %p139 = scmp.ne.s32.totalorder %s128, %s129
      %p140 = scmp.eq.s32.totalorder %s30, 0
      %p141 = por %p139, %p140
      %p142 = scmp.ne.s32.totalorder %s128, %s129
      %p143 = scmp.eq.s32.totalorder %s31, 1
      %p144 = por %p142, %p143
      %p146 = scmp.ne.s32.totalorder %s129, %s145
      %p147 = scmp.eq.s32.totalorder %s31, 0
      %p148 = por %p146, %p147
      %s149 = ssub.s32 %s33, %s40
      %p150 = scmp.eq.s32.totalorder %s149, 0
      %s152 = sadd.s32 %s151, 1
      %s153 = scalar_select %p150, %s151, %s152
      %p156 = pneg %p150
      %p157 = scmp.eq.s32.totalorder %s25, 1
      %p158 = por %p156, %p157
      %p159 = scmp.ne.s32.totalorder %s151, %s154
      %p160 = scmp.eq.s32.totalorder %s25, 0
      %p161 = por %p159, %p160
      %p162 = scmp.ne.s32.totalorder %s151, %s154
      %p163 = scmp.eq.s32.totalorder %s30, 1
      %p164 = por %p162, %p163
      %p165 = scmp.ne.s32.totalorder %s154, %s155
      %p166 = scmp.eq.s32.totalorder %s30, 0
      %p167 = por %p165, %p166
      %p168 = scmp.ne.s32.totalorder %s154, %s155
      %p169 = scmp.eq.s32.totalorder %s31, 1
      %p170 = por %p168, %p169
      %p172 = scmp.ne.s32.totalorder %s155, %s171
      %p173 = scmp.eq.s32.totalorder %s31, 0
      %p174 = por %p172, %p173
      %s175 = ssub.s32 %s33, %s40
      %p176 = scmp.eq.s32.totalorder %s175, 0
      %s178 = sadd.s32 %s177, 1
      %s179 = scalar_select %p176, %s177, %s178
      %p182 = pneg %p176
      %p183 = scmp.eq.s32.totalorder %s25, 1
      %p184 = por %p182, %p183
      %p185 = scmp.ne.s32.totalorder %s177, %s180
      %p186 = scmp.eq.s32.totalorder %s25, 0
      %p187 = por %p185, %p186
      %p188 = scmp.ne.s32.totalorder %s177, %s180
      %p189 = scmp.eq.s32.totalorder %s30, 1
      %p190 = por %p188, %p189
      %p191 = scmp.ne.s32.totalorder %s180, %s181
      %p192 = scmp.eq.s32.totalorder %s30, 0
      %p193 = por %p191, %p192
      %p194 = scmp.ne.s32.totalorder %s180, %s181
      %p195 = scmp.eq.s32.totalorder %s31, 1
      %p196 = por %p194, %p195
      %p198 = scmp.ne.s32.totalorder %s181, %s197
      %p199 = scmp.eq.s32.totalorder %s31, 0
      %p200 = por %p198, %p199
      %s201 = ssub.s32 %s33, %s40
      %p202 = scmp.eq.s32.totalorder %s201, 0
      %s204 = sadd.s32 %s203, 1
      %s205 = scalar_select %p202, %s203, %s204
      %p208 = pneg %p202
      %p209 = scmp.eq.s32.totalorder %s25, 1
      %p210 = por %p208, %p209
      %p211 = scmp.ne.s32.totalorder %s203, %s206
      %p212 = scmp.eq.s32.totalorder %s25, 0
      %p213 = por %p211, %p212
      %p214 = scmp.ne.s32.totalorder %s203, %s206
      %p215 = scmp.eq.s32.totalorder %s30, 1
      %p216 = por %p214, %p215
      %p217 = scmp.ne.s32.totalorder %s206, %s207
      %p218 = scmp.eq.s32.totalorder %s30, 0
      %p219 = por %p217, %p218
      %p220 = scmp.ne.s32.totalorder %s206, %s207
      %p221 = scmp.eq.s32.totalorder %s31, 1
      %p222 = por %p220, %p221
      %p224 = scmp.ne.s32.totalorder %s207, %s223
      %p225 = scmp.eq.s32.totalorder %s31, 0
      %p226 = por %p224, %p225
      %s227 = ssub.s32 %s33, %s40
      %p228 = scmp.eq.s32.totalorder %s227, 0
      %s230 = sadd.s32 %s229, 1
      %s231 = scalar_select %p228, %s229, %s230
      %p234 = pneg %p228
      %p235 = scmp.eq.s32.totalorder %s25, 1
      %p236 = por %p234, %p235
      %p237 = scmp.ne.s32.totalorder %s229, %s232
      %p238 = scmp.eq.s32.totalorder %s25, 0
      %p239 = por %p237, %p238
      %p240 = scmp.ne.s32.totalorder %s229, %s232
      %p241 = scmp.eq.s32.totalorder %s30, 1
      %p242 = por %p240, %p241
      %p243 = scmp.ne.s32.totalorder %s232, %s233
      %p244 = scmp.eq.s32.totalorder %s30, 0
      %p245 = por %p243, %p244
      %p246 = scmp.ne.s32.totalorder %s232, %s233
      %p247 = scmp.eq.s32.totalorder %s31, 1
      %p248 = por %p246, %p247
      %p250 = scmp.ne.s32.totalorder %s233, %s249
      %p251 = scmp.eq.s32.totalorder %s31, 0
      %p252 = por %p250, %p251
      %s253 = ssub.s32 %s33, %s40
      %p254 = scmp.eq.s32.totalorder %s253, 0
      %s256 = sadd.s32 %s255, 1
      %s257 = scalar_select %p254, %s255, %s256
      %p260 = pneg %p254
      %p261 = scmp.eq.s32.totalorder %s25, 1
      %p262 = por %p260, %p261
      %p263 = scmp.ne.s32.totalorder %s255, %s258
      %p264 = scmp.eq.s32.totalorder %s25, 0
      %p265 = por %p263, %p264
      %p266 = scmp.ne.s32.totalorder %s255, %s258
      %p267 = scmp.eq.s32.totalorder %s30, 1
      %p268 = por %p266, %p267
      %p269 = scmp.ne.s32.totalorder %s258, %s259
      %p270 = scmp.eq.s32.totalorder %s30, 0
      %p271 = por %p269, %p270
      %p272 = scmp.ne.s32.totalorder %s258, %s259
      %p273 = scmp.eq.s32.totalorder %s31, 1
      %p274 = por %p272, %p273
      %p276 = scmp.ne.s32.totalorder %s259, %s275
      %p277 = scmp.eq.s32.totalorder %s31, 0
      %p278 = por %p276, %p277
      %s279 = ssub.s32 %s33, %s40
      %p280 = scmp.eq.s32.totalorder %s279, 0
      %s282 = sadd.s32 %s281, 1
      %s283 = scalar_select %p280, %s281, %s282
      %p286 = pneg %p280
      %p287 = scmp.eq.s32.totalorder %s25, 1
      %p288 = por %p286, %p287
      %p289 = scmp.ne.s32.totalorder %s281, %s284
      %p290 = scmp.eq.s32.totalorder %s25, 0
      %p291 = por %p289, %p290
      %p292 = scmp.ne.s32.totalorder %s281, %s284
      %p293 = scmp.eq.s32.totalorder %s30, 1
      %p294 = por %p292, %p293
      %p295 = scmp.ne.s32.totalorder %s284, %s285
      %p296 = scmp.eq.s32.totalorder %s30, 0
      %p297 = por %p295, %p296
      %p298 = scmp.ne.s32.totalorder %s284, %s285
      %p299 = scmp.eq.s32.totalorder %s31, 1
      %p300 = por %p298, %p299
      %p302 = scmp.ne.s32.totalorder %s285, %s301
      %p303 = scmp.eq.s32.totalorder %s31, 0
      %p304 = por %p302, %p303
      %s305 = ssub.s32 %s33, %s40
      %p306 = scmp.eq.s32.totalorder %s305, 0
      %s308 = sadd.s32 %s307, 1
      %s309 = scalar_select %p306, %s307, %s308
      %p312 = pneg %p306
      %p313 = scmp.eq.s32.totalorder %s25, 1
      %p314 = por %p312, %p313
      %p315 = scmp.ne.s32.totalorder %s307, %s310
      %p316 = scmp.eq.s32.totalorder %s25, 0
      %p317 = por %p315, %p316
      %p318 = scmp.ne.s32.totalorder %s307, %s310
      %p319 = scmp.eq.s32.totalorder %s30, 1
      %p320 = por %p318, %p319
      %p321 = scmp.ne.s32.totalorder %s310, %s311
      %p322 = scmp.eq.s32.totalorder %s30, 0
      %p323 = por %p321, %p322
      %p324 = scmp.ne.s32.totalorder %s310, %s311
      %p325 = scmp.eq.s32.totalorder %s31, 1
      %p326 = por %p324, %p325
      %p328 = scmp.ne.s32.totalorder %s311, %s327
      %p329 = scmp.eq.s32.totalorder %s31, 0
      %p330 = por %p328, %p329
      %s331 = ssub.s32 %s33, %s40
      %p332 = scmp.eq.s32.totalorder %s331, 0
      %s334 = sadd.s32 %s333, 1
      %s335 = scalar_select %p332, %s333, %s334
      %p338 = pneg %p332
      %p339 = scmp.eq.s32.totalorder %s25, 1
      %p340 = por %p338, %p339
      %p341 = scmp.ne.s32.totalorder %s333, %s336
      %p342 = scmp.eq.s32.totalorder %s25, 0
      %p343 = por %p341, %p342
      %p344 = scmp.ne.s32.totalorder %s333, %s336
      %p345 = scmp.eq.s32.totalorder %s30, 1
      %p346 = por %p344, %p345
      %p347 = scmp.ne.s32.totalorder %s336, %s337
      %p348 = scmp.eq.s32.totalorder %s30, 0
      %p349 = por %p347, %p348
      %p350 = scmp.ne.s32.totalorder %s336, %s337
      %p351 = scmp.eq.s32.totalorder %s31, 1
      %p352 = por %p350, %p351
      %p354 = scmp.ne.s32.totalorder %s337, %s353
      %p355 = scmp.eq.s32.totalorder %s31, 0
      %p356 = por %p354, %p355
      %s357 = ssub.s32 %s33, %s40
      %p358 = scmp.eq.s32.totalorder %s357, 0
      %s360 = sadd.s32 %s359, 1
      %s361 = scalar_select %p358, %s359, %s360
      %p364 = pneg %p358
      %p365 = scmp.eq.s32.totalorder %s25, 1
      %p366 = por %p364, %p365
      %p367 = scmp.ne.s32.totalorder %s359, %s362
      %p368 = scmp.eq.s32.totalorder %s25, 0
      %p369 = por %p367, %p368
      %p370 = scmp.ne.s32.totalorder %s359, %s362
      %p371 = scmp.eq.s32.totalorder %s30, 1
      %p372 = por %p370, %p371
      %p373 = scmp.ne.s32.totalorder %s362, %s363
      %p374 = scmp.eq.s32.totalorder %s30, 0
      %p375 = por %p373, %p374
      %p376 = scmp.ne.s32.totalorder %s362, %s363
      %p377 = scmp.eq.s32.totalorder %s31, 1
      %p378 = por %p376, %p377
      %p380 = scmp.ne.s32.totalorder %s363, %s379
      %p381 = scmp.eq.s32.totalorder %s31, 0
      %p382 = por %p380, %p381
      %s383 = ssub.s32 %s32, %s44
      %p384 = scmp.eq.s32.totalorder %s383, 0
      %s386 = sadd.s32 %s385, 1
      %s387 = scalar_select %p384, %s385, %s386
      %p390 = pneg %p384
      %p391 = scmp.eq.s32.totalorder %s25, 1
      %p392 = por %p390, %p391
      %p393 = scmp.ne.s32.totalorder %s385, %s388
      %p394 = scmp.eq.s32.totalorder %s25, 0
      %p395 = por %p393, %p394
      %p396 = scmp.ne.s32.totalorder %s385, %s388
      %p397 = scmp.eq.s32.totalorder %s30, 1
      %p398 = por %p396, %p397
      %p399 = scmp.ne.s32.totalorder %s388, %s389
      %p400 = scmp.eq.s32.totalorder %s30, 0
      %p401 = por %p399, %p400
      %p402 = scmp.ne.s32.totalorder %s388, %s389
      %p403 = scmp.eq.s32.totalorder %s31, 1
      %p404 = por %p402, %p403
      %p406 = scmp.ne.s32.totalorder %s389, %s405
      %p407 = scmp.eq.s32.totalorder %s31, 0
      %p408 = por %p406, %p407
      %p409 = scmp.le.s32.totalorder 1, %s25
      %p410 = scmp.lt.s32.totalorder %s25, 3
      %p411 = pnand %p409, %p410
      %p412 = pneg %p411
      // Predicated region
      $region9: #{instructor_forward.4} parent=5 // pred_check
        _
      $region10: #{instructor_forward.4} parent=5 // pred_check_branch
        %414 = sbr.rel (%p411) target = $region12
      $region11: #{instructor_forward.4} parent=5 // pred_region
        %s415 = ssub.s32 %s25, 1
        // Predicated region
        $region13: #{instructor_forward.4} parent=11 // pred_check
          %p416 = pneg %p63
        $region14: #{instructor_forward.4} parent=11 // pred_check_branch
          %418 = sbr.rel (%p416) target = $region16
        $region15: #{instructor_forward.4} parent=11 // pred_region
          %p419 = scmp.lt.s32.totalorder %s34, 0
          %s420 = scalar_select %p419, %s34, 0
          %s421 = smul.addr %s420, 2
          %s422 = smul.addr %s421, 8
          %s423 = scalar_lea.vmem %s0, %s422
        $region16: #{instructor_forward.4} parent=11 // pred_fallthru
          _
      $region12: #{instructor_forward.4} parent=5 // pred_fallthru
        _
      %p424 = scmp.lt.s32.totalorder %s25, 2
      // Predicated region
      $region17: #{instructor_forward.4} parent=5 // pred_check
        %p425 = pneg %p424
      $region18: #{instructor_forward.4} parent=5 // pred_check_branch
        %427 = sbr.rel (%p425) target = $region20
      $region19: #{instructor_forward.4} parent=5 // pred_region
        // Predicated region
        $region21: #{instructor_forward.4} parent=19 // pred_check
          %p428 = pneg %p83
        $region22: #{instructor_forward.4} parent=19 // pred_check_branch
          %430 = sbr.rel (%p428) target = $region24
        $region23: #{instructor_forward.4} parent=19 // pred_region
          %p431 = scmp.lt.s32.totalorder %s33, 1
          %s432 = scalar_select %p431, %s33, 1
          %s433 = smul.addr %s432, 192
          %s434 = smul.addr %s433, 4
          %s435 = scalar_lea.vmem %s1, %s434
        $region24: #{instructor_forward.4} parent=19 // pred_fallthru
          _
        // Predicated region
        $region25: #{instructor_forward.4} parent=19 // pred_check
          %p436 = pneg %p109
        $region26: #{instructor_forward.4} parent=19 // pred_check_branch
          %438 = sbr.rel (%p436) target = $region28
        $region27: #{instructor_forward.4} parent=19 // pred_region
          %p439 = scmp.lt.s32.totalorder %s33, 1
          %s440 = scalar_select %p439, %s33, 1
          %s441 = smul.addr %s440, 6
          %s442 = scalar_lea.vmem %s2, %s441
        $region28: #{instructor_forward.4} parent=19 // pred_fallthru
          _
        // Predicated region
        $region29: #{instructor_forward.4} parent=19 // pred_check
          %p443 = pneg %p135
        $region30: #{instructor_forward.4} parent=19 // pred_check_branch
          %445 = sbr.rel (%p443) target = $region32
        $region31: #{instructor_forward.4} parent=19 // pred_region
          %s446 = sand.u32 %s125, 1
          %s447 = scalar_lea.sflag [#allocation5], %s446
          %s448 = sand.u32 %s125, 1
          %s449 = smul.addr %s448, 256
          %s450 = scalar_lea.vmem [#allocation4], %s449
          %s452 = ssub.s32 4096, 4096
          %453 = vsyncadd %s447, %s452
          %s454 = smul.addr %s33, 64
          %s455 = smul.addr %s454, 64
          %s456 = scalar_lea.hbm %s3, %s455
          %s457 = sshll.u32 %s450, 4
          %s458 = int_to_ptr.vmem [resolvable:$true] %s457
          %463 = dma.hbm_to_vmem [thread:$0]  %s456, 4096, %s458, %s447, 128, 128, 8
        $region32: #{instructor_forward.4} parent=19 // pred_fallthru
          _
        // Predicated region
        $region33: #{instructor_forward.4} parent=19 // pred_check
          %p464 = pneg %p161
        $region34: #{instructor_forward.4} parent=19 // pred_check_branch
          %466 = sbr.rel (%p464) target = $region36
        $region35: #{instructor_forward.4} parent=19 // pred_region
          %p467 = scmp.lt.s32.totalorder %s33, 1
          %s468 = scalar_select %p467, %s33, 1
          %s469 = smul.addr %s468, 2
          %s470 = scalar_lea.vmem %s4, %s469
        $region36: #{instructor_forward.4} parent=19 // pred_fallthru
          _
        // Predicated region
        $region37: #{instructor_forward.4} parent=19 // pred_check
          %p471 = pneg %p187
        $region38: #{instructor_forward.4} parent=19 // pred_check_branch
          %473 = sbr.rel (%p471) target = $region40
        $region39: #{instructor_forward.4} parent=19 // pred_region
          %p474 = scmp.lt.s32.totalorder %s33, 1
          %s475 = scalar_select %p474, %s33, 1
          %s476 = smul.addr %s475, 2
          %s477 = scalar_lea.vmem %s5, %s476
        $region40: #{instructor_forward.4} parent=19 // pred_fallthru
          _
        // Predicated region
        $region41: #{instructor_forward.4} parent=19 // pred_check
          %p478 = pneg %p213
        $region42: #{instructor_forward.4} parent=19 // pred_check_branch
          %480 = sbr.rel (%p478) target = $region44
        $region43: #{instructor_forward.4} parent=19 // pred_region
          %p481 = scmp.lt.s32.totalorder %s33, 1
          %s482 = scalar_select %p481, %s33, 1
          %s483 = smul.addr %s482, 2
          %s484 = scalar_lea.vmem %s6, %s483
        $region44: #{instructor_forward.4} parent=19 // pred_fallthru
          _
        // Predicated region
        $region45: #{instructor_forward.4} parent=19 // pred_check
          %p485 = pneg %p239
        $region46: #{instructor_forward.4} parent=19 // pred_check_branch
          %487 = sbr.rel (%p485) target = $region48
        $region47: #{instructor_forward.4} parent=19 // pred_region
          %s488 = sand.u32 %s25, 1
          %s489 = scalar_lea.sflag [#allocation7], %s488
          %s490 = sand.u32 %s229, 1
          %s491 = smul.addr %s490, 256
          %s492 = scalar_lea.vmem [#allocation6], %s491
          %s494 = ssub.s32 4096, 4096
          %495 = vsyncadd %s489, %s494
          %s496 = smul.addr %s33, 64
          %s497 = smul.addr %s496, 64
          %s498 = scalar_lea.hbm %s7, %s497
          %s499 = sshll.u32 %s492, 4
          %s500 = int_to_ptr.vmem [resolvable:$true] %s499
          %505 = dma.hbm_to_vmem [thread:$0]  %s498, 4096, %s500, %s489, 128, 128, 8
        $region48: #{instructor_forward.4} parent=19 // pred_fallthru
          _
        // Predicated region
        $region49: #{instructor_forward.4} parent=19 // pred_check
          %p506 = pneg %p265
        $region50: #{instructor_forward.4} parent=19 // pred_check_branch
          %508 = sbr.rel (%p506) target = $region52
        $region51: #{instructor_forward.4} parent=19 // pred_region
          %p509 = scmp.lt.s32.totalorder %s33, 1
          %s510 = scalar_select %p509, %s33, 1
          %s511 = smul.addr %s510, 2
          %s512 = scalar_lea.vmem %s8, %s511
        $region52: #{instructor_forward.4} parent=19 // pred_fallthru
          _
        // Predicated region
        $region53: #{instructor_forward.4} parent=19 // pred_check
          %p513 = pneg %p291
        $region54: #{instructor_forward.4} parent=19 // pred_check_branch
          %515 = sbr.rel (%p513) target = $region56
        $region55: #{instructor_forward.4} parent=19 // pred_region
          %s516 = sand.u32 %s25, 1
          %s517 = scalar_lea.sflag [#allocation7], %s516
          %s518 = sand.u32 %s281, 1
          %s519 = smul.addr %s518, 256
          %s520 = scalar_lea.vmem [#allocation8], %s519
          %s522 = ssub.s32 4096, 4096
          %523 = vsyncadd %s517, %s522
          %s524 = smul.addr %s33, 64
          %s525 = smul.addr %s524, 64
          %s526 = scalar_lea.hbm %s9, %s525
          %s527 = sshll.u32 %s520, 4
          %s528 = int_to_ptr.vmem [resolvable:$true] %s527
          %533 = dma.hbm_to_vmem [thread:$0]  %s526, 4096, %s528, %s517, 128, 128, 8
        $region56: #{instructor_forward.4} parent=19 // pred_fallthru
          _
        // Predicated region
        $region57: #{instructor_forward.4} parent=19 // pred_check
          %p534 = pneg %p317
        $region58: #{instructor_forward.4} parent=19 // pred_check_branch
          %536 = sbr.rel (%p534) target = $region60
        $region59: #{instructor_forward.4} parent=19 // pred_region
          %p537 = scmp.lt.s32.totalorder %s33, 1
          %s538 = scalar_select %p537, %s33, 1
          %s539 = smul.addr %s538, 2
          %s540 = scalar_lea.vmem %s10, %s539
        $region60: #{instructor_forward.4} parent=19 // pred_fallthru
          _
        // Predicated region
        $region61: #{instructor_forward.4} parent=19 // pred_check
          %p541 = pneg %p343
        $region62: #{instructor_forward.4} parent=19 // pred_check_branch
          %543 = sbr.rel (%p541) target = $region64
        $region63: #{instructor_forward.4} parent=19 // pred_region
          %p544 = scmp.lt.s32.totalorder %s33, 1
          %s545 = scalar_select %p544, %s33, 1
          %s546 = smul.addr %s545, 2
          %s547 = scalar_lea.vmem %s11, %s546
        $region64: #{instructor_forward.4} parent=19 // pred_fallthru
          _
        // Predicated region
        $region65: #{instructor_forward.4} parent=19 // pred_check
          %p548 = pneg %p369
        $region66: #{instructor_forward.4} parent=19 // pred_check_branch
          %550 = sbr.rel (%p548) target = $region68
        $region67: #{instructor_forward.4} parent=19 // pred_region
          %p551 = scmp.lt.s32.totalorder %s33, 1
          %s552 = scalar_select %p551, %s33, 1
          %s553 = smul.addr %s552, 2
          %s554 = scalar_lea.vmem %s12, %s553
        $region68: #{instructor_forward.4} parent=19 // pred_fallthru
          _
      $region20: #{instructor_forward.4} parent=5 // pred_fallthru
        _
      %p555 = scmp.le.s32.totalorder 1, %s25
      %p556 = scmp.lt.s32.totalorder %s25, 3
      %p557 = pnand %p555, %p556
      %p558 = pneg %p557
      // Predicated region
      $region69: #{instructor_forward.4} parent=5 // pred_check
        _
      $region70: #{instructor_forward.4} parent=5 // pred_check_branch
        %560 = sbr.rel (%p557) target = $region72
      $region71: #{instructor_forward.4} parent=5 // pred_region
        %s561 = ssub.s32 %s25, 1
        %s562 = sand.u32 %s128, 1
        %s563 = scalar_lea.sflag [#allocation5], %s562
        %s564 = sand.u32 %s128, 1
        %s565 = smul.addr %s564, 256
        %s566 = scalar_lea.vmem [#allocation4], %s565
        // Predicated region
        $region73: #{instructor_forward.4} parent=71 // pred_check
          %p567 = pneg %p141
        $region74: #{instructor_forward.4} parent=71 // pred_check_branch
          %569 = sbr.rel (%p567) target = $region76
        $region75: #{instructor_forward.4} parent=71 // pred_region
          %570 = dma.done %s563, 4096
        $region76: #{instructor_forward.4} parent=71 // pred_fallthru
          _
        %s571 = sand.u32 %s30, 1
        %s572 = scalar_lea.sflag [#allocation7], %s571
        %s573 = sand.u32 %s232, 1
        %s574 = smul.addr %s573, 256
        %s575 = scalar_lea.vmem [#allocation6], %s574
        // Predicated region
        $region77: #{instructor_forward.4} parent=71 // pred_check
          %p576 = pneg %p245
        $region78: #{instructor_forward.4} parent=71 // pred_check_branch
          %578 = sbr.rel (%p576) target = $region80
        $region79: #{instructor_forward.4} parent=71 // pred_region
          %579 = dma.done %s572, 4096
        $region80: #{instructor_forward.4} parent=71 // pred_fallthru
          _
        %s580 = sand.u32 %s30, 1
        %s581 = scalar_lea.sflag [#allocation7], %s580
        %s582 = sand.u32 %s284, 1
        %s583 = smul.addr %s582, 256
        %s584 = scalar_lea.vmem [#allocation8], %s583
        // Predicated region
        $region81: #{instructor_forward.4} parent=71 // pred_check
          %p585 = pneg %p297
        $region82: #{instructor_forward.4} parent=71 // pred_check_branch
          %587 = sbr.rel (%p585) target = $region84
        $region83: #{instructor_forward.4} parent=71 // pred_region
          %588 = dma.done %s581, 4096
        $region84: #{instructor_forward.4} parent=71 // pred_fallthru
          _
        %p589 = scmp.lt.s32.totalorder %s34, 0
        %s590 = scalar_select %p589, %s34, 0
        %s591 = smul.addr %s590, 2
        %s592 = smul.addr %s591, 8
        %s593 = scalar_lea.vmem %s0, %s592
        %p594 = pneg %p63
        %p595 = pneg %p60
        %p596 = scmp.lt.s32.totalorder %s35, 1
        %s597 = scalar_select %p596, %s35, 1
        %s598 = smul.addr %s597, 192
        %s599 = smul.addr %s598, 4
        %s600 = scalar_lea.vmem %s1, %s599
        %p601 = pneg %p89
        %p602 = pneg %p86
        %p603 = scmp.lt.s32.totalorder %s35, 1
        %s604 = scalar_select %p603, %s35, 1
        %s605 = smul.addr %s604, 6
        %s606 = scalar_lea.vmem %s2, %s605
        %p607 = pneg %p115
        %p608 = pneg %p112
        %s609 = sand.u32 %s128, 1
        %s610 = scalar_lea.sflag [#allocation5], %s609
        %s611 = sand.u32 %s128, 1
        %s612 = smul.addr %s611, 256
        %s613 = scalar_lea.vmem [#allocation4], %s612
        %p614 = pneg %p141
        %p615 = pneg %p138
        %p616 = scmp.lt.s32.totalorder %s35, 1
        %s617 = scalar_select %p616, %s35, 1
        %s618 = smul.addr %s617, 2
        %s619 = scalar_lea.vmem %s4, %s618
        %p620 = pneg %p167
        %p621 = pneg %p164
        %p622 = scmp.lt.s32.totalorder %s35, 1
        %s623 = scalar_select %p622, %s35, 1
        %s624 = smul.addr %s623, 2
        %s625 = scalar_lea.vmem %s5, %s624
        %p626 = pneg %p193
        %p627 = pneg %p190
        %p628 = scmp.lt.s32.totalorder %s35, 1
        %s629 = scalar_select %p628, %s35, 1
        %s630 = smul.addr %s629, 2
        %s631 = scalar_lea.vmem %s6, %s630
        %p632 = pneg %p219
        %p633 = pneg %p216
        %s634 = sand.u32 %s30, 1
        %s635 = scalar_lea.sflag [#allocation7], %s634
        %s636 = sand.u32 %s232, 1
        %s637 = smul.addr %s636, 256
        %s638 = scalar_lea.vmem [#allocation6], %s637
        %p639 = pneg %p245
        %p640 = pneg %p242
        %p641 = scmp.lt.s32.totalorder %s35, 1
        %s642 = scalar_select %p641, %s35, 1
        %s643 = smul.addr %s642, 2
        %s644 = scalar_lea.vmem %s8, %s643
        %p645 = pneg %p271
        %p646 = pneg %p268
        %s647 = sand.u32 %s30, 1
        %s648 = scalar_lea.sflag [#allocation7], %s647
        %s649 = sand.u32 %s284, 1
        %s650 = smul.addr %s649, 256
        %s651 = scalar_lea.vmem [#allocation8], %s650
        %p652 = pneg %p297
        %p653 = pneg %p294
        %p654 = scmp.lt.s32.totalorder %s35, 1
        %s655 = scalar_select %p654, %s35, 1
        %s656 = smul.addr %s655, 2
        %s657 = scalar_lea.vmem %s10, %s656
        %p658 = pneg %p323
        %p659 = pneg %p320
        %p660 = scmp.lt.s32.totalorder %s35, 1
        %s661 = scalar_select %p660, %s35, 1
        %s662 = smul.addr %s661, 2
        %s663 = scalar_lea.vmem %s11, %s662
        %p664 = pneg %p349
        %p665 = pneg %p346
        %p666 = scmp.lt.s32.totalorder %s35, 1
        %s667 = scalar_select %p666, %s35, 1
        %s668 = smul.addr %s667, 2
        %s669 = scalar_lea.vmem %s12, %s668
        %p670 = pneg %p375
        %p671 = pneg %p372
        %p672 = pneg %p401
        %p673 = pneg %p398
        %p674 = scmp.lt.s32.totalorder %s34, 0
        %s675 = scalar_select %p674, %s34, 0
        %s676 = smul.addr %s675, 2
        %s677 = smul.addr %s676, 8
        %s678 = scalar_lea.vmem %s13, %s677
        %p679 = scmp.lt.s32.totalorder %s34, 0
        %s680 = scalar_select %p679, %s34, 0
        %s681 = smul.addr %s680, 2
        %s682 = smul.addr %s681, 8
        %s683 = scalar_lea.vmem %s0, %s682
        %p684 = scmp.lt.s32.totalorder %s35, 1
        %s685 = scalar_select %p684, %s35, 1
        %s686 = smul.addr %s685, 192
        %s687 = smul.addr %s686, 4
        %s688 = scalar_lea.vmem %s1, %s687
        %p689 = scmp.lt.s32.totalorder %s35, 1
        %s690 = scalar_select %p689, %s35, 1
        %s691 = smul.addr %s690, 6
        %s692 = scalar_lea.vmem %s2, %s691
        %p693 = scmp.lt.s32.totalorder %s35, 1
        %s694 = scalar_select %p693, %s35, 1
        %s695 = smul.addr %s694, 2
        %s696 = scalar_lea.vmem %s4, %s695
        %p697 = scmp.lt.s32.totalorder %s35, 1
        %s698 = scalar_select %p697, %s35, 1
        %s699 = smul.addr %s698, 2
        %s700 = scalar_lea.vmem %s5, %s699
        %p701 = scmp.lt.s32.totalorder %s35, 1
        %s702 = scalar_select %p701, %s35, 1
        %s703 = smul.addr %s702, 2
        %s704 = scalar_lea.vmem %s6, %s703
        %p705 = scmp.lt.s32.totalorder %s35, 1
        %s706 = scalar_select %p705, %s35, 1
        %s707 = smul.addr %s706, 2
        %s708 = scalar_lea.vmem %s8, %s707
        %p709 = scmp.lt.s32.totalorder %s35, 1
        %s710 = scalar_select %p709, %s35, 1
        %s711 = smul.addr %s710, 2
        %s712 = scalar_lea.vmem %s10, %s711
        %p713 = scmp.lt.s32.totalorder %s35, 1
        %s714 = scalar_select %p713, %s35, 1
        %s715 = smul.addr %s714, 2
        %s716 = scalar_lea.vmem %s11, %s715
        %p717 = scmp.lt.s32.totalorder %s35, 1
        %s718 = scalar_select %p717, %s35, 1
        %s719 = smul.addr %s718, 2
        %s720 = scalar_lea.vmem %s12, %s719
        %p721 = scmp.lt.s32.totalorder %s34, 0
        %s722 = scalar_select %p721, %s34, 0
        %s723 = smul.addr %s722, 2
        %s724 = smul.addr %s723, 8
        %s725 = scalar_lea.vmem %s13, %s724
        %p727 = scmp.eq.s32.totalorder %s35, 0
        // Predicated region
        $region85: #{instructor_forward.4} parent=71 // pred_check
          %p728 = pneg %p727
        $region86: #{instructor_forward.4} parent=71 // pred_check_branch
          %730 = sbr.rel (%p728) target = $region88
        $region87: #{instructor_forward.4} parent=71 // pred_region
          %v731 = vld [vmem:[%s683] sm:$0xff]
          %v732 = vld [vmem:[%s683 + $0x8] sm:$0xff]
          %733 = vst [vmem:[#allocation2] sm:$0xff] %v731
          %734 = vst [vmem:[#allocation2 + $0x8] sm:$0xff] %v732
        $region88: #{instructor_forward.4} parent=71 // pred_fallthru
          _
        %v735 = vld [vmem:[#allocation2] sm:$0xff]
        %v736 = vld [vmem:[#allocation2 + $0x8] sm:$0xff]
        %v737 = vpack.c.bf16 %v735, %v735
        %v738 = vpack.c.bf16 %v736, %v736
        %v739 = vld [vmem:[%s688] sm:$0xff]
        %v740 = vld [vmem:[%s688 + $0x8] sm:$0xff]
        %v741 = vld [vmem:[%s688 + $0x10] sm:$0xff]
        %v742 = vld [vmem:[%s688 + $0x18] sm:$0xff]
        %v743 = vld [vmem:[%s688 + $0x20] sm:$0xff]
        %v744 = vld [vmem:[%s688 + $0x28] sm:$0xff]
        %v745 = vld [vmem:[%s688 + $0x30] sm:$0xff]
        %v746 = vld [vmem:[%s688 + $0x38] sm:$0xff]
        %v747 = vld [vmem:[%s688 + $0x40] sm:$0xff]
        %v748 = vld [vmem:[%s688 + $0x48] sm:$0xff]
        %v749 = vld [vmem:[%s688 + $0x50] sm:$0xff]
        %v750 = vld [vmem:[%s688 + $0x58] sm:$0xff]
        %v751 = vld [vmem:[%s688 + $0x60] sm:$0xff]
        %v752 = vld [vmem:[%s688 + $0x68] sm:$0xff]
        %v753 = vld [vmem:[%s688 + $0x70] sm:$0xff]
        %v754 = vld [vmem:[%s688 + $0x78] sm:$0xff]
        %v755 = vld [vmem:[%s688 + $0x80] sm:$0xff]
        %v756 = vld [vmem:[%s688 + $0x88] sm:$0xff]
        %v757 = vld [vmem:[%s688 + $0x90] sm:$0xff]
        %v758 = vld [vmem:[%s688 + $0x98] sm:$0xff]
        %v759 = vld [vmem:[%s688 + $0xa0] sm:$0xff]
        %v760 = vld [vmem:[%s688 + $0xa8] sm:$0xff]
        %v761 = vld [vmem:[%s688 + $0xb0] sm:$0xff]
        %v762 = vld [vmem:[%s688 + $0xb8] sm:$0xff]
        %v763 = vld [vmem:[%s688 + $0xc0] sm:$0xff]
        %v764 = vld [vmem:[%s688 + $0xc8] sm:$0xff]
        %v765 = vld [vmem:[%s688 + $0xd0] sm:$0xff]
        %v766 = vld [vmem:[%s688 + $0xd8] sm:$0xff]
        %v767 = vld [vmem:[%s688 + $0xe0] sm:$0xff]
        %v768 = vld [vmem:[%s688 + $0xe8] sm:$0xff]
        %v769 = vld [vmem:[%s688 + $0xf0] sm:$0xff]
        %v770 = vld [vmem:[%s688 + $0xf8] sm:$0xff]
        %v771 = vld [vmem:[%s688 + $0x100] sm:$0xff]
        %v772 = vld [vmem:[%s688 + $0x108] sm:$0xff]
        %v773 = vld [vmem:[%s688 + $0x110] sm:$0xff]
        %v774 = vld [vmem:[%s688 + $0x118] sm:$0xff]
        %v775 = vld [vmem:[%s688 + $0x120] sm:$0xff]
        %v776 = vld [vmem:[%s688 + $0x128] sm:$0xff]
        %v777 = vld [vmem:[%s688 + $0x130] sm:$0xff]
        %v778 = vld [vmem:[%s688 + $0x138] sm:$0xff]
        %v779 = vld [vmem:[%s688 + $0x140] sm:$0xff]
        %v780 = vld [vmem:[%s688 + $0x148] sm:$0xff]
        %v781 = vld [vmem:[%s688 + $0x150] sm:$0xff]
        %v782 = vld [vmem:[%s688 + $0x158] sm:$0xff]
        %v783 = vld [vmem:[%s688 + $0x160] sm:$0xff]
        %v784 = vld [vmem:[%s688 + $0x168] sm:$0xff]
        %v785 = vld [vmem:[%s688 + $0x170] sm:$0xff]
        %v786 = vld [vmem:[%s688 + $0x178] sm:$0xff]
        %v787 = vld [vmem:[%s688 + $0x180] sm:$0xff]
        %v788 = vld [vmem:[%s688 + $0x188] sm:$0xff]
        %v789 = vld [vmem:[%s688 + $0x190] sm:$0xff]
        %v790 = vld [vmem:[%s688 + $0x198] sm:$0xff]
        %v791 = vld [vmem:[%s688 + $0x1a0] sm:$0xff]
        %v792 = vld [vmem:[%s688 + $0x1a8] sm:$0xff]
        %v793 = vld [vmem:[%s688 + $0x1b0] sm:$0xff]
        %v794 = vld [vmem:[%s688 + $0x1b8] sm:$0xff]
        %v795 = vld [vmem:[%s688 + $0x1c0] sm:$0xff]
        %v796 = vld [vmem:[%s688 + $0x1c8] sm:$0xff]
        %v797 = vld [vmem:[%s688 + $0x1d0] sm:$0xff]
        %v798 = vld [vmem:[%s688 + $0x1d8] sm:$0xff]
        %v799 = vld [vmem:[%s688 + $0x1e0] sm:$0xff]
        %v800 = vld [vmem:[%s688 + $0x1e8] sm:$0xff]
        %v801 = vld [vmem:[%s688 + $0x1f0] sm:$0xff]
        %v802 = vld [vmem:[%s688 + $0x1f8] sm:$0xff]
        %v803 = vld [vmem:[%s688 + $0x200] sm:$0xff]
        %v804 = vld [vmem:[%s688 + $0x208] sm:$0xff]
        %v805 = vld [vmem:[%s688 + $0x210] sm:$0xff]
        %v806 = vld [vmem:[%s688 + $0x218] sm:$0xff]
        %v807 = vld [vmem:[%s688 + $0x220] sm:$0xff]
        %v808 = vld [vmem:[%s688 + $0x228] sm:$0xff]
        %v809 = vld [vmem:[%s688 + $0x230] sm:$0xff]
        %v810 = vld [vmem:[%s688 + $0x238] sm:$0xff]
        %v811 = vld [vmem:[%s688 + $0x240] sm:$0xff]
        %v812 = vld [vmem:[%s688 + $0x248] sm:$0xff]
        %v813 = vld [vmem:[%s688 + $0x250] sm:$0xff]
        %v814 = vld [vmem:[%s688 + $0x258] sm:$0xff]
        %v815 = vld [vmem:[%s688 + $0x260] sm:$0xff]
        %v816 = vld [vmem:[%s688 + $0x268] sm:$0xff]
        %v817 = vld [vmem:[%s688 + $0x270] sm:$0xff]
        %v818 = vld [vmem:[%s688 + $0x278] sm:$0xff]
        %v819 = vld [vmem:[%s688 + $0x280] sm:$0xff]
        %v820 = vld [vmem:[%s688 + $0x288] sm:$0xff]
        %v821 = vld [vmem:[%s688 + $0x290] sm:$0xff]
        %v822 = vld [vmem:[%s688 + $0x298] sm:$0xff]
        %v823 = vld [vmem:[%s688 + $0x2a0] sm:$0xff]
        %v824 = vld [vmem:[%s688 + $0x2a8] sm:$0xff]
        %v825 = vld [vmem:[%s688 + $0x2b0] sm:$0xff]
        %v826 = vld [vmem:[%s688 + $0x2b8] sm:$0xff]
        %v827 = vld [vmem:[%s688 + $0x2c0] sm:$0xff]
        %v828 = vld [vmem:[%s688 + $0x2c8] sm:$0xff]
        %v829 = vld [vmem:[%s688 + $0x2d0] sm:$0xff]
        %v830 = vld [vmem:[%s688 + $0x2d8] sm:$0xff]
        %v831 = vld [vmem:[%s688 + $0x2e0] sm:$0xff]
        %v832 = vld [vmem:[%s688 + $0x2e8] sm:$0xff]
        %v833 = vld [vmem:[%s688 + $0x2f0] sm:$0xff]
        %v834 = vld [vmem:[%s688 + $0x2f8] sm:$0xff]
        %v835 = vld [vmem:[%s692] sm:$0x3f]
        %v837 = vlaneseq
        %v838 = vshrl.u32 %v837, 7
        %v839 = vsub.s32 0, %v838
        %v840 = vrot.slane %v835, %v839
        %v841 = vlaneseq
        %v842 = vshrl.u32 %v841, 7
        %v843 = vsub.s32 1, %v842
        %v844 = vrot.slane %v835, %v843
        %v845 = vlaneseq
        %v846 = vshrl.u32 %v845, 7
        %v847 = vsub.s32 2, %v846
        %v848 = vrot.slane %v835, %v847
        %v849 = vlaneseq
        %v850 = vshrl.u32 %v849, 7
        %v851 = vsub.s32 3, %v850
        %v852 = vrot.slane %v835, %v851
        %v853 = vlaneseq
        %v854 = vshrl.u32 %v853, 7
        %v855 = vsub.s32 4, %v854
        %v856 = vrot.slane %v835, %v855
        %v857 = vlaneseq
        %v858 = vshrl.u32 %v857, 7
        %v859 = vsub.s32 5, %v858
        %v860 = vrot.slane %v835, %v859
        %v963 = vunpack.c.l.b16 %v739
        %v964 = vunpack.c.h.b16 %v739
        %v965 = vunpack.c.l.b16 %v740
        %v966 = vunpack.c.h.b16 %v740
        %v967 = vunpack.c.l.b16 %v741
        %v968 = vunpack.c.h.b16 %v741
        %v969 = vunpack.c.l.b16 %v742
        %v970 = vunpack.c.h.b16 %v742
        %v971 = vunpack.c.l.b16 %v743
        %v972 = vunpack.c.h.b16 %v743
        %v973 = vunpack.c.l.b16 %v744
        %v974 = vunpack.c.h.b16 %v744
        %v975 = vunpack.c.l.b16 %v745
        %v976 = vunpack.c.h.b16 %v745
        %v977 = vunpack.c.l.b16 %v746
        %v978 = vunpack.c.h.b16 %v746
        %v979 = vunpack.c.l.b16 %v747
        %v980 = vunpack.c.h.b16 %v747
        %v981 = vunpack.c.l.b16 %v748
        %v982 = vunpack.c.h.b16 %v748
        %v983 = vunpack.c.l.b16 %v749
        %v984 = vunpack.c.h.b16 %v749
        %v985 = vunpack.c.l.b16 %v750
        %v986 = vunpack.c.h.b16 %v750
        %v987 = vunpack.c.l.b16 %v751
        %v988 = vunpack.c.h.b16 %v751
        %v989 = vunpack.c.l.b16 %v752
        %v990 = vunpack.c.h.b16 %v752
        %v991 = vunpack.c.l.b16 %v753
        %v992 = vunpack.c.h.b16 %v753
        %v993 = vunpack.c.l.b16 %v754
        %v994 = vunpack.c.h.b16 %v754
        %v995 = vunpack.c.l.b16 %v755
        %v996 = vunpack.c.h.b16 %v755
        %v997 = vunpack.c.l.b16 %v756
        %v998 = vunpack.c.h.b16 %v756
        %v999 = vunpack.c.l.b16 %v757
        %v1000 = vunpack.c.h.b16 %v757
        %v1001 = vunpack.c.l.b16 %v758
        %v1002 = vunpack.c.h.b16 %v758
        %v1003 = vunpack.c.l.b16 %v759
        %v1004 = vunpack.c.h.b16 %v759
        %v1005 = vunpack.c.l.b16 %v760
        %v1006 = vunpack.c.h.b16 %v760
        %v1007 = vunpack.c.l.b16 %v761
        %v1008 = vunpack.c.h.b16 %v761
        %v1009 = vunpack.c.l.b16 %v762
        %v1010 = vunpack.c.h.b16 %v762
        %v1011 = vunpack.c.l.b16 %v763
        %v1012 = vunpack.c.h.b16 %v763
        %v1013 = vunpack.c.l.b16 %v764
        %v1014 = vunpack.c.h.b16 %v764
        %v1015 = vunpack.c.l.b16 %v765
        %v1016 = vunpack.c.h.b16 %v765
        %v1017 = vunpack.c.l.b16 %v766
        %v1018 = vunpack.c.h.b16 %v766
        %v1019 = vunpack.c.l.b16 %v767
        %v1020 = vunpack.c.h.b16 %v767
        %v1021 = vunpack.c.l.b16 %v768
        %v1022 = vunpack.c.h.b16 %v768
        %v1023 = vunpack.c.l.b16 %v769
        %v1024 = vunpack.c.h.b16 %v769
        %v1025 = vunpack.c.l.b16 %v770
        %v1026 = vunpack.c.h.b16 %v770
        %v1027 = vunpack.c.l.b16 %v771
        %v1028 = vunpack.c.h.b16 %v771
        %v1029 = vunpack.c.l.b16 %v772
        %v1030 = vunpack.c.h.b16 %v772
        %v1031 = vunpack.c.l.b16 %v773
        %v1032 = vunpack.c.h.b16 %v773
        %v1033 = vunpack.c.l.b16 %v774
        %v1034 = vunpack.c.h.b16 %v774
        %v1035 = vunpack.c.l.b16 %v775
        %v1036 = vunpack.c.h.b16 %v775
        %v1037 = vunpack.c.l.b16 %v776
        %v1038 = vunpack.c.h.b16 %v776
        %v1039 = vunpack.c.l.b16 %v777
        %v1040 = vunpack.c.h.b16 %v777
        %v1041 = vunpack.c.l.b16 %v778
        %v1042 = vunpack.c.h.b16 %v778
        %v1043 = vunpack.c.l.b16 %v779
        %v1044 = vunpack.c.h.b16 %v779
        %v1045 = vunpack.c.l.b16 %v780
        %v1046 = vunpack.c.h.b16 %v780
        %v1047 = vunpack.c.l.b16 %v781
        %v1048 = vunpack.c.h.b16 %v781
        %v1049 = vunpack.c.l.b16 %v782
        %v1050 = vunpack.c.h.b16 %v782
        %v1051 = vunpack.c.l.b16 %v783
        %v1052 = vunpack.c.h.b16 %v783
        %v1053 = vunpack.c.l.b16 %v784
        %v1054 = vunpack.c.h.b16 %v784
        %v1055 = vunpack.c.l.b16 %v785
        %v1056 = vunpack.c.h.b16 %v785
        %v1057 = vunpack.c.l.b16 %v786
        %v1058 = vunpack.c.h.b16 %v786
        %v1059 = vunpack.c.l.b16 %v787
        %v1060 = vunpack.c.h.b16 %v787
        %v1061 = vunpack.c.l.b16 %v788
        %v1062 = vunpack.c.h.b16 %v788
        %v1063 = vunpack.c.l.b16 %v789
        %v1064 = vunpack.c.h.b16 %v789
        %v1065 = vunpack.c.l.b16 %v790
        %v1066 = vunpack.c.h.b16 %v790
        %v1067 = vunpack.c.l.b16 %v791
        %v1068 = vunpack.c.h.b16 %v791
        %v1069 = vunpack.c.l.b16 %v792
        %v1070 = vunpack.c.h.b16 %v792
        %v1071 = vunpack.c.l.b16 %v793
        %v1072 = vunpack.c.h.b16 %v793
        %v1073 = vunpack.c.l.b16 %v794
        %v1074 = vunpack.c.h.b16 %v794
        %v1075 = vunpack.c.l.b16 %v795
        %v1076 = vunpack.c.h.b16 %v795
        %v1077 = vunpack.c.l.b16 %v796
        %v1078 = vunpack.c.h.b16 %v796
        %v1079 = vunpack.c.l.b16 %v797
        %v1080 = vunpack.c.h.b16 %v797
        %v1081 = vunpack.c.l.b16 %v798
        %v1082 = vunpack.c.h.b16 %v798
        %v1083 = vunpack.c.l.b16 %v799
        %v1084 = vunpack.c.h.b16 %v799
        %v1085 = vunpack.c.l.b16 %v800
        %v1086 = vunpack.c.h.b16 %v800
        %v1087 = vunpack.c.l.b16 %v801
        %v1088 = vunpack.c.h.b16 %v801
        %v1089 = vunpack.c.l.b16 %v802
        %v1090 = vunpack.c.h.b16 %v802
        %v1091 = vunpack.c.l.b16 %v803
        %v1092 = vunpack.c.h.b16 %v803
        %v1093 = vunpack.c.l.b16 %v804
        %v1094 = vunpack.c.h.b16 %v804
        %v1095 = vunpack.c.l.b16 %v805
        %v1096 = vunpack.c.h.b16 %v805
        %v1097 = vunpack.c.l.b16 %v806
        %v1098 = vunpack.c.h.b16 %v806
        %v1099 = vunpack.c.l.b16 %v807
        %v1100 = vunpack.c.h.b16 %v807
        %v1101 = vunpack.c.l.b16 %v808
        %v1102 = vunpack.c.h.b16 %v808
        %v1103 = vunpack.c.l.b16 %v809
        %v1104 = vunpack.c.h.b16 %v809
        %v1105 = vunpack.c.l.b16 %v810
        %v1106 = vunpack.c.h.b16 %v810
        %v1107 = vunpack.c.l.b16 %v811
        %v1108 = vunpack.c.h.b16 %v811
        %v1109 = vunpack.c.l.b16 %v812
        %v1110 = vunpack.c.h.b16 %v812
        %v1111 = vunpack.c.l.b16 %v813
        %v1112 = vunpack.c.h.b16 %v813
        %v1113 = vunpack.c.l.b16 %v814
        %v1114 = vunpack.c.h.b16 %v814
        %v1115 = vunpack.c.l.b16 %v815
        %v1116 = vunpack.c.h.b16 %v815
        %v1117 = vunpack.c.l.b16 %v816
        %v1118 = vunpack.c.h.b16 %v816
        %v1119 = vunpack.c.l.b16 %v817
        %v1120 = vunpack.c.h.b16 %v817
        %v1121 = vunpack.c.l.b16 %v818
        %v1122 = vunpack.c.h.b16 %v818
        %v1123 = vunpack.c.l.b16 %v819
        %v1124 = vunpack.c.h.b16 %v819
        %v1125 = vunpack.c.l.b16 %v820
        %v1126 = vunpack.c.h.b16 %v820
        %v1127 = vunpack.c.l.b16 %v821
        %v1128 = vunpack.c.h.b16 %v821
        %v1129 = vunpack.c.l.b16 %v822
        %v1130 = vunpack.c.h.b16 %v822
        %v1131 = vunpack.c.l.b16 %v823
        %v1132 = vunpack.c.h.b16 %v823
        %v1133 = vunpack.c.l.b16 %v824
        %v1134 = vunpack.c.h.b16 %v824
        %v1135 = vunpack.c.l.b16 %v825
        %v1136 = vunpack.c.h.b16 %v825
        %v1137 = vunpack.c.l.b16 %v826
        %v1138 = vunpack.c.h.b16 %v826
        %v1139 = vunpack.c.l.b16 %v827
        %v1140 = vunpack.c.h.b16 %v827
        %v1141 = vunpack.c.l.b16 %v828
        %v1142 = vunpack.c.h.b16 %v828
        %v1143 = vunpack.c.l.b16 %v829
        %v1144 = vunpack.c.h.b16 %v829
        %v1145 = vunpack.c.l.b16 %v830
        %v1146 = vunpack.c.h.b16 %v830
        %v1147 = vunpack.c.l.b16 %v831
        %v1148 = vunpack.c.h.b16 %v831
        %v1149 = vunpack.c.l.b16 %v832
        %v1150 = vunpack.c.h.b16 %v832
        %v1151 = vunpack.c.l.b16 %v833
        %v1152 = vunpack.c.h.b16 %v833
        %v1153 = vunpack.c.l.b16 %v834
        %v1154 = vunpack.c.h.b16 %v834
        %v1155 = vpack.c.b16 %v969, %v963
        %v1156 = vpack.c.b16 %v970, %v964
        %v1157 = vpack.c.b16 %v971, %v965
        %v1158 = vpack.c.b16 %v972, %v966
        %v1159 = vpack.c.b16 %v973, %v967
        %v1160 = vpack.c.b16 %v974, %v968
        %v1161 = vpack.c.b16 %v981, %v975
        %v1162 = vpack.c.b16 %v982, %v976
        %v1163 = vpack.c.b16 %v983, %v977
        %v1164 = vpack.c.b16 %v984, %v978
        %v1165 = vpack.c.b16 %v985, %v979
        %v1166 = vpack.c.b16 %v986, %v980
        %v1167 = vpack.c.b16 %v993, %v987
        %v1168 = vpack.c.b16 %v994, %v988
        %v1169 = vpack.c.b16 %v995, %v989
        %v1170 = vpack.c.b16 %v996, %v990
        %v1171 = vpack.c.b16 %v997, %v991
        %v1172 = vpack.c.b16 %v998, %v992
        %v1173 = vpack.c.b16 %v1005, %v999
        %v1174 = vpack.c.b16 %v1006, %v1000
        %v1175 = vpack.c.b16 %v1007, %v1001
        %v1176 = vpack.c.b16 %v1008, %v1002
        %v1177 = vpack.c.b16 %v1009, %v1003
        %v1178 = vpack.c.b16 %v1010, %v1004
        %v1179 = vpack.c.b16 %v1017, %v1011
        %v1180 = vpack.c.b16 %v1018, %v1012
        %v1181 = vpack.c.b16 %v1019, %v1013
        %v1182 = vpack.c.b16 %v1020, %v1014
        %v1183 = vpack.c.b16 %v1021, %v1015
        %v1184 = vpack.c.b16 %v1022, %v1016
        %v1185 = vpack.c.b16 %v1029, %v1023
        %v1186 = vpack.c.b16 %v1030, %v1024
        %v1187 = vpack.c.b16 %v1031, %v1025
        %v1188 = vpack.c.b16 %v1032, %v1026
        %v1189 = vpack.c.b16 %v1033, %v1027
        %v1190 = vpack.c.b16 %v1034, %v1028
        %v1191 = vpack.c.b16 %v1041, %v1035
        %v1192 = vpack.c.b16 %v1042, %v1036
        %v1193 = vpack.c.b16 %v1043, %v1037
        %v1194 = vpack.c.b16 %v1044, %v1038
        %v1195 = vpack.c.b16 %v1045, %v1039
        %v1196 = vpack.c.b16 %v1046, %v1040
        %v1197 = vpack.c.b16 %v1053, %v1047
        %v1198 = vpack.c.b16 %v1054, %v1048
        %v1199 = vpack.c.b16 %v1055, %v1049
        %v1200 = vpack.c.b16 %v1056, %v1050
        %v1201 = vpack.c.b16 %v1057, %v1051
        %v1202 = vpack.c.b16 %v1058, %v1052
        %v1203 = vpack.c.b16 %v1065, %v1059
        %v1204 = vpack.c.b16 %v1066, %v1060
        %v1205 = vpack.c.b16 %v1067, %v1061
        %v1206 = vpack.c.b16 %v1068, %v1062
        %v1207 = vpack.c.b16 %v1069, %v1063
        %v1208 = vpack.c.b16 %v1070, %v1064
        %v1209 = vpack.c.b16 %v1077, %v1071
        %v1210 = vpack.c.b16 %v1078, %v1072
        %v1211 = vpack.c.b16 %v1079, %v1073
        %v1212 = vpack.c.b16 %v1080, %v1074
        %v1213 = vpack.c.b16 %v1081, %v1075
        %v1214 = vpack.c.b16 %v1082, %v1076
        %v1215 = vpack.c.b16 %v1089, %v1083
        %v1216 = vpack.c.b16 %v1090, %v1084
        %v1217 = vpack.c.b16 %v1091, %v1085
        %v1218 = vpack.c.b16 %v1092, %v1086
        %v1219 = vpack.c.b16 %v1093, %v1087
        %v1220 = vpack.c.b16 %v1094, %v1088
        %v1221 = vpack.c.b16 %v1101, %v1095
        %v1222 = vpack.c.b16 %v1102, %v1096
        %v1223 = vpack.c.b16 %v1103, %v1097
        %v1224 = vpack.c.b16 %v1104, %v1098
        %v1225 = vpack.c.b16 %v1105, %v1099
        %v1226 = vpack.c.b16 %v1106, %v1100
        %v1227 = vpack.c.b16 %v1113, %v1107
        %v1228 = vpack.c.b16 %v1114, %v1108
        %v1229 = vpack.c.b16 %v1115, %v1109
        %v1230 = vpack.c.b16 %v1116, %v1110
        %v1231 = vpack.c.b16 %v1117, %v1111
        %v1232 = vpack.c.b16 %v1118, %v1112
        %v1233 = vpack.c.b16 %v1125, %v1119
        %v1234 = vpack.c.b16 %v1126, %v1120
        %v1235 = vpack.c.b16 %v1127, %v1121
        %v1236 = vpack.c.b16 %v1128, %v1122
        %v1237 = vpack.c.b16 %v1129, %v1123
        %v1238 = vpack.c.b16 %v1130, %v1124
        %v1239 = vpack.c.b16 %v1137, %v1131
        %v1240 = vpack.c.b16 %v1138, %v1132
        %v1241 = vpack.c.b16 %v1139, %v1133
        %v1242 = vpack.c.b16 %v1140, %v1134
        %v1243 = vpack.c.b16 %v1141, %v1135
        %v1244 = vpack.c.b16 %v1142, %v1136
        %v1245 = vpack.c.b16 %v1149, %v1143
        %v1246 = vpack.c.b16 %v1150, %v1144
        %v1247 = vpack.c.b16 %v1151, %v1145
        %v1248 = vpack.c.b16 %v1152, %v1146
        %v1249 = vpack.c.b16 %v1153, %v1147
        %v1250 = vpack.c.b16 %v1154, %v1148
        %1347 = vmatprep.subr.bf16.mxu0 %v1198
        %1348 = vmatpush1.bf16.msra.mxu0 %v1197
        %1349 = vmatprep.subr.bf16.mxu0 %v1192
        %1350 = vmatpush1.bf16.msra.mxu0 %v1191
        %1351 = vmatprep.subr.bf16.mxu0 %v1186
        %1352 = vmatpush1.bf16.msra.mxu0 %v1185
        %1353 = vmatprep.subr.bf16.mxu0 %v1180
        %1354 = vmatpush1.bf16.msra.mxu0 %v1179
        %1355 = vmatprep.subr.bf16.mxu0 %v1174
        %1356 = vmatpush1.bf16.msra.mxu0 %v1173
        %1357 = vmatprep.subr.bf16.mxu0 %v1168
        %1358 = vmatpush1.bf16.msra.mxu0 %v1167
        %1359 = vmatprep.subr.bf16.mxu0 %v1162
        %1360 = vmatpush1.bf16.msra.mxu0 %v1161
        %1361 = vmatprep.subr.bf16.mxu0 %v1156
        %1362 = vmatpush1.bf16.msra.mxu0 %v1155
        %1363 = vmatprep.subr.bf16.mxu0 %v1246
        %1364 = vmatpush2.bf16.msra.mxu0 %v1245
        %1365 = vmatprep.subr.bf16.mxu0 %v1240
        %1366 = vmatpush2.bf16.msra.mxu0 %v1239
        %1367 = vmatprep.subr.bf16.mxu0 %v1234
        %1368 = vmatpush2.bf16.msra.mxu0 %v1233
        %1369 = vmatprep.subr.bf16.mxu0 %v1228
        %1370 = vmatpush2.bf16.msra.mxu0 %v1227
        %1371 = vmatprep.subr.bf16.mxu0 %v1222
        %1372 = vmatpush2.bf16.msra.mxu0 %v1221
        %1373 = vmatprep.subr.bf16.mxu0 %v1216
        %1374 = vmatpush2.bf16.msra.mxu0 %v1215
        %1375 = vmatprep.subr.bf16.mxu0 %v1210
        %1376 = vmatpush2.bf16.msra.mxu0 %v1209
        %1377 = vmatprep.subr.bf16.mxu0 %v1204
        %1378 = vmatpush2.bf16.msra.mxu0 %v1203
        %1379 = vmatprep.mubr.bf16.mxu0 %v738
        %1380 = vmatmul.mubr.bf16.gmra.mxu0 %v737
        %v1381 = vpop.f32.mrf.mxu0
        %v1382 = vadd.f32 %v840, %v1381
        %v1383 = vpop.f32.mrf.mxu0
        %v1384 = vadd.f32 %v844, %v1383
        %v1385 = vpop.f32.mrf.mxu0
        %v1386 = vpop.f32.mrf.mxu0
        %1387 = vdwg.mxu0
        %1388 = vmatprep.subr.bf16.mxu0 %v1200
        %1389 = vmatpush1.bf16.msra.mxu0 %v1199
        %1390 = vmatprep.subr.bf16.mxu0 %v1194
        %1391 = vmatpush1.bf16.msra.mxu0 %v1193
        %1392 = vmatprep.subr.bf16.mxu0 %v1188
        %1393 = vmatpush1.bf16.msra.mxu0 %v1187
        %1394 = vmatprep.subr.bf16.mxu0 %v1182
        %1395 = vmatpush1.bf16.msra.mxu0 %v1181
        %1396 = vmatprep.subr.bf16.mxu0 %v1176
        %1397 = vmatpush1.bf16.msra.mxu0 %v1175
        %1398 = vmatprep.subr.bf16.mxu0 %v1170
        %1399 = vmatpush1.bf16.msra.mxu0 %v1169
        %1400 = vmatprep.subr.bf16.mxu0 %v1164
        %1401 = vmatpush1.bf16.msra.mxu0 %v1163
        %1402 = vmatprep.subr.bf16.mxu0 %v1158
        %1403 = vmatpush1.bf16.msra.mxu0 %v1157
        %1404 = vmatprep.subr.bf16.mxu0 %v1248
        %1405 = vmatpush2.bf16.msra.mxu0 %v1247
        %1406 = vmatprep.subr.bf16.mxu0 %v1242
        %1407 = vmatpush2.bf16.msra.mxu0 %v1241
        %1408 = vmatprep.subr.bf16.mxu0 %v1236
        %1409 = vmatpush2.bf16.msra.mxu0 %v1235
        %1410 = vmatprep.subr.bf16.mxu0 %v1230
        %1411 = vmatpush2.bf16.msra.mxu0 %v1229
        %1412 = vmatprep.subr.bf16.mxu0 %v1224
        %1413 = vmatpush2.bf16.msra.mxu0 %v1223
        %1414 = vmatprep.subr.bf16.mxu0 %v1218
        %1415 = vmatpush2.bf16.msra.mxu0 %v1217
        %1416 = vmatprep.subr.bf16.mxu0 %v1212
        %1417 = vmatpush2.bf16.msra.mxu0 %v1211
        %1418 = vmatprep.subr.bf16.mxu0 %v1206
        %1419 = vmatpush2.bf16.msra.mxu0 %v1205
        %1420 = vmatprep.mubr.bf16.mxu0 %v738
        %1421 = vmatmul.mubr.bf16.gmra.mxu0 %v737
        %v1422 = vpop.f32.mrf.mxu0
        %v1423 = vadd.f32 %v848, %v1422
        %v1424 = vpop.f32.mrf.mxu0
        %v1425 = vadd.f32 %v852, %v1424
        %v1426 = vpop.f32.mrf.mxu0
        %v1427 = vpop.f32.mrf.mxu0
        %1428 = vdwg.mxu0
        %1429 = vmatprep.subr.bf16.mxu0 %v1202
        %1430 = vmatpush1.bf16.msra.mxu0 %v1201
        %1431 = vmatprep.subr.bf16.mxu0 %v1196
        %1432 = vmatpush1.bf16.msra.mxu0 %v1195
        %1433 = vmatprep.subr.bf16.mxu0 %v1190
        %1434 = vmatpush1.bf16.msra.mxu0 %v1189
        %1435 = vmatprep.subr.bf16.mxu0 %v1184
        %1436 = vmatpush1.bf16.msra.mxu0 %v1183
        %1437 = vmatprep.subr.bf16.mxu0 %v1178
        %1438 = vmatpush1.bf16.msra.mxu0 %v1177
        %1439 = vmatprep.subr.bf16.mxu0 %v1172
        %1440 = vmatpush1.bf16.msra.mxu0 %v1171
        %1441 = vmatprep.subr.bf16.mxu0 %v1166
        %1442 = vmatpush1.bf16.msra.mxu0 %v1165
        %1443 = vmatprep.subr.bf16.mxu0 %v1160
        %1444 = vmatpush1.bf16.msra.mxu0 %v1159
        %1445 = vmatprep.subr.bf16.mxu0 %v1250
        %1446 = vmatpush2.bf16.msra.mxu0 %v1249
        %1447 = vmatprep.subr.bf16.mxu0 %v1244
        %1448 = vmatpush2.bf16.msra.mxu0 %v1243
        %1449 = vmatprep.subr.bf16.mxu0 %v1238
        %1450 = vmatpush2.bf16.msra.mxu0 %v1237
        %1451 = vmatprep.subr.bf16.mxu0 %v1232
        %1452 = vmatpush2.bf16.msra.mxu0 %v1231
        %1453 = vmatprep.subr.bf16.mxu0 %v1226
        %1454 = vmatpush2.bf16.msra.mxu0 %v1225
        %1455 = vmatprep.subr.bf16.mxu0 %v1220
        %1456 = vmatpush2.bf16.msra.mxu0 %v1219
        %1457 = vmatprep.subr.bf16.mxu0 %v1214
        %1458 = vmatpush2.bf16.msra.mxu0 %v1213
        %1459 = vmatprep.subr.bf16.mxu0 %v1208
        %1460 = vmatpush2.bf16.msra.mxu0 %v1207
        %1461 = vmatprep.mubr.bf16.mxu0 %v738
        %1462 = vmatmul.mubr.bf16.gmra.mxu0 %v737
        %v1463 = vpop.f32.mrf.mxu0
        %v1464 = vadd.f32 %v856, %v1463
        %v1465 = vpop.f32.mrf.mxu0
        %v1466 = vadd.f32 %v860, %v1465
        %v1467 = vpop.f32.mrf.mxu0
        %v1468 = vpop.f32.mrf.mxu0
        %1469 = vdwg.mxu0
        %v1470 = vpack.c.bf16 %v1382, %v1382
        %v1471 = vpack.c.bf16 %v1384, %v1384
        %v1472 = vpack.c.bf16 %v1423, %v1423
        %v1473 = vpack.c.bf16 %v1425, %v1425
        %v1474 = vpack.c.bf16 %v1464, %v1464
        %v1475 = vpack.c.bf16 %v1466, %v1466
        %v1478 = vunpack.c.l.s4 1966171168
        %v1479 = vunpack.c.0.s8 %v1478
        %v1480 = vlaneseq
        %v1481 = vshrl.u32 %v1480, 7
        %v1482 = vsub.s32 %v1479, %v1481
        %v1483 = vrot.slane %v1470, %v1482
        %v1484 = vcombine.high %v1483, %v1483
        %v1486 = vunpack.c.l.s4 1966171168
        %v1487 = vunpack.c.0.s8 %v1486
        %v1488 = vlaneseq
        %v1489 = vshrl.u32 %v1488, 7
        %v1490 = vsub.s32 %v1487, %v1489
        %v1491 = vrot.slane %v1483, %v1490
        %v1493 = vunpack.c.l.s4 1966171168
        %v1494 = vunpack.c.0.s8 %v1493
        %v1495 = vlaneseq
        %v1496 = vshrl.u32 %v1495, 7
        %v1497 = vsub.s32 %v1494, %v1496
        %v1498 = vrot.slane %v1484, %v1497
        %v1499 = vcombine.high %v1491, %v1491
        %v1500 = vcombine.high %v1498, %v1498
        %v1507 = vunpack.c.l.s4 1966171168
        %v1508 = vunpack.c.0.s8 %v1507
        %v1509 = vlaneseq
        %v1510 = vshrl.u32 %v1509, 7
        %v1511 = vsub.s32 %v1508, %v1510
        %v1512 = vrot.slane %v1472, %v1511
        %v1513 = vcombine.high %v1512, %v1512
        %v1515 = vunpack.c.l.s4 1966171168
        %v1516 = vunpack.c.0.s8 %v1515
        %v1517 = vlaneseq
        %v1518 = vshrl.u32 %v1517, 7
        %v1519 = vsub.s32 %v1516, %v1518
        %v1520 = vrot.slane %v1512, %v1519
        %v1522 = vunpack.c.l.s4 1966171168
        %v1523 = vunpack.c.0.s8 %v1522
        %v1524 = vlaneseq
        %v1525 = vshrl.u32 %v1524, 7
        %v1526 = vsub.s32 %v1523, %v1525
        %v1527 = vrot.slane %v1513, %v1526
        %v1528 = vcombine.high %v1520, %v1520
        %v1529 = vcombine.high %v1527, %v1527
        %v1536 = vunpack.c.l.s4 1966171168
        %v1537 = vunpack.c.0.s8 %v1536
        %v1538 = vlaneseq
        %v1539 = vshrl.u32 %v1538, 7
        %v1540 = vsub.s32 %v1537, %v1539
        %v1541 = vrot.slane %v1474, %v1540
        %v1542 = vcombine.high %v1541, %v1541
        %v1544 = vunpack.c.l.s4 1966171168
        %v1545 = vunpack.c.0.s8 %v1544
        %v1546 = vlaneseq
        %v1547 = vshrl.u32 %v1546, 7
        %v1548 = vsub.s32 %v1545, %v1547
        %v1549 = vrot.slane %v1541, %v1548
        %v1551 = vunpack.c.l.s4 1966171168
        %v1552 = vunpack.c.0.s8 %v1551
        %v1553 = vlaneseq
        %v1554 = vshrl.u32 %v1553, 7
        %v1555 = vsub.s32 %v1552, %v1554
        %v1556 = vrot.slane %v1542, %v1555
        %v1557 = vcombine.high %v1549, %v1549
        %v1558 = vcombine.high %v1556, %v1556
        %1559 = vmatprep.subr.bf16.mxu0 0
        %1560 = vmatpush1.bf16.xpose.msra.mxu0 0
        %1561 = vmatprep.subr.bf16.mxu0 0
        %1562 = vmatpush1.bf16.xpose.msra.mxu0 0
        %1563 = vmatprep.subr.bf16.mxu0 0
        %1564 = vmatpush1.bf16.xpose.msra.mxu0 0
        %1565 = vmatprep.subr.bf16.mxu0 0
        %1566 = vmatpush1.bf16.xpose.msra.mxu0 0
        %1567 = vmatprep.subr.bf16.mxu0 0
        %1568 = vmatpush1.bf16.xpose.msra.mxu0 0
        %1569 = vmatprep.subr.bf16.mxu0 0
        %1570 = vmatpush1.bf16.xpose.msra.mxu0 0
        %1571 = vmatprep.subr.bf16.mxu0 0
        %1572 = vmatpush1.bf16.xpose.msra.mxu0 0
        %1573 = vmatprep.subr.bf16.mxu0 0
        %1574 = vmatpush1.bf16.xpose.msra.mxu0 %v1520
        %1575 = vmatprep.subr.bf16.mxu0 0
        %1576 = vmatpush2.bf16.xpose.msra.mxu0 0
        %1577 = vmatprep.subr.bf16.mxu0 0
        %1578 = vmatpush2.bf16.xpose.msra.mxu0 0
        %1579 = vmatprep.subr.bf16.mxu0 0
        %1580 = vmatpush2.bf16.xpose.msra.mxu0 0
        %1581 = vmatprep.subr.bf16.mxu0 0
        %1582 = vmatpush2.bf16.xpose.msra.mxu0 0
        %1583 = vmatprep.subr.bf16.mxu0 0
        %1584 = vmatpush2.bf16.xpose.msra.mxu0 0
        %1585 = vmatprep.subr.bf16.mxu0 0
        %1586 = vmatpush2.bf16.xpose.msra.mxu0 0
        %1587 = vmatprep.subr.bf16.mxu0 0
        %1588 = vmatpush2.bf16.xpose.msra.mxu0 0
        %1589 = vmatprep.subr.bf16.mxu0 0
        %1590 = vmatpush2.bf16.xpose.msra.mxu0 0
        %1591 = vmatprep.mubr.bf16.mxu0 0
        %1592 = vmatmul.mubr.bf16.gmra.mxu0 %v1491
        %v1593 = vpop.f32.mrf.mxu0
        %v1594 = vadd.f32 0.0, %v1593
        %v1595 = vpop.f32.mrf.mxu0
        %v1596 = vpop.f32.mrf.mxu0
        %v1597 = vpop.f32.mrf.mxu0
        %1598 = vdwg.mxu0
        %1599 = vmatprep.subr.bf16.mxu0 0
        %1600 = vmatpush1.bf16.xpose.msra.mxu0 0
        %1601 = vmatprep.subr.bf16.mxu0 0
        %1602 = vmatpush1.bf16.xpose.msra.mxu0 0
        %1603 = vmatprep.subr.bf16.mxu0 0
        %1604 = vmatpush1.bf16.xpose.msra.mxu0 0
        %1605 = vmatprep.subr.bf16.mxu0 0
        %1606 = vmatpush1.bf16.xpose.msra.mxu0 0
        %1607 = vmatprep.subr.bf16.mxu0 0
        %1608 = vmatpush1.bf16.xpose.msra.mxu0 0
        %1609 = vmatprep.subr.bf16.mxu0 0
        %1610 = vmatpush1.bf16.xpose.msra.mxu0 0
        %1611 = vmatprep.subr.bf16.mxu0 0
        %1612 = vmatpush1.bf16.xpose.msra.mxu0 0
        %1613 = vmatprep.subr.bf16.mxu0 0
        %1614 = vmatpush1.bf16.xpose.msra.mxu0 %v1527
        %1615 = vmatprep.subr.bf16.mxu0 0
        %1616 = vmatpush2.bf16.xpose.msra.mxu0 0
        %1617 = vmatprep.subr.bf16.mxu0 0
        %1618 = vmatpush2.bf16.xpose.msra.mxu0 0
        %1619 = vmatprep.subr.bf16.mxu0 0
        %1620 = vmatpush2.bf16.xpose.msra.mxu0 0
        %1621 = vmatprep.subr.bf16.mxu0 0
        %1622 = vmatpush2.bf16.xpose.msra.mxu0 0
        %1623 = vmatprep.subr.bf16.mxu0 0
        %1624 = vmatpush2.bf16.xpose.msra.mxu0 0
        %1625 = vmatprep.subr.bf16.mxu0 0
        %1626 = vmatpush2.bf16.xpose.msra.mxu0 0
        %1627 = vmatprep.subr.bf16.mxu0 0
        %1628 = vmatpush2.bf16.xpose.msra.mxu0 0
        %1629 = vmatprep.subr.bf16.mxu0 0
        %1630 = vmatpush2.bf16.xpose.msra.mxu0 0
        %1631 = vmatprep.mubr.bf16.mxu0 0
        %1632 = vmatmul.mubr.bf16.gmra.mxu0 %v1498
        %v1633 = vpop.f32.mrf.mxu0
        %v1634 = vadd.f32 0.0, %v1633
        %v1635 = vpop.f32.mrf.mxu0
        %v1636 = vpop.f32.mrf.mxu0
        %v1637 = vpop.f32.mrf.mxu0
        %1638 = vdwg.mxu0
        %1639 = vmatprep.subr.bf16.mxu0 0
        %1640 = vmatpush1.bf16.xpose.msra.mxu0 0
        %1641 = vmatprep.subr.bf16.mxu0 0
        %1642 = vmatpush1.bf16.xpose.msra.mxu0 0
        %1643 = vmatprep.subr.bf16.mxu0 0
        %1644 = vmatpush1.bf16.xpose.msra.mxu0 0
        %1645 = vmatprep.subr.bf16.mxu0 0
        %1646 = vmatpush1.bf16.xpose.msra.mxu0 0
        %1647 = vmatprep.subr.bf16.mxu0 0
        %1648 = vmatpush1.bf16.xpose.msra.mxu0 0
        %1649 = vmatprep.subr.bf16.mxu0 0
        %1650 = vmatpush1.bf16.xpose.msra.mxu0 0
        %1651 = vmatprep.subr.bf16.mxu0 0
        %1652 = vmatpush1.bf16.xpose.msra.mxu0 0
        %1653 = vmatprep.subr.bf16.mxu0 0
        %1654 = vmatpush1.bf16.xpose.msra.mxu0 %v1528
        %1655 = vmatprep.subr.bf16.mxu0 0
        %1656 = vmatpush2.bf16.xpose.msra.mxu0 0
        %1657 = vmatprep.subr.bf16.mxu0 0
        %1658 = vmatpush2.bf16.xpose.msra.mxu0 0
        %1659 = vmatprep.subr.bf16.mxu0 0
        %1660 = vmatpush2.bf16.xpose.msra.mxu0 0
        %1661 = vmatprep.subr.bf16.mxu0 0
        %1662 = vmatpush2.bf16.xpose.msra.mxu0 0
        %1663 = vmatprep.subr.bf16.mxu0 0
        %1664 = vmatpush2.bf16.xpose.msra.mxu0 0
        %1665 = vmatprep.subr.bf16.mxu0 0
        %1666 = vmatpush2.bf16.xpose.msra.mxu0 0
        %1667 = vmatprep.subr.bf16.mxu0 0
        %1668 = vmatpush2.bf16.xpose.msra.mxu0 0
        %1669 = vmatprep.subr.bf16.mxu0 0
        %1670 = vmatpush2.bf16.xpose.msra.mxu0 0
        %1671 = vmatprep.mubr.bf16.mxu0 0
        %1672 = vmatmul.mubr.bf16.gmra.mxu0 %v1499
        %v1673 = vpop.f32.mrf.mxu0
        %v1674 = vadd.f32 0.0, %v1673
        %v1675 = vpop.f32.mrf.mxu0
        %v1676 = vpop.f32.mrf.mxu0
        %v1677 = vpop.f32.mrf.mxu0
        %1678 = vdwg.mxu0
        %1679 = vmatprep.subr.bf16.mxu0 0
        %1680 = vmatpush1.bf16.xpose.msra.mxu0 0
        %1681 = vmatprep.subr.bf16.mxu0 0
        %1682 = vmatpush1.bf16.xpose.msra.mxu0 0
        %1683 = vmatprep.subr.bf16.mxu0 0
        %1684 = vmatpush1.bf16.xpose.msra.mxu0 0
        %1685 = vmatprep.subr.bf16.mxu0 0
        %1686 = vmatpush1.bf16.xpose.msra.mxu0 0
        %1687 = vmatprep.subr.bf16.mxu0 0
        %1688 = vmatpush1.bf16.xpose.msra.mxu0 0
        %1689 = vmatprep.subr.bf16.mxu0 0
        %1690 = vmatpush1.bf16.xpose.msra.mxu0 0
        %1691 = vmatprep.subr.bf16.mxu0 0
        %1692 = vmatpush1.bf16.xpose.msra.mxu0 0
        %1693 = vmatprep.subr.bf16.mxu0 0
        %1694 = vmatpush1.bf16.xpose.msra.mxu0 %v1529
        %1695 = vmatprep.subr.bf16.mxu0 0
        %1696 = vmatpush2.bf16.xpose.msra.mxu0 0
        %1697 = vmatprep.subr.bf16.mxu0 0
        %1698 = vmatpush2.bf16.xpose.msra.mxu0 0
        %1699 = vmatprep.subr.bf16.mxu0 0
        %1700 = vmatpush2.bf16.xpose.msra.mxu0 0
        %1701 = vmatprep.subr.bf16.mxu0 0
        %1702 = vmatpush2.bf16.xpose.msra.mxu0 0
        %1703 = vmatprep.subr.bf16.mxu0 0
        %1704 = vmatpush2.bf16.xpose.msra.mxu0 0
        %1705 = vmatprep.subr.bf16.mxu0 0
        %1706 = vmatpush2.bf16.xpose.msra.mxu0 0
        %1707 = vmatprep.subr.bf16.mxu0 0
        %1708 = vmatpush2.bf16.xpose.msra.mxu0 0
        %1709 = vmatprep.subr.bf16.mxu0 0
        %1710 = vmatpush2.bf16.xpose.msra.mxu0 0
        %1711 = vmatprep.mubr.bf16.mxu0 0
        %1712 = vmatmul.mubr.bf16.gmra.mxu0 %v1500
        %v1713 = vpop.f32.mrf.mxu0
        %v1714 = vadd.f32 0.0, %v1713
        %v1715 = vpop.f32.mrf.mxu0
        %v1716 = vpop.f32.mrf.mxu0
        %v1717 = vpop.f32.mrf.mxu0
        %1718 = vdwg.mxu0
        %vm1719 = vcmask 9216
        %v1720 = vsel %vm1719, %v1594, -inf
        %1721 = vmax.xlane.f32.xlu0 %v1720
        %v1722 = vpop.xlane.xlu0 %1721
        %v1723 = vsel %vm1719, %v1634, -inf
        %1724 = vmax.xlane.f32.xlu0 %v1723
        %v1725 = vpop.xlane.xlu0 %1724
        %v1726 = vsel %vm1719, %v1674, -inf
        %1727 = vmax.xlane.f32.xlu0 %v1726
        %v1728 = vpop.xlane.xlu0 %1727
        %v1729 = vsel %vm1719, %v1714, -inf
        %1730 = vmax.xlane.f32.xlu0 %v1729
        %v1731 = vpop.xlane.xlu0 %1730
        %v1732 = vsub.f32 %v1594, %v1722
        %v1733 = vsub.f32 %v1634, %v1725
        %v1734 = vsub.f32 %v1674, %v1728
        %v1735 = vsub.f32 %v1714, %v1731
        %v1736 = vmul.f32 %v1732, 1.442695
        %v1737 = vpow.pop %v1736
        %v1738 = vmul.f32 %v1733, 1.442695
        %v1739 = vpow.pop %v1738
        %v1740 = vmul.f32 %v1734, 1.442695
        %v1741 = vpow.pop %v1740
        %v1742 = vmul.f32 %v1735, 1.442695
        %v1743 = vpow.pop %v1742
        %v1744 = vsel %vm1719, %v1737, 0.0
        %1745 = vadd.xlane.f32.xlu0 %v1744
        %v1746 = vpop.xlane.xlu0 %1745
        %v1747 = vsel %vm1719, %v1739, 0.0
        %1748 = vadd.xlane.f32.xlu0 %v1747
        %v1749 = vpop.xlane.xlu0 %1748
        %v1750 = vsel %vm1719, %v1741, 0.0
        %1751 = vadd.xlane.f32.xlu0 %v1750
        %v1752 = vpop.xlane.xlu0 %1751
        %v1753 = vsel %vm1719, %v1743, 0.0
        %1754 = vadd.xlane.f32.xlu0 %v1753
        %v1755 = vpop.xlane.xlu0 %1754
        %v1756 = vrcp.pop %v1746
        %v1757 = vrcp.pop %v1749
        %v1758 = vrcp.pop %v1752
        %v1759 = vrcp.pop %v1755
        %v1760 = vmul.f32 %v1737, %v1756
        %v1761 = vmul.f32 %v1739, %v1757
        %v1762 = vmul.f32 %v1741, %v1758
        %v1763 = vmul.f32 %v1743, %v1759
        %v1764 = vpack.c.bf16 %v1760, %v1760
        %v1765 = vpack.c.bf16 %v1761, %v1761
        %v1766 = vpack.c.bf16 %v1762, %v1762
        %v1767 = vpack.c.bf16 %v1763, %v1763
        %vm1768 = vcmask 15360
        %v1770 = vsel %vm1768, %v1764, 0
        %vm1772 = vcmask 1040384
        %v1774 = vsel %vm1772, %v1549, 0
        %1776 = vmatprep.subr.bf16.mxu0 0
        %1777 = vmatpush1.bf16.msra.mxu0 0
        %1778 = vmatprep.subr.bf16.mxu0 0
        %1779 = vmatpush1.bf16.msra.mxu0 0
        %1780 = vmatprep.subr.bf16.mxu0 0
        %1781 = vmatpush1.bf16.msra.mxu0 0
        %1782 = vmatprep.subr.bf16.mxu0 0
        %1783 = vmatpush1.bf16.msra.mxu0 0
        %1784 = vmatprep.subr.bf16.mxu0 0
        %1785 = vmatpush1.bf16.msra.mxu0 0
        %1786 = vmatprep.subr.bf16.mxu0 0
        %1787 = vmatpush1.bf16.msra.mxu0 0
        %1788 = vmatprep.subr.bf16.mxu0 0
        %1789 = vmatpush1.bf16.msra.mxu0 0
        %1790 = vmatprep.subr.bf16.mxu0 0
        %1791 = vmatpush1.bf16.msra.mxu0 %v1774
        %1792 = vmatprep.subr.bf16.mxu0 0
        %1793 = vmatpush2.bf16.msra.mxu0 0
        %1794 = vmatprep.subr.bf16.mxu0 0
        %1795 = vmatpush2.bf16.msra.mxu0 0
        %1796 = vmatprep.subr.bf16.mxu0 0
        %1797 = vmatpush2.bf16.msra.mxu0 0
        %1798 = vmatprep.subr.bf16.mxu0 0
        %1799 = vmatpush2.bf16.msra.mxu0 0
        %1800 = vmatprep.subr.bf16.mxu0 0
        %1801 = vmatpush2.bf16.msra.mxu0 0
        %1802 = vmatprep.subr.bf16.mxu0 0
        %1803 = vmatpush2.bf16.msra.mxu0 0
        %1804 = vmatprep.subr.bf16.mxu0 0
        %1805 = vmatpush2.bf16.msra.mxu0 0
        %1806 = vmatprep.subr.bf16.mxu0 0
        %1807 = vmatpush2.bf16.msra.mxu0 0
        %1808 = vmatprep.mubr.bf16.mxu0 0
        %1809 = vmatmul.mubr.bf16.gmra.mxu0 %v1770
        %v1810 = vpop.f32.mrf.mxu0
        %v1811 = vadd.f32 0.0, %v1810
        %v1812 = vpop.f32.mrf.mxu0
        %v1813 = vpop.f32.mrf.mxu0
        %v1814 = vpop.f32.mrf.mxu0
        %1815 = vdwg.mxu0
        %v1817 = vsel %vm1768, %v1765, 0
        %v1820 = vsel %vm1772, %v1556, 0
        %1822 = vmatprep.subr.bf16.mxu0 0
        %1823 = vmatpush1.bf16.msra.mxu0 0
        %1824 = vmatprep.subr.bf16.mxu0 0
        %1825 = vmatpush1.bf16.msra.mxu0 0
        %1826 = vmatprep.subr.bf16.mxu0 0
        %1827 = vmatpush1.bf16.msra.mxu0 0
        %1828 = vmatprep.subr.bf16.mxu0 0
        %1829 = vmatpush1.bf16.msra.mxu0 0
        %1830 = vmatprep.subr.bf16.mxu0 0
        %1831 = vmatpush1.bf16.msra.mxu0 0
        %1832 = vmatprep.subr.bf16.mxu0 0
        %1833 = vmatpush1.bf16.msra.mxu0 0
        %1834 = vmatprep.subr.bf16.mxu0 0
        %1835 = vmatpush1.bf16.msra.mxu0 0
        %1836 = vmatprep.subr.bf16.mxu0 0
        %1837 = vmatpush1.bf16.msra.mxu0 %v1820
        %1838 = vmatprep.subr.bf16.mxu0 0
        %1839 = vmatpush2.bf16.msra.mxu0 0
        %1840 = vmatprep.subr.bf16.mxu0 0
        %1841 = vmatpush2.bf16.msra.mxu0 0
        %1842 = vmatprep.subr.bf16.mxu0 0
        %1843 = vmatpush2.bf16.msra.mxu0 0
        %1844 = vmatprep.subr.bf16.mxu0 0
        %1845 = vmatpush2.bf16.msra.mxu0 0
        %1846 = vmatprep.subr.bf16.mxu0 0
        %1847 = vmatpush2.bf16.msra.mxu0 0
        %1848 = vmatprep.subr.bf16.mxu0 0
        %1849 = vmatpush2.bf16.msra.mxu0 0
        %1850 = vmatprep.subr.bf16.mxu0 0
        %1851 = vmatpush2.bf16.msra.mxu0 0
        %1852 = vmatprep.subr.bf16.mxu0 0
        %1853 = vmatpush2.bf16.msra.mxu0 0
        %1854 = vmatprep.mubr.bf16.mxu0 0
        %1855 = vmatmul.mubr.bf16.gmra.mxu0 %v1817
        %v1856 = vpop.f32.mrf.mxu0
        %v1857 = vadd.f32 0.0, %v1856
        %v1858 = vpop.f32.mrf.mxu0
        %v1859 = vpop.f32.mrf.mxu0
        %v1860 = vpop.f32.mrf.mxu0
        %1861 = vdwg.mxu0
        %v1863 = vsel %vm1768, %v1766, 0
        %v1866 = vsel %vm1772, %v1557, 0
        %1868 = vmatprep.subr.bf16.mxu0 0
        %1869 = vmatpush1.bf16.msra.mxu0 0
        %1870 = vmatprep.subr.bf16.mxu0 0
        %1871 = vmatpush1.bf16.msra.mxu0 0
        %1872 = vmatprep.subr.bf16.mxu0 0
        %1873 = vmatpush1.bf16.msra.mxu0 0
        %1874 = vmatprep.subr.bf16.mxu0 0
        %1875 = vmatpush1.bf16.msra.mxu0 0
        %1876 = vmatprep.subr.bf16.mxu0 0
        %1877 = vmatpush1.bf16.msra.mxu0 0
        %1878 = vmatprep.subr.bf16.mxu0 0
        %1879 = vmatpush1.bf16.msra.mxu0 0
        %1880 = vmatprep.subr.bf16.mxu0 0
        %1881 = vmatpush1.bf16.msra.mxu0 0
        %1882 = vmatprep.subr.bf16.mxu0 0
        %1883 = vmatpush1.bf16.msra.mxu0 %v1866
        %1884 = vmatprep.subr.bf16.mxu0 0
        %1885 = vmatpush2.bf16.msra.mxu0 0
        %1886 = vmatprep.subr.bf16.mxu0 0
        %1887 = vmatpush2.bf16.msra.mxu0 0
        %1888 = vmatprep.subr.bf16.mxu0 0
        %1889 = vmatpush2.bf16.msra.mxu0 0
        %1890 = vmatprep.subr.bf16.mxu0 0
        %1891 = vmatpush2.bf16.msra.mxu0 0
        %1892 = vmatprep.subr.bf16.mxu0 0
        %1893 = vmatpush2.bf16.msra.mxu0 0
        %1894 = vmatprep.subr.bf16.mxu0 0
        %1895 = vmatpush2.bf16.msra.mxu0 0
        %1896 = vmatprep.subr.bf16.mxu0 0
        %1897 = vmatpush2.bf16.msra.mxu0 0
        %1898 = vmatprep.subr.bf16.mxu0 0
        %1899 = vmatpush2.bf16.msra.mxu0 0
        %1900 = vmatprep.mubr.bf16.mxu0 0
        %1901 = vmatmul.mubr.bf16.gmra.mxu0 %v1863
        %v1902 = vpop.f32.mrf.mxu0
        %v1903 = vadd.f32 0.0, %v1902
        %v1904 = vpop.f32.mrf.mxu0
        %v1905 = vpop.f32.mrf.mxu0
        %v1906 = vpop.f32.mrf.mxu0
        %1907 = vdwg.mxu0
        %v1909 = vsel %vm1768, %v1767, 0
        %v1912 = vsel %vm1772, %v1558, 0
        %1914 = vmatprep.subr.bf16.mxu0 0
        %1915 = vmatpush1.bf16.msra.mxu0 0
        %1916 = vmatprep.subr.bf16.mxu0 0
        %1917 = vmatpush1.bf16.msra.mxu0 0
        %1918 = vmatprep.subr.bf16.mxu0 0
        %1919 = vmatpush1.bf16.msra.mxu0 0
        %1920 = vmatprep.subr.bf16.mxu0 0
        %1921 = vmatpush1.bf16.msra.mxu0 0
        %1922 = vmatprep.subr.bf16.mxu0 0
        %1923 = vmatpush1.bf16.msra.mxu0 0
        %1924 = vmatprep.subr.bf16.mxu0 0
        %1925 = vmatpush1.bf16.msra.mxu0 0
        %1926 = vmatprep.subr.bf16.mxu0 0
        %1927 = vmatpush1.bf16.msra.mxu0 0
        %1928 = vmatprep.subr.bf16.mxu0 0
        %1929 = vmatpush1.bf16.msra.mxu0 %v1912
        %1930 = vmatprep.subr.bf16.mxu0 0
        %1931 = vmatpush2.bf16.msra.mxu0 0
        %1932 = vmatprep.subr.bf16.mxu0 0
        %1933 = vmatpush2.bf16.msra.mxu0 0
        %1934 = vmatprep.subr.bf16.mxu0 0
        %1935 = vmatpush2.bf16.msra.mxu0 0
        %1936 = vmatprep.subr.bf16.mxu0 0
        %1937 = vmatpush2.bf16.msra.mxu0 0
        %1938 = vmatprep.subr.bf16.mxu0 0
        %1939 = vmatpush2.bf16.msra.mxu0 0
        %1940 = vmatprep.subr.bf16.mxu0 0
        %1941 = vmatpush2.bf16.msra.mxu0 0
        %1942 = vmatprep.subr.bf16.mxu0 0
        %1943 = vmatpush2.bf16.msra.mxu0 0
        %1944 = vmatprep.subr.bf16.mxu0 0
        %1945 = vmatpush2.bf16.msra.mxu0 0
        %1946 = vmatprep.mubr.bf16.mxu0 0
        %1947 = vmatmul.mubr.bf16.gmra.mxu0 %v1909
        %v1948 = vpop.f32.mrf.mxu0
        %v1949 = vadd.f32 0.0, %v1948
        %v1950 = vpop.f32.mrf.mxu0
        %v1951 = vpop.f32.mrf.mxu0
        %v1952 = vpop.f32.mrf.mxu0
        %1953 = vdwg.mxu0
        %v1958 = vcombine.low %v1811, %v1857
        %v1959 = vcombine.low %v1903, %v1949
        %v1961 = vunpack.c.l.s4 1983009808
        %v1962 = vunpack.c.0.s8 %v1961
        %v1963 = vlaneseq
        %v1964 = vshrl.u32 %v1963, 7
        %v1965 = vsub.s32 %v1962, %v1964
        %v1966 = vrot.slane %v1958, %v1965
        %v1968 = vunpack.c.l.s4 1983009808
        %v1969 = vunpack.c.0.s8 %v1968
        %v1970 = vlaneseq
        %v1971 = vshrl.u32 %v1970, 7
        %v1972 = vsub.s32 %v1969, %v1971
        %v1973 = vrot.slane %v1959, %v1972
        %v1974 = vcombine.low %v1966, %v1973
        %v1976 = vpack.c.bf16 %v1974, %v1974
        %1977 = vst [vmem:[#allocation3] sm:$0xf] %v1976
        %v1980 = vunpack.c.l.s4 1966171168
        %v1981 = vunpack.c.0.s8 %v1980
        %v1982 = vlaneseq
        %v1983 = vshrl.u32 %v1982, 7
        %v1984 = vsub.s32 %v1981, %v1983
        %v1985 = vrot.slane %v1471, %v1984
        %v1986 = vcombine.high %v1985, %v1985
        %v1988 = vunpack.c.l.s4 1966171168
        %v1989 = vunpack.c.0.s8 %v1988
        %v1990 = vlaneseq
        %v1991 = vshrl.u32 %v1990, 7
        %v1992 = vsub.s32 %v1989, %v1991
        %v1993 = vrot.slane %v1985, %v1992
        %v1995 = vunpack.c.l.s4 1966171168
        %v1996 = vunpack.c.0.s8 %v1995
        %v1997 = vlaneseq
        %v1998 = vshrl.u32 %v1997, 7
        %v1999 = vsub.s32 %v1996, %v1998
        %v2000 = vrot.slane %v1986, %v1999
        %v2001 = vcombine.high %v1993, %v1993
        %v2002 = vcombine.high %v2000, %v2000
        %v2009 = vunpack.c.l.s4 1966171168
        %v2010 = vunpack.c.0.s8 %v2009
        %v2011 = vlaneseq
        %v2012 = vshrl.u32 %v2011, 7
        %v2013 = vsub.s32 %v2010, %v2012
        %v2014 = vrot.slane %v1473, %v2013
        %v2015 = vcombine.high %v2014, %v2014
        %v2017 = vunpack.c.l.s4 1966171168
        %v2018 = vunpack.c.0.s8 %v2017
        %v2019 = vlaneseq
        %v2020 = vshrl.u32 %v2019, 7
        %v2021 = vsub.s32 %v2018, %v2020
        %v2022 = vrot.slane %v2014, %v2021
        %v2024 = vunpack.c.l.s4 1966171168
        %v2025 = vunpack.c.0.s8 %v2024
        %v2026 = vlaneseq
        %v2027 = vshrl.u32 %v2026, 7
        %v2028 = vsub.s32 %v2025, %v2027
        %v2029 = vrot.slane %v2015, %v2028
        %v2030 = vcombine.high %v2022, %v2022
        %v2031 = vcombine.high %v2029, %v2029
        %v2038 = vunpack.c.l.s4 1966171168
        %v2039 = vunpack.c.0.s8 %v2038
        %v2040 = vlaneseq
        %v2041 = vshrl.u32 %v2040, 7
        %v2042 = vsub.s32 %v2039, %v2041
        %v2043 = vrot.slane %v1475, %v2042
        %v2044 = vcombine.high %v2043, %v2043
        %v2046 = vunpack.c.l.s4 1966171168
        %v2047 = vunpack.c.0.s8 %v2046
        %v2048 = vlaneseq
        %v2049 = vshrl.u32 %v2048, 7
        %v2050 = vsub.s32 %v2047, %v2049
        %v2051 = vrot.slane %v2043, %v2050
        %v2053 = vunpack.c.l.s4 1966171168
        %v2054 = vunpack.c.0.s8 %v2053
        %v2055 = vlaneseq
        %v2056 = vshrl.u32 %v2055, 7
        %v2057 = vsub.s32 %v2054, %v2056
        %v2058 = vrot.slane %v2044, %v2057
        %v2059 = vcombine.high %v2051, %v2051
        %v2060 = vcombine.high %v2058, %v2058
        %2061 = vmatprep.subr.bf16.mxu0 0
        %2062 = vmatpush1.bf16.xpose.msra.mxu0 0
        %2063 = vmatprep.subr.bf16.mxu0 0
        %2064 = vmatpush1.bf16.xpose.msra.mxu0 0
        %2065 = vmatprep.subr.bf16.mxu0 0
        %2066 = vmatpush1.bf16.xpose.msra.mxu0 0
        %2067 = vmatprep.subr.bf16.mxu0 0
        %2068 = vmatpush1.bf16.xpose.msra.mxu0 0
        %2069 = vmatprep.subr.bf16.mxu0 0
        %2070 = vmatpush1.bf16.xpose.msra.mxu0 0
        %2071 = vmatprep.subr.bf16.mxu0 0
        %2072 = vmatpush1.bf16.xpose.msra.mxu0 0
        %2073 = vmatprep.subr.bf16.mxu0 0
        %2074 = vmatpush1.bf16.xpose.msra.mxu0 0
        %2075 = vmatprep.subr.bf16.mxu0 0
        %2076 = vmatpush1.bf16.xpose.msra.mxu0 %v2022
        %2077 = vmatprep.subr.bf16.mxu0 0
        %2078 = vmatpush2.bf16.xpose.msra.mxu0 0
        %2079 = vmatprep.subr.bf16.mxu0 0
        %2080 = vmatpush2.bf16.xpose.msra.mxu0 0
        %2081 = vmatprep.subr.bf16.mxu0 0
        %2082 = vmatpush2.bf16.xpose.msra.mxu0 0
        %2083 = vmatprep.subr.bf16.mxu0 0
        %2084 = vmatpush2.bf16.xpose.msra.mxu0 0
        %2085 = vmatprep.subr.bf16.mxu0 0
        %2086 = vmatpush2.bf16.xpose.msra.mxu0 0
        %2087 = vmatprep.subr.bf16.mxu0 0
        %2088 = vmatpush2.bf16.xpose.msra.mxu0 0
        %2089 = vmatprep.subr.bf16.mxu0 0
        %2090 = vmatpush2.bf16.xpose.msra.mxu0 0
        %2091 = vmatprep.subr.bf16.mxu0 0
        %2092 = vmatpush2.bf16.xpose.msra.mxu0 0
        %2093 = vmatprep.mubr.bf16.mxu0 0
        %2094 = vmatmul.mubr.bf16.gmra.mxu0 %v1993
        %v2095 = vpop.f32.mrf.mxu0
        %v2096 = vadd.f32 0.0, %v2095
        %v2097 = vpop.f32.mrf.mxu0
        %v2098 = vpop.f32.mrf.mxu0
        %v2099 = vpop.f32.mrf.mxu0
        %2100 = vdwg.mxu0
        %2101 = vmatprep.subr.bf16.mxu0 0
        %2102 = vmatpush1.bf16.xpose.msra.mxu0 0
        %2103 = vmatprep.subr.bf16.mxu0 0
        %2104 = vmatpush1.bf16.xpose.msra.mxu0 0
        %2105 = vmatprep.subr.bf16.mxu0 0
        %2106 = vmatpush1.bf16.xpose.msra.mxu0 0
        %2107 = vmatprep.subr.bf16.mxu0 0
        %2108 = vmatpush1.bf16.xpose.msra.mxu0 0
        %2109 = vmatprep.subr.bf16.mxu0 0
        %2110 = vmatpush1.bf16.xpose.msra.mxu0 0
        %2111 = vmatprep.subr.bf16.mxu0 0
        %2112 = vmatpush1.bf16.xpose.msra.mxu0 0
        %2113 = vmatprep.subr.bf16.mxu0 0
        %2114 = vmatpush1.bf16.xpose.msra.mxu0 0
        %2115 = vmatprep.subr.bf16.mxu0 0
        %2116 = vmatpush1.bf16.xpose.msra.mxu0 %v2029
        %2117 = vmatprep.subr.bf16.mxu0 0
        %2118 = vmatpush2.bf16.xpose.msra.mxu0 0
        %2119 = vmatprep.subr.bf16.mxu0 0
        %2120 = vmatpush2.bf16.xpose.msra.mxu0 0
        %2121 = vmatprep.subr.bf16.mxu0 0
        %2122 = vmatpush2.bf16.xpose.msra.mxu0 0
        %2123 = vmatprep.subr.bf16.mxu0 0
        %2124 = vmatpush2.bf16.xpose.msra.mxu0 0
        %2125 = vmatprep.subr.bf16.mxu0 0
        %2126 = vmatpush2.bf16.xpose.msra.mxu0 0
        %2127 = vmatprep.subr.bf16.mxu0 0
        %2128 = vmatpush2.bf16.xpose.msra.mxu0 0
        %2129 = vmatprep.subr.bf16.mxu0 0
        %2130 = vmatpush2.bf16.xpose.msra.mxu0 0
        %2131 = vmatprep.subr.bf16.mxu0 0
        %2132 = vmatpush2.bf16.xpose.msra.mxu0 0
        %2133 = vmatprep.mubr.bf16.mxu0 0
        %2134 = vmatmul.mubr.bf16.gmra.mxu0 %v2000
        %v2135 = vpop.f32.mrf.mxu0
        %v2136 = vadd.f32 0.0, %v2135
        %v2137 = vpop.f32.mrf.mxu0
        %v2138 = vpop.f32.mrf.mxu0
        %v2139 = vpop.f32.mrf.mxu0
        %2140 = vdwg.mxu0
        %2141 = vmatprep.subr.bf16.mxu0 0
        %2142 = vmatpush1.bf16.xpose.msra.mxu0 0
        %2143 = vmatprep.subr.bf16.mxu0 0
        %2144 = vmatpush1.bf16.xpose.msra.mxu0 0
        %2145 = vmatprep.subr.bf16.mxu0 0
        %2146 = vmatpush1.bf16.xpose.msra.mxu0 0
        %2147 = vmatprep.subr.bf16.mxu0 0
        %2148 = vmatpush1.bf16.xpose.msra.mxu0 0
        %2149 = vmatprep.subr.bf16.mxu0 0
        %2150 = vmatpush1.bf16.xpose.msra.mxu0 0
        %2151 = vmatprep.subr.bf16.mxu0 0
        %2152 = vmatpush1.bf16.xpose.msra.mxu0 0
        %2153 = vmatprep.subr.bf16.mxu0 0
        %2154 = vmatpush1.bf16.xpose.msra.mxu0 0
        %2155 = vmatprep.subr.bf16.mxu0 0
        %2156 = vmatpush1.bf16.xpose.msra.mxu0 %v2030
        %2157 = vmatprep.subr.bf16.mxu0 0
        %2158 = vmatpush2.bf16.xpose.msra.mxu0 0
        %2159 = vmatprep.subr.bf16.mxu0 0
        %2160 = vmatpush2.bf16.xpose.msra.mxu0 0
        %2161 = vmatprep.subr.bf16.mxu0 0
        %2162 = vmatpush2.bf16.xpose.msra.mxu0 0
        %2163 = vmatprep.subr.bf16.mxu0 0
        %2164 = vmatpush2.bf16.xpose.msra.mxu0 0
        %2165 = vmatprep.subr.bf16.mxu0 0
        %2166 = vmatpush2.bf16.xpose.msra.mxu0 0
        %2167 = vmatprep.subr.bf16.mxu0 0
        %2168 = vmatpush2.bf16.xpose.msra.mxu0 0
        %2169 = vmatprep.subr.bf16.mxu0 0
        %2170 = vmatpush2.bf16.xpose.msra.mxu0 0
        %2171 = vmatprep.subr.bf16.mxu0 0
        %2172 = vmatpush2.bf16.xpose.msra.mxu0 0
        %2173 = vmatprep.mubr.bf16.mxu0 0
        %2174 = vmatmul.mubr.bf16.gmra.mxu0 %v2001
        %v2175 = vpop.f32.mrf.mxu0
        %v2176 = vadd.f32 0.0, %v2175
        %v2177 = vpop.f32.mrf.mxu0
        %v2178 = vpop.f32.mrf.mxu0
        %v2179 = vpop.f32.mrf.mxu0
        %2180 = vdwg.mxu0
        %2181 = vmatprep.subr.bf16.mxu0 0
        %2182 = vmatpush1.bf16.xpose.msra.mxu0 0
        %2183 = vmatprep.subr.bf16.mxu0 0
        %2184 = vmatpush1.bf16.xpose.msra.mxu0 0
        %2185 = vmatprep.subr.bf16.mxu0 0
        %2186 = vmatpush1.bf16.xpose.msra.mxu0 0
        %2187 = vmatprep.subr.bf16.mxu0 0
        %2188 = vmatpush1.bf16.xpose.msra.mxu0 0
        %2189 = vmatprep.subr.bf16.mxu0 0
        %2190 = vmatpush1.bf16.xpose.msra.mxu0 0
        %2191 = vmatprep.subr.bf16.mxu0 0
        %2192 = vmatpush1.bf16.xpose.msra.mxu0 0
        %2193 = vmatprep.subr.bf16.mxu0 0
        %2194 = vmatpush1.bf16.xpose.msra.mxu0 0
        %2195 = vmatprep.subr.bf16.mxu0 0
        %2196 = vmatpush1.bf16.xpose.msra.mxu0 %v2031
        %2197 = vmatprep.subr.bf16.mxu0 0
        %2198 = vmatpush2.bf16.xpose.msra.mxu0 0
        %2199 = vmatprep.subr.bf16.mxu0 0
        %2200 = vmatpush2.bf16.xpose.msra.mxu0 0
        %2201 = vmatprep.subr.bf16.mxu0 0
        %2202 = vmatpush2.bf16.xpose.msra.mxu0 0
        %2203 = vmatprep.subr.bf16.mxu0 0
        %2204 = vmatpush2.bf16.xpose.msra.mxu0 0
        %2205 = vmatprep.subr.bf16.mxu0 0
        %2206 = vmatpush2.bf16.xpose.msra.mxu0 0
        %2207 = vmatprep.subr.bf16.mxu0 0
        %2208 = vmatpush2.bf16.xpose.msra.mxu0 0
        %2209 = vmatprep.subr.bf16.mxu0 0
        %2210 = vmatpush2.bf16.xpose.msra.mxu0 0
        %2211 = vmatprep.subr.bf16.mxu0 0
        %2212 = vmatpush2.bf16.xpose.msra.mxu0 0
        %2213 = vmatprep.mubr.bf16.mxu0 0
        %2214 = vmatmul.mubr.bf16.gmra.mxu0 %v2002
        %v2215 = vpop.f32.mrf.mxu0
        %v2216 = vadd.f32 0.0, %v2215
        %v2217 = vpop.f32.mrf.mxu0
        %v2218 = vpop.f32.mrf.mxu0
        %v2219 = vpop.f32.mrf.mxu0
        %2220 = vdwg.mxu0
        %v2221 = vsel %vm1719, %v2096, -inf
        %2222 = vmax.xlane.f32.xlu0 %v2221
        %v2223 = vpop.xlane.xlu0 %2222
        %v2224 = vsel %vm1719, %v2136, -inf
        %2225 = vmax.xlane.f32.xlu0 %v2224
        %v2226 = vpop.xlane.xlu0 %2225
        %v2227 = vsel %vm1719, %v2176, -inf
        %2228 = vmax.xlane.f32.xlu0 %v2227
        %v2229 = vpop.xlane.xlu0 %2228
        %v2230 = vsel %vm1719, %v2216, -inf
        %2231 = vmax.xlane.f32.xlu0 %v2230
        %v2232 = vpop.xlane.xlu0 %2231
        %v2233 = vsub.f32 %v2096, %v2223
        %v2234 = vsub.f32 %v2136, %v2226
        %v2235 = vsub.f32 %v2176, %v2229
        %v2236 = vsub.f32 %v2216, %v2232
        %v2237 = vmul.f32 %v2233, 1.442695
        %v2238 = vpow.pop %v2237
        %v2239 = vmul.f32 %v2234, 1.442695
        %v2240 = vpow.pop %v2239
        %v2241 = vmul.f32 %v2235, 1.442695
        %v2242 = vpow.pop %v2241
        %v2243 = vmul.f32 %v2236, 1.442695
        %v2244 = vpow.pop %v2243
        %v2245 = vsel %vm1719, %v2238, 0.0
        %2246 = vadd.xlane.f32.xlu0 %v2245
        %v2247 = vpop.xlane.xlu0 %2246
        %v2248 = vsel %vm1719, %v2240, 0.0
        %2249 = vadd.xlane.f32.xlu0 %v2248
        %v2250 = vpop.xlane.xlu0 %2249
        %v2251 = vsel %vm1719, %v2242, 0.0
        %2252 = vadd.xlane.f32.xlu0 %v2251
        %v2253 = vpop.xlane.xlu0 %2252
        %v2254 = vsel %vm1719, %v2244, 0.0
        %2255 = vadd.xlane.f32.xlu0 %v2254
        %v2256 = vpop.xlane.xlu0 %2255
        %v2257 = vrcp.pop %v2247
        %v2258 = vrcp.pop %v2250
        %v2259 = vrcp.pop %v2253
        %v2260 = vrcp.pop %v2256
        %v2261 = vmul.f32 %v2238, %v2257
        %v2262 = vmul.f32 %v2240, %v2258
        %v2263 = vmul.f32 %v2242, %v2259
        %v2264 = vmul.f32 %v2244, %v2260
        %v2265 = vpack.c.bf16 %v2261, %v2261
        %v2266 = vpack.c.bf16 %v2262, %v2262
        %v2267 = vpack.c.bf16 %v2263, %v2263
        %v2268 = vpack.c.bf16 %v2264, %v2264
        %v2270 = vsel %vm1768, %v2265, 0
        %v2273 = vsel %vm1772, %v2051, 0
        %2275 = vmatprep.subr.bf16.mxu0 0
        %2276 = vmatpush1.bf16.msra.mxu0 0
        %2277 = vmatprep.subr.bf16.mxu0 0
        %2278 = vmatpush1.bf16.msra.mxu0 0
        %2279 = vmatprep.subr.bf16.mxu0 0
        %2280 = vmatpush1.bf16.msra.mxu0 0
        %2281 = vmatprep.subr.bf16.mxu0 0
        %2282 = vmatpush1.bf16.msra.mxu0 0
        %2283 = vmatprep.subr.bf16.mxu0 0
        %2284 = vmatpush1.bf16.msra.mxu0 0
        %2285 = vmatprep.subr.bf16.mxu0 0
        %2286 = vmatpush1.bf16.msra.mxu0 0
        %2287 = vmatprep.subr.bf16.mxu0 0
        %2288 = vmatpush1.bf16.msra.mxu0 0
        %2289 = vmatprep.subr.bf16.mxu0 0
        %2290 = vmatpush1.bf16.msra.mxu0 %v2273
        %2291 = vmatprep.subr.bf16.mxu0 0
        %2292 = vmatpush2.bf16.msra.mxu0 0
        %2293 = vmatprep.subr.bf16.mxu0 0
        %2294 = vmatpush2.bf16.msra.mxu0 0
        %2295 = vmatprep.subr.bf16.mxu0 0
        %2296 = vmatpush2.bf16.msra.mxu0 0
        %2297 = vmatprep.subr.bf16.mxu0 0
        %2298 = vmatpush2.bf16.msra.mxu0 0
        %2299 = vmatprep.subr.bf16.mxu0 0
        %2300 = vmatpush2.bf16.msra.mxu0 0
        %2301 = vmatprep.subr.bf16.mxu0 0
        %2302 = vmatpush2.bf16.msra.mxu0 0
        %2303 = vmatprep.subr.bf16.mxu0 0
        %2304 = vmatpush2.bf16.msra.mxu0 0
        %2305 = vmatprep.subr.bf16.mxu0 0
        %2306 = vmatpush2.bf16.msra.mxu0 0
        %2307 = vmatprep.mubr.bf16.mxu0 0
        %2308 = vmatmul.mubr.bf16.gmra.mxu0 %v2270
        %v2309 = vpop.f32.mrf.mxu0
        %v2310 = vadd.f32 0.0, %v2309
        %v2311 = vpop.f32.mrf.mxu0
        %v2312 = vpop.f32.mrf.mxu0
        %v2313 = vpop.f32.mrf.mxu0
        %2314 = vdwg.mxu0
        %v2316 = vsel %vm1768, %v2266, 0
        %v2319 = vsel %vm1772, %v2058, 0
        %2321 = vmatprep.subr.bf16.mxu0 0
        %2322 = vmatpush1.bf16.msra.mxu0 0
        %2323 = vmatprep.subr.bf16.mxu0 0
        %2324 = vmatpush1.bf16.msra.mxu0 0
        %2325 = vmatprep.subr.bf16.mxu0 0
        %2326 = vmatpush1.bf16.msra.mxu0 0
        %2327 = vmatprep.subr.bf16.mxu0 0
        %2328 = vmatpush1.bf16.msra.mxu0 0
        %2329 = vmatprep.subr.bf16.mxu0 0
        %2330 = vmatpush1.bf16.msra.mxu0 0
        %2331 = vmatprep.subr.bf16.mxu0 0
        %2332 = vmatpush1.bf16.msra.mxu0 0
        %2333 = vmatprep.subr.bf16.mxu0 0
        %2334 = vmatpush1.bf16.msra.mxu0 0
        %2335 = vmatprep.subr.bf16.mxu0 0
        %2336 = vmatpush1.bf16.msra.mxu0 %v2319
        %2337 = vmatprep.subr.bf16.mxu0 0
        %2338 = vmatpush2.bf16.msra.mxu0 0
        %2339 = vmatprep.subr.bf16.mxu0 0
        %2340 = vmatpush2.bf16.msra.mxu0 0
        %2341 = vmatprep.subr.bf16.mxu0 0
        %2342 = vmatpush2.bf16.msra.mxu0 0
        %2343 = vmatprep.subr.bf16.mxu0 0
        %2344 = vmatpush2.bf16.msra.mxu0 0
        %2345 = vmatprep.subr.bf16.mxu0 0
        %2346 = vmatpush2.bf16.msra.mxu0 0
        %2347 = vmatprep.subr.bf16.mxu0 0
        %2348 = vmatpush2.bf16.msra.mxu0 0
        %2349 = vmatprep.subr.bf16.mxu0 0
        %2350 = vmatpush2.bf16.msra.mxu0 0
        %2351 = vmatprep.subr.bf16.mxu0 0
        %2352 = vmatpush2.bf16.msra.mxu0 0
        %2353 = vmatprep.mubr.bf16.mxu0 0
        %2354 = vmatmul.mubr.bf16.gmra.mxu0 %v2316
        %v2355 = vpop.f32.mrf.mxu0
        %v2356 = vadd.f32 0.0, %v2355
        %v2357 = vpop.f32.mrf.mxu0
        %v2358 = vpop.f32.mrf.mxu0
        %v2359 = vpop.f32.mrf.mxu0
        %2360 = vdwg.mxu0
        %v2362 = vsel %vm1768, %v2267, 0
        %v2365 = vsel %vm1772, %v2059, 0
        %2367 = vmatprep.subr.bf16.mxu0 0
        %2368 = vmatpush1.bf16.msra.mxu0 0
        %2369 = vmatprep.subr.bf16.mxu0 0
        %2370 = vmatpush1.bf16.msra.mxu0 0
        %2371 = vmatprep.subr.bf16.mxu0 0
        %2372 = vmatpush1.bf16.msra.mxu0 0
        %2373 = vmatprep.subr.bf16.mxu0 0
        %2374 = vmatpush1.bf16.msra.mxu0 0
        %2375 = vmatprep.subr.bf16.mxu0 0
        %2376 = vmatpush1.bf16.msra.mxu0 0
        %2377 = vmatprep.subr.bf16.mxu0 0
        %2378 = vmatpush1.bf16.msra.mxu0 0
        %2379 = vmatprep.subr.bf16.mxu0 0
        %2380 = vmatpush1.bf16.msra.mxu0 0
        %2381 = vmatprep.subr.bf16.mxu0 0
        %2382 = vmatpush1.bf16.msra.mxu0 %v2365
        %2383 = vmatprep.subr.bf16.mxu0 0
        %2384 = vmatpush2.bf16.msra.mxu0 0
        %2385 = vmatprep.subr.bf16.mxu0 0
        %2386 = vmatpush2.bf16.msra.mxu0 0
        %2387 = vmatprep.subr.bf16.mxu0 0
        %2388 = vmatpush2.bf16.msra.mxu0 0
        %2389 = vmatprep.subr.bf16.mxu0 0
        %2390 = vmatpush2.bf16.msra.mxu0 0
        %2391 = vmatprep.subr.bf16.mxu0 0
        %2392 = vmatpush2.bf16.msra.mxu0 0
        %2393 = vmatprep.subr.bf16.mxu0 0
        %2394 = vmatpush2.bf16.msra.mxu0 0
        %2395 = vmatprep.subr.bf16.mxu0 0
        %2396 = vmatpush2.bf16.msra.mxu0 0
        %2397 = vmatprep.subr.bf16.mxu0 0
        %2398 = vmatpush2.bf16.msra.mxu0 0
        %2399 = vmatprep.mubr.bf16.mxu0 0
        %2400 = vmatmul.mubr.bf16.gmra.mxu0 %v2362
        %v2401 = vpop.f32.mrf.mxu0
        %v2402 = vadd.f32 0.0, %v2401
        %v2403 = vpop.f32.mrf.mxu0
        %v2404 = vpop.f32.mrf.mxu0
        %v2405 = vpop.f32.mrf.mxu0
        %2406 = vdwg.mxu0
        %v2408 = vsel %vm1768, %v2268, 0
        %v2411 = vsel %vm1772, %v2060, 0
        %2413 = vmatprep.subr.bf16.mxu0 0
        %2414 = vmatpush1.bf16.msra.mxu0 0
        %2415 = vmatprep.subr.bf16.mxu0 0
        %2416 = vmatpush1.bf16.msra.mxu0 0
        %2417 = vmatprep.subr.bf16.mxu0 0
        %2418 = vmatpush1.bf16.msra.mxu0 0
        %2419 = vmatprep.subr.bf16.mxu0 0
        %2420 = vmatpush1.bf16.msra.mxu0 0
        %2421 = vmatprep.subr.bf16.mxu0 0
        %2422 = vmatpush1.bf16.msra.mxu0 0
        %2423 = vmatprep.subr.bf16.mxu0 0
        %2424 = vmatpush1.bf16.msra.mxu0 0
        %2425 = vmatprep.subr.bf16.mxu0 0
        %2426 = vmatpush1.bf16.msra.mxu0 0
        %2427 = vmatprep.subr.bf16.mxu0 0
        %2428 = vmatpush1.bf16.msra.mxu0 %v2411
        %2429 = vmatprep.subr.bf16.mxu0 0
        %2430 = vmatpush2.bf16.msra.mxu0 0
        %2431 = vmatprep.subr.bf16.mxu0 0
        %2432 = vmatpush2.bf16.msra.mxu0 0
        %2433 = vmatprep.subr.bf16.mxu0 0
        %2434 = vmatpush2.bf16.msra.mxu0 0
        %2435 = vmatprep.subr.bf16.mxu0 0
        %2436 = vmatpush2.bf16.msra.mxu0 0
        %2437 = vmatprep.subr.bf16.mxu0 0
        %2438 = vmatpush2.bf16.msra.mxu0 0
        %2439 = vmatprep.subr.bf16.mxu0 0
        %2440 = vmatpush2.bf16.msra.mxu0 0
        %2441 = vmatprep.subr.bf16.mxu0 0
        %2442 = vmatpush2.bf16.msra.mxu0 0
        %2443 = vmatprep.subr.bf16.mxu0 0
        %2444 = vmatpush2.bf16.msra.mxu0 0
        %2445 = vmatprep.mubr.bf16.mxu0 0
        %2446 = vmatmul.mubr.bf16.gmra.mxu0 %v2408
        %v2447 = vpop.f32.mrf.mxu0
        %v2448 = vadd.f32 0.0, %v2447
        %v2449 = vpop.f32.mrf.mxu0
        %v2450 = vpop.f32.mrf.mxu0
        %v2451 = vpop.f32.mrf.mxu0
        %2452 = vdwg.mxu0
        %v2457 = vcombine.low %v2310, %v2356
        %v2458 = vcombine.low %v2402, %v2448
        %v2460 = vunpack.c.l.s4 1983009808
        %v2461 = vunpack.c.0.s8 %v2460
        %v2462 = vlaneseq
        %v2463 = vshrl.u32 %v2462, 7
        %v2464 = vsub.s32 %v2461, %v2463
        %v2465 = vrot.slane %v2457, %v2464
        %v2467 = vunpack.c.l.s4 1983009808
        %v2468 = vunpack.c.0.s8 %v2467
        %v2469 = vlaneseq
        %v2470 = vshrl.u32 %v2469, 7
        %v2471 = vsub.s32 %v2468, %v2470
        %v2472 = vrot.slane %v2458, %v2471
        %v2473 = vcombine.low %v2465, %v2472
        %v2475 = vpack.c.bf16 %v2473, %v2473
        %2476 = vst [vmem:[#allocation3 + $0x4] sm:$0xf] %v2475
        %v2477 = vld [vmem:[#allocation3] sm:$0xff]
        %v2478 = vld [vmem:[%s566] sm:$0xff]
        %v2479 = vld [vmem:[%s566 + $0x8] sm:$0xff]
        %v2480 = vld [vmem:[%s566 + $0x10] sm:$0xff]
        %v2481 = vld [vmem:[%s566 + $0x18] sm:$0xff]
        %v2482 = vld [vmem:[%s566 + $0x20] sm:$0xff]
        %v2483 = vld [vmem:[%s566 + $0x28] sm:$0xff]
        %v2484 = vld [vmem:[%s566 + $0x30] sm:$0xff]
        %v2485 = vld [vmem:[%s566 + $0x38] sm:$0xff]
        %v2486 = vld [vmem:[%s566 + $0x40] sm:$0xff]
        %v2487 = vld [vmem:[%s566 + $0x48] sm:$0xff]
        %v2488 = vld [vmem:[%s566 + $0x50] sm:$0xff]
        %v2489 = vld [vmem:[%s566 + $0x58] sm:$0xff]
        %v2490 = vld [vmem:[%s566 + $0x60] sm:$0xff]
        %v2491 = vld [vmem:[%s566 + $0x68] sm:$0xff]
        %v2492 = vld [vmem:[%s566 + $0x70] sm:$0xff]
        %v2493 = vld [vmem:[%s566 + $0x78] sm:$0xff]
        %v2494 = vld [vmem:[%s566 + $0x80] sm:$0xff]
        %v2495 = vld [vmem:[%s566 + $0x88] sm:$0xff]
        %v2496 = vld [vmem:[%s566 + $0x90] sm:$0xff]
        %v2497 = vld [vmem:[%s566 + $0x98] sm:$0xff]
        %v2498 = vld [vmem:[%s566 + $0xa0] sm:$0xff]
        %v2499 = vld [vmem:[%s566 + $0xa8] sm:$0xff]
        %v2500 = vld [vmem:[%s566 + $0xb0] sm:$0xff]
        %v2501 = vld [vmem:[%s566 + $0xb8] sm:$0xff]
        %v2502 = vld [vmem:[%s566 + $0xc0] sm:$0xff]
        %v2503 = vld [vmem:[%s566 + $0xc8] sm:$0xff]
        %v2504 = vld [vmem:[%s566 + $0xd0] sm:$0xff]
        %v2505 = vld [vmem:[%s566 + $0xd8] sm:$0xff]
        %v2506 = vld [vmem:[%s566 + $0xe0] sm:$0xff]
        %v2507 = vld [vmem:[%s566 + $0xe8] sm:$0xff]
        %v2508 = vld [vmem:[%s566 + $0xf0] sm:$0xff]
        %v2509 = vld [vmem:[%s566 + $0xf8] sm:$0xff]
        %v2510 = vld [vmem:[%s696] sm:$0x3]
        %v2512 = vlaneseq
        %v2513 = vshrl.u32 %v2512, 7
        %v2514 = vsub.s32 0, %v2513
        %v2515 = vrot.slane %v2510, %v2514
        %v2516 = vlaneseq
        %v2517 = vshrl.u32 %v2516, 7
        %v2518 = vsub.s32 1, %v2517
        %v2519 = vrot.slane %v2510, %v2518
        %v2523 = vunpack.c.l.b16 %v2477
        %v2524 = vunpack.c.h.b16 %v2477
        %v2525 = vpack.c.b16 %v2523, %v2523
        %v2526 = vpack.c.b16 %v2524, %v2524
        %v2561 = vunpack.c.l.b16 %v2478
        %v2562 = vunpack.c.h.b16 %v2478
        %v2563 = vunpack.c.l.b16 %v2479
        %v2564 = vunpack.c.h.b16 %v2479
        %v2565 = vunpack.c.l.b16 %v2480
        %v2566 = vunpack.c.h.b16 %v2480
        %v2567 = vunpack.c.l.b16 %v2481
        %v2568 = vunpack.c.h.b16 %v2481
        %v2569 = vunpack.c.l.b16 %v2482
        %v2570 = vunpack.c.h.b16 %v2482
        %v2571 = vunpack.c.l.b16 %v2483
        %v2572 = vunpack.c.h.b16 %v2483
        %v2573 = vunpack.c.l.b16 %v2484
        %v2574 = vunpack.c.h.b16 %v2484
        %v2575 = vunpack.c.l.b16 %v2485
        %v2576 = vunpack.c.h.b16 %v2485
        %v2577 = vunpack.c.l.b16 %v2486
        %v2578 = vunpack.c.h.b16 %v2486
        %v2579 = vunpack.c.l.b16 %v2487
        %v2580 = vunpack.c.h.b16 %v2487
        %v2581 = vunpack.c.l.b16 %v2488
        %v2582 = vunpack.c.h.b16 %v2488
        %v2583 = vunpack.c.l.b16 %v2489
        %v2584 = vunpack.c.h.b16 %v2489
        %v2585 = vunpack.c.l.b16 %v2490
        %v2586 = vunpack.c.h.b16 %v2490
        %v2587 = vunpack.c.l.b16 %v2491
        %v2588 = vunpack.c.h.b16 %v2491
        %v2589 = vunpack.c.l.b16 %v2492
        %v2590 = vunpack.c.h.b16 %v2492
        %v2591 = vunpack.c.l.b16 %v2493
        %v2592 = vunpack.c.h.b16 %v2493
        %v2593 = vunpack.c.l.b16 %v2494
        %v2594 = vunpack.c.h.b16 %v2494
        %v2595 = vunpack.c.l.b16 %v2495
        %v2596 = vunpack.c.h.b16 %v2495
        %v2597 = vunpack.c.l.b16 %v2496
        %v2598 = vunpack.c.h.b16 %v2496
        %v2599 = vunpack.c.l.b16 %v2497
        %v2600 = vunpack.c.h.b16 %v2497
        %v2601 = vunpack.c.l.b16 %v2498
        %v2602 = vunpack.c.h.b16 %v2498
        %v2603 = vunpack.c.l.b16 %v2499
        %v2604 = vunpack.c.h.b16 %v2499
        %v2605 = vunpack.c.l.b16 %v2500
        %v2606 = vunpack.c.h.b16 %v2500
        %v2607 = vunpack.c.l.b16 %v2501
        %v2608 = vunpack.c.h.b16 %v2501
        %v2609 = vunpack.c.l.b16 %v2502
        %v2610 = vunpack.c.h.b16 %v2502
        %v2611 = vunpack.c.l.b16 %v2503
        %v2612 = vunpack.c.h.b16 %v2503
        %v2613 = vunpack.c.l.b16 %v2504
        %v2614 = vunpack.c.h.b16 %v2504
        %v2615 = vunpack.c.l.b16 %v2505
        %v2616 = vunpack.c.h.b16 %v2505
        %v2617 = vunpack.c.l.b16 %v2506
        %v2618 = vunpack.c.h.b16 %v2506
        %v2619 = vunpack.c.l.b16 %v2507
        %v2620 = vunpack.c.h.b16 %v2507
        %v2621 = vunpack.c.l.b16 %v2508
        %v2622 = vunpack.c.h.b16 %v2508
        %v2623 = vunpack.c.l.b16 %v2509
        %v2624 = vunpack.c.h.b16 %v2509
        %v2625 = vpack.c.b16 %v2563, %v2561
        %v2626 = vpack.c.b16 %v2564, %v2562
        %v2627 = vpack.c.b16 %v2567, %v2565
        %v2628 = vpack.c.b16 %v2568, %v2566
        %v2629 = vpack.c.b16 %v2571, %v2569
        %v2630 = vpack.c.b16 %v2572, %v2570
        %v2631 = vpack.c.b16 %v2575, %v2573
        %v2632 = vpack.c.b16 %v2576, %v2574
        %v2633 = vpack.c.b16 %v2579, %v2577
        %v2634 = vpack.c.b16 %v2580, %v2578
        %v2635 = vpack.c.b16 %v2583, %v2581
        %v2636 = vpack.c.b16 %v2584, %v2582
        %v2637 = vpack.c.b16 %v2587, %v2585
        %v2638 = vpack.c.b16 %v2588, %v2586
        %v2639 = vpack.c.b16 %v2591, %v2589
        %v2640 = vpack.c.b16 %v2592, %v2590
        %v2641 = vpack.c.b16 %v2595, %v2593
        %v2642 = vpack.c.b16 %v2596, %v2594
        %v2643 = vpack.c.b16 %v2599, %v2597
        %v2644 = vpack.c.b16 %v2600, %v2598
        %v2645 = vpack.c.b16 %v2603, %v2601
        %v2646 = vpack.c.b16 %v2604, %v2602
        %v2647 = vpack.c.b16 %v2607, %v2605
        %v2648 = vpack.c.b16 %v2608, %v2606
        %v2649 = vpack.c.b16 %v2611, %v2609
        %v2650 = vpack.c.b16 %v2612, %v2610
        %v2651 = vpack.c.b16 %v2615, %v2613
        %v2652 = vpack.c.b16 %v2616, %v2614
        %v2653 = vpack.c.b16 %v2619, %v2617
        %v2654 = vpack.c.b16 %v2620, %v2618
        %v2655 = vpack.c.b16 %v2623, %v2621
        %v2656 = vpack.c.b16 %v2624, %v2622
        %2689 = vmatprep.subr.bf16.mxu0 %v2640
        %2690 = vmatpush1.bf16.msra.mxu0 %v2639
        %2691 = vmatprep.subr.bf16.mxu0 %v2638
        %2692 = vmatpush1.bf16.msra.mxu0 %v2637
        %2693 = vmatprep.subr.bf16.mxu0 %v2636
        %2694 = vmatpush1.bf16.msra.mxu0 %v2635
        %2695 = vmatprep.subr.bf16.mxu0 %v2634
        %2696 = vmatpush1.bf16.msra.mxu0 %v2633
        %2697 = vmatprep.subr.bf16.mxu0 %v2632
        %2698 = vmatpush1.bf16.msra.mxu0 %v2631
        %2699 = vmatprep.subr.bf16.mxu0 %v2630
        %2700 = vmatpush1.bf16.msra.mxu0 %v2629
        %2701 = vmatprep.subr.bf16.mxu0 %v2628
        %2702 = vmatpush1.bf16.msra.mxu0 %v2627
        %2703 = vmatprep.subr.bf16.mxu0 %v2626
        %2704 = vmatpush1.bf16.msra.mxu0 %v2625
        %2705 = vmatprep.subr.bf16.mxu0 %v2656
        %2706 = vmatpush2.bf16.msra.mxu0 %v2655
        %2707 = vmatprep.subr.bf16.mxu0 %v2654
        %2708 = vmatpush2.bf16.msra.mxu0 %v2653
        %2709 = vmatprep.subr.bf16.mxu0 %v2652
        %2710 = vmatpush2.bf16.msra.mxu0 %v2651
        %2711 = vmatprep.subr.bf16.mxu0 %v2650
        %2712 = vmatpush2.bf16.msra.mxu0 %v2649
        %2713 = vmatprep.subr.bf16.mxu0 %v2648
        %2714 = vmatpush2.bf16.msra.mxu0 %v2647
        %2715 = vmatprep.subr.bf16.mxu0 %v2646
        %2716 = vmatpush2.bf16.msra.mxu0 %v2645
        %2717 = vmatprep.subr.bf16.mxu0 %v2644
        %2718 = vmatpush2.bf16.msra.mxu0 %v2643
        %2719 = vmatprep.subr.bf16.mxu0 %v2642
        %2720 = vmatpush2.bf16.msra.mxu0 %v2641
        %2721 = vmatprep.mubr.bf16.mxu0 %v2526
        %2722 = vmatmul.mubr.bf16.gmra.mxu0 %v2525
        %v2723 = vpop.f32.mrf.mxu0
        %v2724 = vadd.f32 %v2515, %v2723
        %v2725 = vpop.f32.mrf.mxu0
        %v2726 = vadd.f32 %v2519, %v2725
        %v2727 = vpop.f32.mrf.mxu0
        %v2728 = vpop.f32.mrf.mxu0
        %2729 = vdwg.mxu0
        %v2730 = vadd.f32 %v735, %v2724
        %v2731 = vadd.f32 %v736, %v2726
        %v2732 = vld [vmem:[%s700] sm:$0x3]
        %v2733 = vld [vmem:[%s704] sm:$0x3]
        %v2734 = vadd.f32 %v2730, %v2731
        %2735 = vadd.xlane.f32.xlu0 %v2734
        %v2736 = vpop.xlane.xlu0 %2735
        %v2737 = vrcp.pop 256.0
        %v2738 = vmul.f32 %v2736, %v2737
        %v2739 = vsub.f32 %v2730, %v2738
        %v2740 = vsub.f32 %v2731, %v2738
        %v2741 = vmul.f32 %v2739, %v2739
        %v2742 = vmul.f32 %v2740, %v2740
        %v2743 = vadd.f32 %v2741, %v2742
        %2744 = vadd.xlane.f32.xlu0 %v2743
        %v2745 = vpop.xlane.xlu0 %2744
        %v2746 = vmul.f32 %v2745, %v2737
        %v2747 = vadd.f32 %v2746, 1e-05
        %v2748 = vrsqrt.pop %v2747
        %v2749 = vmul.f32 %v2739, %v2748
        %v2750 = vmul.f32 %v2740, %v2748
        %v2752 = vlaneseq
        %v2753 = vshrl.u32 %v2752, 7
        %v2754 = vsub.s32 0, %v2753
        %v2755 = vrot.slane %v2732, %v2754
        %v2756 = vlaneseq
        %v2757 = vshrl.u32 %v2756, 7
        %v2758 = vsub.s32 1, %v2757
        %v2759 = vrot.slane %v2732, %v2758
        %v2762 = vmul.f32 %v2749, %v2755
        %v2763 = vmul.f32 %v2750, %v2759
        %v2765 = vlaneseq
        %v2766 = vshrl.u32 %v2765, 7
        %v2767 = vsub.s32 0, %v2766
        %v2768 = vrot.slane %v2733, %v2767
        %v2769 = vlaneseq
        %v2770 = vshrl.u32 %v2769, 7
        %v2771 = vsub.s32 1, %v2770
        %v2772 = vrot.slane %v2733, %v2771
        %v2775 = vadd.f32 %v2762, %v2768
        %v2776 = vadd.f32 %v2763, %v2772
        %v2777 = vpack.c.bf16 %v2775, %v2775
        %v2778 = vpack.c.bf16 %v2776, %v2776
        %v2779 = vld [vmem:[%s575] sm:$0xff]
        %v2780 = vld [vmem:[%s575 + $0x8] sm:$0xff]
        %v2781 = vld [vmem:[%s575 + $0x10] sm:$0xff]
        %v2782 = vld [vmem:[%s575 + $0x18] sm:$0xff]
        %v2783 = vld [vmem:[%s575 + $0x20] sm:$0xff]
        %v2784 = vld [vmem:[%s575 + $0x28] sm:$0xff]
        %v2785 = vld [vmem:[%s575 + $0x30] sm:$0xff]
        %v2786 = vld [vmem:[%s575 + $0x38] sm:$0xff]
        %v2787 = vld [vmem:[%s575 + $0x40] sm:$0xff]
        %v2788 = vld [vmem:[%s575 + $0x48] sm:$0xff]
        %v2789 = vld [vmem:[%s575 + $0x50] sm:$0xff]
        %v2790 = vld [vmem:[%s575 + $0x58] sm:$0xff]
        %v2791 = vld [vmem:[%s575 + $0x60] sm:$0xff]
        %v2792 = vld [vmem:[%s575 + $0x68] sm:$0xff]
        %v2793 = vld [vmem:[%s575 + $0x70] sm:$0xff]
        %v2794 = vld [vmem:[%s575 + $0x78] sm:$0xff]
        %v2795 = vld [vmem:[%s575 + $0x80] sm:$0xff]
        %v2796 = vld [vmem:[%s575 + $0x88] sm:$0xff]
        %v2797 = vld [vmem:[%s575 + $0x90] sm:$0xff]
        %v2798 = vld [vmem:[%s575 + $0x98] sm:$0xff]
        %v2799 = vld [vmem:[%s575 + $0xa0] sm:$0xff]
        %v2800 = vld [vmem:[%s575 + $0xa8] sm:$0xff]
        %v2801 = vld [vmem:[%s575 + $0xb0] sm:$0xff]
        %v2802 = vld [vmem:[%s575 + $0xb8] sm:$0xff]
        %v2803 = vld [vmem:[%s575 + $0xc0] sm:$0xff]
        %v2804 = vld [vmem:[%s575 + $0xc8] sm:$0xff]
        %v2805 = vld [vmem:[%s575 + $0xd0] sm:$0xff]
        %v2806 = vld [vmem:[%s575 + $0xd8] sm:$0xff]
        %v2807 = vld [vmem:[%s575 + $0xe0] sm:$0xff]
        %v2808 = vld [vmem:[%s575 + $0xe8] sm:$0xff]
        %v2809 = vld [vmem:[%s575 + $0xf0] sm:$0xff]
        %v2810 = vld [vmem:[%s575 + $0xf8] sm:$0xff]
        %v2811 = vld [vmem:[%s708] sm:$0x3]
        %v2813 = vlaneseq
        %v2814 = vshrl.u32 %v2813, 7
        %v2815 = vsub.s32 0, %v2814
        %v2816 = vrot.slane %v2811, %v2815
        %v2817 = vlaneseq
        %v2818 = vshrl.u32 %v2817, 7
        %v2819 = vsub.s32 1, %v2818
        %v2820 = vrot.slane %v2811, %v2819
        %v2855 = vunpack.c.l.b16 %v2779
        %v2856 = vunpack.c.h.b16 %v2779
        %v2857 = vunpack.c.l.b16 %v2780
        %v2858 = vunpack.c.h.b16 %v2780
        %v2859 = vunpack.c.l.b16 %v2781
        %v2860 = vunpack.c.h.b16 %v2781
        %v2861 = vunpack.c.l.b16 %v2782
        %v2862 = vunpack.c.h.b16 %v2782
        %v2863 = vunpack.c.l.b16 %v2783
        %v2864 = vunpack.c.h.b16 %v2783
        %v2865 = vunpack.c.l.b16 %v2784
        %v2866 = vunpack.c.h.b16 %v2784
        %v2867 = vunpack.c.l.b16 %v2785
        %v2868 = vunpack.c.h.b16 %v2785
        %v2869 = vunpack.c.l.b16 %v2786
        %v2870 = vunpack.c.h.b16 %v2786
        %v2871 = vunpack.c.l.b16 %v2787
        %v2872 = vunpack.c.h.b16 %v2787
        %v2873 = vunpack.c.l.b16 %v2788
        %v2874 = vunpack.c.h.b16 %v2788
        %v2875 = vunpack.c.l.b16 %v2789
        %v2876 = vunpack.c.h.b16 %v2789
        %v2877 = vunpack.c.l.b16 %v2790
        %v2878 = vunpack.c.h.b16 %v2790
        %v2879 = vunpack.c.l.b16 %v2791
        %v2880 = vunpack.c.h.b16 %v2791
        %v2881 = vunpack.c.l.b16 %v2792
        %v2882 = vunpack.c.h.b16 %v2792
        %v2883 = vunpack.c.l.b16 %v2793
        %v2884 = vunpack.c.h.b16 %v2793
        %v2885 = vunpack.c.l.b16 %v2794
        %v2886 = vunpack.c.h.b16 %v2794
        %v2887 = vunpack.c.l.b16 %v2795
        %v2888 = vunpack.c.h.b16 %v2795
        %v2889 = vunpack.c.l.b16 %v2796
        %v2890 = vunpack.c.h.b16 %v2796
        %v2891 = vunpack.c.l.b16 %v2797
        %v2892 = vunpack.c.h.b16 %v2797
        %v2893 = vunpack.c.l.b16 %v2798
        %v2894 = vunpack.c.h.b16 %v2798
        %v2895 = vunpack.c.l.b16 %v2799
        %v2896 = vunpack.c.h.b16 %v2799
        %v2897 = vunpack.c.l.b16 %v2800
        %v2898 = vunpack.c.h.b16 %v2800
        %v2899 = vunpack.c.l.b16 %v2801
        %v2900 = vunpack.c.h.b16 %v2801
        %v2901 = vunpack.c.l.b16 %v2802
        %v2902 = vunpack.c.h.b16 %v2802
        %v2903 = vunpack.c.l.b16 %v2803
        %v2904 = vunpack.c.h.b16 %v2803
        %v2905 = vunpack.c.l.b16 %v2804
        %v2906 = vunpack.c.h.b16 %v2804
        %v2907 = vunpack.c.l.b16 %v2805
        %v2908 = vunpack.c.h.b16 %v2805
        %v2909 = vunpack.c.l.b16 %v2806
        %v2910 = vunpack.c.h.b16 %v2806
        %v2911 = vunpack.c.l.b16 %v2807
        %v2912 = vunpack.c.h.b16 %v2807
        %v2913 = vunpack.c.l.b16 %v2808
        %v2914 = vunpack.c.h.b16 %v2808
        %v2915 = vunpack.c.l.b16 %v2809
        %v2916 = vunpack.c.h.b16 %v2809
        %v2917 = vunpack.c.l.b16 %v2810
        %v2918 = vunpack.c.h.b16 %v2810
        %v2919 = vpack.c.b16 %v2857, %v2855
        %v2920 = vpack.c.b16 %v2858, %v2856
        %v2921 = vpack.c.b16 %v2861, %v2859
        %v2922 = vpack.c.b16 %v2862, %v2860
        %v2923 = vpack.c.b16 %v2865, %v2863
        %v2924 = vpack.c.b16 %v2866, %v2864
        %v2925 = vpack.c.b16 %v2869, %v2867
        %v2926 = vpack.c.b16 %v2870, %v2868
        %v2927 = vpack.c.b16 %v2873, %v2871
        %v2928 = vpack.c.b16 %v2874, %v2872
        %v2929 = vpack.c.b16 %v2877, %v2875
        %v2930 = vpack.c.b16 %v2878, %v2876
        %v2931 = vpack.c.b16 %v2881, %v2879
        %v2932 = vpack.c.b16 %v2882, %v2880
        %v2933 = vpack.c.b16 %v2885, %v2883
        %v2934 = vpack.c.b16 %v2886, %v2884
        %v2935 = vpack.c.b16 %v2889, %v2887
        %v2936 = vpack.c.b16 %v2890, %v2888
        %v2937 = vpack.c.b16 %v2893, %v2891
        %v2938 = vpack.c.b16 %v2894, %v2892
        %v2939 = vpack.c.b16 %v2897, %v2895
        %v2940 = vpack.c.b16 %v2898, %v2896
        %v2941 = vpack.c.b16 %v2901, %v2899
        %v2942 = vpack.c.b16 %v2902, %v2900
        %v2943 = vpack.c.b16 %v2905, %v2903
        %v2944 = vpack.c.b16 %v2906, %v2904
        %v2945 = vpack.c.b16 %v2909, %v2907
        %v2946 = vpack.c.b16 %v2910, %v2908
        %v2947 = vpack.c.b16 %v2913, %v2911
        %v2948 = vpack.c.b16 %v2914, %v2912
        %v2949 = vpack.c.b16 %v2917, %v2915
        %v2950 = vpack.c.b16 %v2918, %v2916
        %2983 = vmatprep.subr.bf16.mxu0 %v2934
        %2984 = vmatpush1.bf16.msra.mxu0 %v2933
        %2985 = vmatprep.subr.bf16.mxu0 %v2932
        %2986 = vmatpush1.bf16.msra.mxu0 %v2931
        %2987 = vmatprep.subr.bf16.mxu0 %v2930
        %2988 = vmatpush1.bf16.msra.mxu0 %v2929
        %2989 = vmatprep.subr.bf16.mxu0 %v2928
        %2990 = vmatpush1.bf16.msra.mxu0 %v2927
        %2991 = vmatprep.subr.bf16.mxu0 %v2926
        %2992 = vmatpush1.bf16.msra.mxu0 %v2925
        %2993 = vmatprep.subr.bf16.mxu0 %v2924
        %2994 = vmatpush1.bf16.msra.mxu0 %v2923
        %2995 = vmatprep.subr.bf16.mxu0 %v2922
        %2996 = vmatpush1.bf16.msra.mxu0 %v2921
        %2997 = vmatprep.subr.bf16.mxu0 %v2920
        %2998 = vmatpush1.bf16.msra.mxu0 %v2919
        %2999 = vmatprep.subr.bf16.mxu0 %v2950
        %3000 = vmatpush2.bf16.msra.mxu0 %v2949
        %3001 = vmatprep.subr.bf16.mxu0 %v2948
        %3002 = vmatpush2.bf16.msra.mxu0 %v2947
        %3003 = vmatprep.subr.bf16.mxu0 %v2946
        %3004 = vmatpush2.bf16.msra.mxu0 %v2945
        %3005 = vmatprep.subr.bf16.mxu0 %v2944
        %3006 = vmatpush2.bf16.msra.mxu0 %v2943
        %3007 = vmatprep.subr.bf16.mxu0 %v2942
        %3008 = vmatpush2.bf16.msra.mxu0 %v2941
        %3009 = vmatprep.subr.bf16.mxu0 %v2940
        %3010 = vmatpush2.bf16.msra.mxu0 %v2939
        %3011 = vmatprep.subr.bf16.mxu0 %v2938
        %3012 = vmatpush2.bf16.msra.mxu0 %v2937
        %3013 = vmatprep.subr.bf16.mxu0 %v2936
        %3014 = vmatpush2.bf16.msra.mxu0 %v2935
        %3015 = vmatprep.mubr.bf16.mxu0 %v2778
        %3016 = vmatmul.mubr.bf16.gmra.mxu0 %v2777
        %v3017 = vpop.f32.mrf.mxu0
        %v3018 = vadd.f32 %v2816, %v3017
        %v3019 = vpop.f32.mrf.mxu0
        %v3020 = vadd.f32 %v2820, %v3019
        %v3021 = vpop.f32.mrf.mxu0
        %v3022 = vpop.f32.mrf.mxu0
        %3023 = vdwg.mxu0
        %v3024 = vmax.f32 %v3018, 0.0
        %v3025 = vmax.f32 %v3020, 0.0
        %v3026 = vpack.c.bf16 %v3024, %v3024
        %v3027 = vpack.c.bf16 %v3025, %v3025
        %v3028 = vld [vmem:[%s584] sm:$0xff]
        %v3029 = vld [vmem:[%s584 + $0x8] sm:$0xff]
        %v3030 = vld [vmem:[%s584 + $0x10] sm:$0xff]
        %v3031 = vld [vmem:[%s584 + $0x18] sm:$0xff]
        %v3032 = vld [vmem:[%s584 + $0x20] sm:$0xff]
        %v3033 = vld [vmem:[%s584 + $0x28] sm:$0xff]
        %v3034 = vld [vmem:[%s584 + $0x30] sm:$0xff]
        %v3035 = vld [vmem:[%s584 + $0x38] sm:$0xff]
        %v3036 = vld [vmem:[%s584 + $0x40] sm:$0xff]
        %v3037 = vld [vmem:[%s584 + $0x48] sm:$0xff]
        %v3038 = vld [vmem:[%s584 + $0x50] sm:$0xff]
        %v3039 = vld [vmem:[%s584 + $0x58] sm:$0xff]
        %v3040 = vld [vmem:[%s584 + $0x60] sm:$0xff]
        %v3041 = vld [vmem:[%s584 + $0x68] sm:$0xff]
        %v3042 = vld [vmem:[%s584 + $0x70] sm:$0xff]
        %v3043 = vld [vmem:[%s584 + $0x78] sm:$0xff]
        %v3044 = vld [vmem:[%s584 + $0x80] sm:$0xff]
        %v3045 = vld [vmem:[%s584 + $0x88] sm:$0xff]
        %v3046 = vld [vmem:[%s584 + $0x90] sm:$0xff]
        %v3047 = vld [vmem:[%s584 + $0x98] sm:$0xff]
        %v3048 = vld [vmem:[%s584 + $0xa0] sm:$0xff]
        %v3049 = vld [vmem:[%s584 + $0xa8] sm:$0xff]
        %v3050 = vld [vmem:[%s584 + $0xb0] sm:$0xff]
        %v3051 = vld [vmem:[%s584 + $0xb8] sm:$0xff]
        %v3052 = vld [vmem:[%s584 + $0xc0] sm:$0xff]
        %v3053 = vld [vmem:[%s584 + $0xc8] sm:$0xff]
        %v3054 = vld [vmem:[%s584 + $0xd0] sm:$0xff]
        %v3055 = vld [vmem:[%s584 + $0xd8] sm:$0xff]
        %v3056 = vld [vmem:[%s584 + $0xe0] sm:$0xff]
        %v3057 = vld [vmem:[%s584 + $0xe8] sm:$0xff]
        %v3058 = vld [vmem:[%s584 + $0xf0] sm:$0xff]
        %v3059 = vld [vmem:[%s584 + $0xf8] sm:$0xff]
        %v3060 = vld [vmem:[%s712] sm:$0x3]
        %v3062 = vlaneseq
        %v3063 = vshrl.u32 %v3062, 7
        %v3064 = vsub.s32 0, %v3063
        %v3065 = vrot.slane %v3060, %v3064
        %v3066 = vlaneseq
        %v3067 = vshrl.u32 %v3066, 7
        %v3068 = vsub.s32 1, %v3067
        %v3069 = vrot.slane %v3060, %v3068
        %v3104 = vunpack.c.l.b16 %v3028
        %v3105 = vunpack.c.h.b16 %v3028
        %v3106 = vunpack.c.l.b16 %v3029
        %v3107 = vunpack.c.h.b16 %v3029
        %v3108 = vunpack.c.l.b16 %v3030
        %v3109 = vunpack.c.h.b16 %v3030
        %v3110 = vunpack.c.l.b16 %v3031
        %v3111 = vunpack.c.h.b16 %v3031
        %v3112 = vunpack.c.l.b16 %v3032
        %v3113 = vunpack.c.h.b16 %v3032
        %v3114 = vunpack.c.l.b16 %v3033
        %v3115 = vunpack.c.h.b16 %v3033
        %v3116 = vunpack.c.l.b16 %v3034
        %v3117 = vunpack.c.h.b16 %v3034
        %v3118 = vunpack.c.l.b16 %v3035
        %v3119 = vunpack.c.h.b16 %v3035
        %v3120 = vunpack.c.l.b16 %v3036
        %v3121 = vunpack.c.h.b16 %v3036
        %v3122 = vunpack.c.l.b16 %v3037
        %v3123 = vunpack.c.h.b16 %v3037
        %v3124 = vunpack.c.l.b16 %v3038
        %v3125 = vunpack.c.h.b16 %v3038
        %v3126 = vunpack.c.l.b16 %v3039
        %v3127 = vunpack.c.h.b16 %v3039
        %v3128 = vunpack.c.l.b16 %v3040
        %v3129 = vunpack.c.h.b16 %v3040
        %v3130 = vunpack.c.l.b16 %v3041
        %v3131 = vunpack.c.h.b16 %v3041
        %v3132 = vunpack.c.l.b16 %v3042
        %v3133 = vunpack.c.h.b16 %v3042
        %v3134 = vunpack.c.l.b16 %v3043
        %v3135 = vunpack.c.h.b16 %v3043
        %v3136 = vunpack.c.l.b16 %v3044
        %v3137 = vunpack.c.h.b16 %v3044
        %v3138 = vunpack.c.l.b16 %v3045
        %v3139 = vunpack.c.h.b16 %v3045
        %v3140 = vunpack.c.l.b16 %v3046
        %v3141 = vunpack.c.h.b16 %v3046
        %v3142 = vunpack.c.l.b16 %v3047
        %v3143 = vunpack.c.h.b16 %v3047
        %v3144 = vunpack.c.l.b16 %v3048
        %v3145 = vunpack.c.h.b16 %v3048
        %v3146 = vunpack.c.l.b16 %v3049
        %v3147 = vunpack.c.h.b16 %v3049
        %v3148 = vunpack.c.l.b16 %v3050
        %v3149 = vunpack.c.h.b16 %v3050
        %v3150 = vunpack.c.l.b16 %v3051
        %v3151 = vunpack.c.h.b16 %v3051
        %v3152 = vunpack.c.l.b16 %v3052
        %v3153 = vunpack.c.h.b16 %v3052
        %v3154 = vunpack.c.l.b16 %v3053
        %v3155 = vunpack.c.h.b16 %v3053
        %v3156 = vunpack.c.l.b16 %v3054
        %v3157 = vunpack.c.h.b16 %v3054
        %v3158 = vunpack.c.l.b16 %v3055
        %v3159 = vunpack.c.h.b16 %v3055
        %v3160 = vunpack.c.l.b16 %v3056
        %v3161 = vunpack.c.h.b16 %v3056
        %v3162 = vunpack.c.l.b16 %v3057
        %v3163 = vunpack.c.h.b16 %v3057
        %v3164 = vunpack.c.l.b16 %v3058
        %v3165 = vunpack.c.h.b16 %v3058
        %v3166 = vunpack.c.l.b16 %v3059
        %v3167 = vunpack.c.h.b16 %v3059
        %v3168 = vpack.c.b16 %v3106, %v3104
        %v3169 = vpack.c.b16 %v3107, %v3105
        %v3170 = vpack.c.b16 %v3110, %v3108
        %v3171 = vpack.c.b16 %v3111, %v3109
        %v3172 = vpack.c.b16 %v3114, %v3112
        %v3173 = vpack.c.b16 %v3115, %v3113
        %v3174 = vpack.c.b16 %v3118, %v3116
        %v3175 = vpack.c.b16 %v3119, %v3117
        %v3176 = vpack.c.b16 %v3122, %v3120
        %v3177 = vpack.c.b16 %v3123, %v3121
        %v3178 = vpack.c.b16 %v3126, %v3124
        %v3179 = vpack.c.b16 %v3127, %v3125
        %v3180 = vpack.c.b16 %v3130, %v3128
        %v3181 = vpack.c.b16 %v3131, %v3129
        %v3182 = vpack.c.b16 %v3134, %v3132
        %v3183 = vpack.c.b16 %v3135, %v3133
        %v3184 = vpack.c.b16 %v3138, %v3136
        %v3185 = vpack.c.b16 %v3139, %v3137
        %v3186 = vpack.c.b16 %v3142, %v3140
        %v3187 = vpack.c.b16 %v3143, %v3141
        %v3188 = vpack.c.b16 %v3146, %v3144
        %v3189 = vpack.c.b16 %v3147, %v3145
        %v3190 = vpack.c.b16 %v3150, %v3148
        %v3191 = vpack.c.b16 %v3151, %v3149
        %v3192 = vpack.c.b16 %v3154, %v3152
        %v3193 = vpack.c.b16 %v3155, %v3153
        %v3194 = vpack.c.b16 %v3158, %v3156
        %v3195 = vpack.c.b16 %v3159, %v3157
        %v3196 = vpack.c.b16 %v3162, %v3160
        %v3197 = vpack.c.b16 %v3163, %v3161
        %v3198 = vpack.c.b16 %v3166, %v3164
        %v3199 = vpack.c.b16 %v3167, %v3165
        %3232 = vmatprep.subr.bf16.mxu0 %v3183
        %3233 = vmatpush1.bf16.msra.mxu0 %v3182
        %3234 = vmatprep.subr.bf16.mxu0 %v3181
        %3235 = vmatpush1.bf16.msra.mxu0 %v3180
        %3236 = vmatprep.subr.bf16.mxu0 %v3179
        %3237 = vmatpush1.bf16.msra.mxu0 %v3178
        %3238 = vmatprep.subr.bf16.mxu0 %v3177
        %3239 = vmatpush1.bf16.msra.mxu0 %v3176
        %3240 = vmatprep.subr.bf16.mxu0 %v3175
        %3241 = vmatpush1.bf16.msra.mxu0 %v3174
        %3242 = vmatprep.subr.bf16.mxu0 %v3173
        %3243 = vmatpush1.bf16.msra.mxu0 %v3172
        %3244 = vmatprep.subr.bf16.mxu0 %v3171
        %3245 = vmatpush1.bf16.msra.mxu0 %v3170
        %3246 = vmatprep.subr.bf16.mxu0 %v3169
        %3247 = vmatpush1.bf16.msra.mxu0 %v3168
        %3248 = vmatprep.subr.bf16.mxu0 %v3199
        %3249 = vmatpush2.bf16.msra.mxu0 %v3198
        %3250 = vmatprep.subr.bf16.mxu0 %v3197
        %3251 = vmatpush2.bf16.msra.mxu0 %v3196
        %3252 = vmatprep.subr.bf16.mxu0 %v3195
        %3253 = vmatpush2.bf16.msra.mxu0 %v3194
        %3254 = vmatprep.subr.bf16.mxu0 %v3193
        %3255 = vmatpush2.bf16.msra.mxu0 %v3192
        %3256 = vmatprep.subr.bf16.mxu0 %v3191
        %3257 = vmatpush2.bf16.msra.mxu0 %v3190
        %3258 = vmatprep.subr.bf16.mxu0 %v3189
        %3259 = vmatpush2.bf16.msra.mxu0 %v3188
        %3260 = vmatprep.subr.bf16.mxu0 %v3187
        %3261 = vmatpush2.bf16.msra.mxu0 %v3186
        %3262 = vmatprep.subr.bf16.mxu0 %v3185
        %3263 = vmatpush2.bf16.msra.mxu0 %v3184
        %3264 = vmatprep.mubr.bf16.mxu0 %v3027
        %3265 = vmatmul.mubr.bf16.gmra.mxu0 %v3026
        %v3266 = vpop.f32.mrf.mxu0
        %v3267 = vadd.f32 %v3065, %v3266
        %v3268 = vpop.f32.mrf.mxu0
        %v3269 = vadd.f32 %v3069, %v3268
        %v3270 = vpop.f32.mrf.mxu0
        %v3271 = vpop.f32.mrf.mxu0
        %3272 = vdwg.mxu0
        %v3273 = vadd.f32 %v2775, %v3267
        %v3274 = vadd.f32 %v2776, %v3269
        %v3275 = vld [vmem:[%s716] sm:$0x3]
        %v3276 = vld [vmem:[%s720] sm:$0x3]
        %v3277 = vadd.f32 %v3273, %v3274
        %3278 = vadd.xlane.f32.xlu0 %v3277
        %v3279 = vpop.xlane.xlu0 %3278
        %v3280 = vmul.f32 %v3279, %v2737
        %v3281 = vsub.f32 %v3273, %v3280
        %v3282 = vsub.f32 %v3274, %v3280
        %v3283 = vmul.f32 %v3281, %v3281
        %v3284 = vmul.f32 %v3282, %v3282
        %v3285 = vadd.f32 %v3283, %v3284
        %3286 = vadd.xlane.f32.xlu0 %v3285
        %v3287 = vpop.xlane.xlu0 %3286
        %v3288 = vmul.f32 %v3287, %v2737
        %v3289 = vadd.f32 %v3288, 1e-05
        %v3290 = vrsqrt.pop %v3289
        %v3291 = vmul.f32 %v3281, %v3290
        %v3292 = vmul.f32 %v3282, %v3290
        %v3294 = vlaneseq
        %v3295 = vshrl.u32 %v3294, 7
        %v3296 = vsub.s32 0, %v3295
        %v3297 = vrot.slane %v3275, %v3296
        %v3298 = vlaneseq
        %v3299 = vshrl.u32 %v3298, 7
        %v3300 = vsub.s32 1, %v3299
        %v3301 = vrot.slane %v3275, %v3300
        %v3304 = vmul.f32 %v3291, %v3297
        %v3305 = vmul.f32 %v3292, %v3301
        %v3307 = vlaneseq
        %v3308 = vshrl.u32 %v3307, 7
        %v3309 = vsub.s32 0, %v3308
        %v3310 = vrot.slane %v3276, %v3309
        %v3311 = vlaneseq
        %v3312 = vshrl.u32 %v3311, 7
        %v3313 = vsub.s32 1, %v3312
        %v3314 = vrot.slane %v3276, %v3313
        %v3317 = vadd.f32 %v3304, %v3310
        %v3318 = vadd.f32 %v3305, %v3314
        %3319 = vst [vmem:[#allocation2] sm:$0xff] %v3317
        %3320 = vst [vmem:[#allocation2 + $0x8] sm:$0xff] %v3318
        %p3321 = scmp.eq.s32.totalorder %s35, 1
        // Predicated region
        $region89: #{instructor_forward.4} parent=71 // pred_check
          %p3322 = pneg %p3321
        $region90: #{instructor_forward.4} parent=71 // pred_check_branch
          %3324 = sbr.rel (%p3322) target = $region92
        $region91: #{instructor_forward.4} parent=71 // pred_region
          %3325 = vst [vmem:[%s725] sm:$0xff] %v3317
          %3326 = vst [vmem:[%s725 + $0x8] sm:$0xff] %v3318
        $region92: #{instructor_forward.4} parent=71 // pred_fallthru
          _
        %p3327 = scmp.lt.s32.totalorder %s34, 0
        %s3328 = scalar_select %p3327, %s34, 0
        %s3329 = smul.addr %s3328, 2
        %s3330 = smul.addr %s3329, 8
        %s3331 = scalar_lea.vmem %s13, %s3330
        // Predicated region
        $region93: #{instructor_forward.4} parent=71 // pred_check
          %p3332 = pneg %p398
        $region94: #{instructor_forward.4} parent=71 // pred_check_branch
          %3334 = sbr.rel (%p3332) target = $region96
        $region95: #{instructor_forward.4} parent=71 // pred_region
          _
        $region96: #{instructor_forward.4} parent=71 // pred_fallthru
          _
        // Predicated region
        $region97: #{instructor_forward.4} parent=71 // pred_check
          %p3335 = pneg %p398
        $region98: #{instructor_forward.4} parent=71 // pred_check_branch
          %3337 = sbr.rel (%p3335) target = $region100
        $region99: #{instructor_forward.4} parent=71 // pred_region
          %p3338 = scmp.lt.s32.totalorder %s34, 0
          %s3339 = scalar_select %p3338, %s34, 0
          %s3340 = smul.addr %s3339, 2
          %s3341 = smul.addr %s3340, 8
          %s3342 = scalar_lea.vmem %s13, %s3341
        $region100: #{instructor_forward.4} parent=71 // pred_fallthru
          _
      $region72: #{instructor_forward.4} parent=5 // pred_fallthru
        _
      %p3343 = scmp.le.s32.totalorder 2, %s25
      // Predicated region
      $region101: #{instructor_forward.4} parent=5 // pred_check
        %p3344 = pneg %p3343
      $region102: #{instructor_forward.4} parent=5 // pred_check_branch
        %3346 = sbr.rel (%p3344) target = $region104
      $region103: #{instructor_forward.4} parent=5 // pred_region
        %s3347 = ssub.s32 %s25, 2
      $region104: #{instructor_forward.4} parent=5 // pred_fallthru
        _
    $region6: #{instructor_forward.4} parent=1 // loop_footer
      %s29 = sadd.s32 1, %s25
    $region7: #{instructor_forward.4} parent=1 // loop_footer_branch
      %24 = sbr.rel target = $region3
    $region8: #{instructor_forward.4} parent=1 // loop_exit
      _
    %3348 = vsyncpa [#allocation5], 1
    %s3349 = scalar_lea.sflag [#allocation5], 1
    %3350 = vsyncpa %s3349, 1
    %3351 = vsyncpa [#allocation7], 1
    %s3352 = scalar_lea.sflag [#allocation7], 1
    %3353 = vsyncpa %s3352, 1

</llo_original>
